<compile_context>
chip_gen: v7x
topology: tpu7x:2x2x1
jax: 0.10.0
libtpu: 0.0.40
codegen_flags: <defaults>
</compile_context>

<pallas_src>
import functools
import math

import numpy as np

import jax
import jax.numpy as jnp
from jax.experimental import pallas as pl
from jax.experimental.pallas import tpu as pltpu

LANES = 128                  # TPU lane width; all kernel tensors padded to it
KH = KW = 5                  # conv kernel size
ACT_DTYPE = jnp.bfloat16     # MXU-native operand dtype (accumulation is f32)
BT_GRAN = 16                 # batch-tile granularity (= bf16 sublane tile)
BT_MAX = 64                  # max batch tile (keeps per-step VMEM ~< 10 MiB)


# ------------------------------- fused kernel ------------------------------- #

def _fused_cnn_kernel(x_ref, c1w_ref, c1b_ref, c2w_ref, c2b_ref,
                      f1w_ref, f1b_ref, f2w_ref, f2b_ref, f3w_ref, f3b_ref,
                      o_ref, *, bt):
    """Full LeNet forward for one batch tile of `bt` images.

    x_ref : (32, bt, 128) bf16  lane = width*3 + channel (lanes >= 96 zero)
    c*w   : (5, 128, 256) bf16  banded conv weights (one 128->256 dot per tap)
    c*b   : (1, 256)      f32
    f1w   : (5, 128, 128) bf16  fc1 weight, one 128x128 block per pooled row
    f2w/f3w:(128, 128)    bf16
    f*b   : (1, 128)      f32
    o_ref : (bt, 128)     f32   logits (lanes >= num_classes are padding)
    """
    f32 = jnp.float32

    def conv_relu_pool(x_flat, w_ref, b_ref, oh):
        # x_flat: (ih*bt, 128), rows ordered (height, image).  One MXU dot per
        # row tap with M = oh*bt, accumulated in f32.
        acc = jnp.dot(x_flat[0:oh * bt], w_ref[0], preferred_element_type=f32)
        for ki in range(1, KH):
            acc += jnp.dot(x_flat[ki * bt:(ki + oh) * bt], w_ref[ki],
                           preferred_element_type=f32)
        y = jnp.maximum(acc + b_ref[...], 0.0)            # bias + ReLU
        # width 2->1 pool: the two pooling phases live in separate lane halves
        yw = jnp.maximum(y[:, :LANES], y[:, LANES:])      # (oh*bt, 128)
        # height 2->1 pool: adjacent heights are bt-aligned sublane slabs
        y3 = yw.reshape(oh // 2, 2 * bt, LANES)
        ph = jnp.maximum(y3[:, :bt, :], y3[:, bt:, :])    # (oh//2, bt, 128)
        return ph.reshape((oh // 2) * bt, LANES).astype(ACT_DTYPE)

    # (32, bt, 128) -> (32*bt, 128): layout-preserving since bt % 16 == 0.
    x1 = x_ref[...].reshape(32 * bt, LANES)
    p1 = conv_relu_pool(x1, c1w_ref, c1b_ref, oh=28)      # (14*bt, 128)
    p2 = conv_relu_pool(p1, c2w_ref, c2b_ref, oh=10)      # (5*bt, 128)

    # fc1: sum over the 5 pooled rows of (bt,128) @ (128,128) blocks.
    h = jnp.dot(p2[0:bt], f1w_ref[0], preferred_element_type=f32)
    for i2 in range(1, 5):
        h += jnp.dot(p2[i2 * bt:(i2 + 1) * bt], f1w_ref[i2],
                     preferred_element_type=f32)
    h = jnp.maximum(h + f1b_ref[...], 0.0).astype(ACT_DTYPE)
    h = jnp.maximum(jnp.dot(h, f2w_ref[...], preferred_element_type=f32)
                    + f2b_ref[...], 0.0).astype(ACT_DTYPE)
    o_ref[...] = (jnp.dot(h, f3w_ref[...], preferred_element_type=f32)
                  + f3b_ref[...])


# ------------------------------- tiling helper ------------------------------ #

def _tiling(B):
    """Batch tile (multiple of 16, <= 64) and padded batch with >= 2 tiles."""
    bt = -(-max(B, 2) // 2)                                   # ~ceil(B/2)
    bt = min(BT_MAX, max(BT_GRAN, -(-bt // BT_GRAN) * BT_GRAN))
    n_tiles = max(2, -(-B // bt))                             # >=2 for v7x 2 TC
    return bt, bt * n_tiles


# ---------------------------------- forward --------------------------------- #

def cnn_forward(prep, x_nchw, *, num_classes):
    """Mirrors _CNN.forward.  x_nchw: (B, 3, 32, 32) f32 -> (B, num_classes)."""
    B, C, H, W = x_nchw.shape
    assert (C, H, W) == (3, 32, 32), "LeNet head expects 3x32x32 inputs"
    bt, B_pad = _tiling(B)
    n_tiles = B_pad // bt

    # NCHW -> (H, B, W*C) with lane = w*3 + c; zero-pad lanes to 128 and batch
    # to B_pad.  The transpose + pad fuse into one XLA copy feeding the kernel.
    x_hbwc = jnp.transpose(x_nchw, (2, 0, 3, 1)).reshape(H, B, W * C)
    x = jnp.zeros((H, B_pad, LANES), ACT_DTYPE)
    x = x.at[:, :B, :W * C].set(x_hbwc.astype(ACT_DTYPE))

    flops = B_pad * 2 * ((28 + 10) * KH * LANES * 2 * LANES
                         + (5 + 1 + 1) * LANES * LANES)
    weight_bytes = sum(int(np.prod(v.shape)) * v.dtype.itemsize
                       for v in prep.values())
    bytes_accessed = (int(np.prod(x.shape)) * x.dtype.itemsize
                      + weight_bytes + B_pad * LANES * 4)

    out = pl.pallas_call(
        functools.partial(_fused_cnn_kernel, bt=bt),
        out_shape=jax.ShapeDtypeStruct((B_pad, LANES), jnp.float32),
        grid=(n_tiles,),
        in_specs=[
            pl.BlockSpec((H, bt, LANES), lambda i: (0, i, 0)),          # x
            pl.BlockSpec((KH, LANES, 2 * LANES), lambda i: (0, 0, 0)),  # c1w
            pl.BlockSpec((1, 2 * LANES), lambda i: (0, 0)),             # c1b
            pl.BlockSpec((KH, LANES, 2 * LANES), lambda i: (0, 0, 0)),  # c2w
            pl.BlockSpec((1, 2 * LANES), lambda i: (0, 0)),             # c2b
            pl.BlockSpec((5, LANES, LANES), lambda i: (0, 0, 0)),       # fc1w
            pl.BlockSpec((1, LANES), lambda i: (0, 0)),                 # fc1b
            pl.BlockSpec((LANES, LANES), lambda i: (0, 0)),             # fc2w
            pl.BlockSpec((1, LANES), lambda i: (0, 0)),                 # fc2b
            pl.BlockSpec((LANES, LANES), lambda i: (0, 0)),             # fc3w
            pl.BlockSpec((1, LANES), lambda i: (0, 0)),                 # fc3b
        ],
        out_specs=pl.BlockSpec((bt, LANES), lambda i: (i, 0)),
        compiler_params=pltpu.CompilerParams(
            dimension_semantics=("parallel",),
            vmem_limit_bytes=32 * 1024 * 1024),
        cost_estimate=pl.CostEstimate(flops=int(flops), transcendentals=0,
                                      bytes_accessed=int(bytes_accessed)),
    )(x, prep["c1_w"], prep["c1_b"], prep["c2_w"], prep["c2_b"],
      prep["fc1_w"], prep["fc1_b"], prep["fc2_w"], prep["fc2_b"],
      prep["fc3_w"], prep["fc3_b"])
    return out[:B, :num_classes]


# ------------------------- one-time weight re-packing ----------------------- #

def _conv_tables(w_pt, b_pt, w_in):
    """Banded ('Toeplitz') conv weight + bias row for one fused conv stage.

    Input lane layout : lane = j*C + c  (j = width < w_in, c = in-channel),
                        higher lanes are zero padding.
    Output col layout : col = (j % 2)*128 + (j // 2)*O + o, so the two
                        width-pool phases occupy separate 128-lane halves.
    """
    w_pt = np.asarray(w_pt, np.float32)
    b_pt = np.asarray(b_pt, np.float32)
    O, C, kh, kw = w_pt.shape
    ow = w_in - kw + 1
    w = np.zeros((kh, LANES, 2 * LANES), np.float32)
    b = np.zeros((1, 2 * LANES), np.float32)
    for j in range(ow):
        col = (j % 2) * LANES + (j // 2) * O
        b[0, col:col + O] = b_pt
        for ki in range(kh):
            for kj in range(kw):
                row = (j + kj) * C
                w[ki, row:row + C, col:col + O] = w_pt[:, :, ki, kj].T
    return jnp.asarray(w, ACT_DTYPE), jnp.asarray(b, jnp.float32)


def prepare_params(params, num_classes):
    """Re-pack PyTorch-layout params into kernel-ready layouts (done once)."""
    assert num_classes <= LANES
    prep = {}
    prep["c1_w"], prep["c1_b"] = _conv_tables(params["conv1_w"],
                                              params["conv1_b"], w_in=32)
    prep["c2_w"], prep["c2_b"] = _conv_tables(params["conv2_w"],
                                              params["conv2_b"], w_in=14)

    # fc1: PyTorch flatten index is o*25 + i2*5 + j2 (NCHW); our pooled conv2
    # output is block i2 (pooled row), lane = j2*16 + o.
    w1_pt = np.asarray(params["fc1_w"], np.float32)        # (120, 400)
    w1 = np.zeros((5, LANES, LANES), np.float32)
    for i2 in range(5):
        for j2 in range(5):
            for o in range(16):
                w1[i2, j2 * 16 + o, :120] = w1_pt[:, o * 25 + i2 * 5 + j2]
    prep["fc1_w"] = jnp.asarray(w1, ACT_DTYPE)
    prep["fc1_b"] = jnp.asarray(np.pad(np.asarray(params["fc1_b"], np.float32),
                                       (0, LANES - 120)).reshape(1, LANES))

    w2 = np.zeros((LANES, LANES), np.float32)
    w2[:120, :84] = np.asarray(params["fc2_w"], np.float32).T
    prep["fc2_w"] = jnp.asarray(w2, ACT_DTYPE)
    prep["fc2_b"] = jnp.asarray(np.pad(np.asarray(params["fc2_b"], np.float32),
                                       (0, LANES - 84)).reshape(1, LANES))

    w3 = np.zeros((LANES, LANES), np.float32)
    w3[:84, :num_classes] = np.asarray(params["fc3_w"], np.float32).T
    prep["fc3_w"] = jnp.asarray(w3, ACT_DTYPE)
    prep["fc3_b"] = jnp.asarray(
        np.pad(np.asarray(params["fc3_b"], np.float32),
               (0, LANES - num_classes)).reshape(1, LANES))
    return prep


# ------------------------------ parameter init ------------------------------ #

def init_params(num_classes, key):
    def uniform(key, shape, fan_in):
        bound = 1.0 / math.sqrt(fan_in)
        return jax.random.uniform(key, shape, jnp.float32, -bound, bound)

    ks = jax.random.split(key, 10)
    return {
        "conv1_w": uniform(ks[0], (6, 3, 5, 5), 3 * 5 * 5),
        "conv1_b": uniform(ks[1], (6,), 3 * 5 * 5),
        "conv2_w": uniform(ks[2], (16, 6, 5, 5), 6 * 5 * 5),
        "conv2_b": uniform(ks[3], (16,), 6 * 5 * 5),
        "fc1_w": uniform(ks[4], (120, 400), 400),   # PyTorch Linear: (out, in)
        "fc1_b": uniform(ks[5], (120,), 400),
        "fc2_w": uniform(ks[6], (84, 120), 120),
        "fc2_b": uniform(ks[7], (84,), 120),
        "fc3_w": uniform(ks[8], (num_classes, 84), 84),
        "fc3_b": uniform(ks[9], (num_classes,), 84),
    }


# ----------------------- pure-JAX reference (for checking) ------------------ #

def reference_forward(params, x):
    hp = jax.lax.Precision.HIGHEST

    def conv_relu(x, w, b):
        y = jax.lax.conv_general_dilated(
            x, w, window_strides=(1, 1), padding="VALID",
            dimension_numbers=("NCHW", "OIHW", "NCHW"), precision=hp)
        return jax.nn.relu(y + b[None, :, None, None])

    def pool(x):
        return jax.lax.reduce_window(x, -jnp.inf, jax.lax.max,
                                     (1, 1, 2, 2), (1, 1, 2, 2), "VALID")

    h = pool(conv_relu(x, params["conv1_w"], params["conv1_b"]))
    h = pool(conv_relu(h, params["conv2_w"], params["conv2_b"]))
    h = h.reshape(h.shape[0], -1)
    h = jax.nn.relu(jnp.dot(h, params["fc1_w"].T, precision=hp)
                    + params["fc1_b"])
    h = jax.nn.relu(jnp.dot(h, params["fc2_w"].T, precision=hp)
                    + params["fc2_b"])
    return jnp.dot(h, params["fc3_w"].T, precision=hp) + params["fc3_b"]


# ------------------------------------ main ----------------------------------- #

if __name__ == "__main__":
    num_classes = 10
    key = jax.random.PRNGKey(0)
    k_params, k_x = jax.random.split(key)

    params = init_params(num_classes, k_params)
    # 32x32 spatial so the flatten to 16*5*5 holds; batch 32 -> two grid steps
    # of bt=16 with no padding waste.
    x = jax.random.normal(k_x, (32, 3, 32, 32), dtype=jnp.float32)

    prep = prepare_params(params, num_classes)      # one-time weight re-pack
    fwd = jax.jit(functools.partial(cnn_forward, num_classes=num_classes))
    out = jax.block_until_ready(fwd(prep, x))

    assert out.shape == (32, num_classes), out.shape
    assert out.dtype == jnp.float32
    assert bool(jnp.all(jnp.isfinite(out)))

    ref = reference_forward(params, x)
    max_err = float(jnp.max(jnp.abs(out - ref)))
    # bf16 operands with f32 accumulation: observed error is O(1e-3).
    assert bool(jnp.allclose(out, ref, atol=2e-2, rtol=2e-2)), max_err

    print("KERNEL_OK")
</pallas_src>

<mosaic_0001>
module attributes {stable_mosaic.version = 11 : i64} {
  func.func @_fused_cnn_kernel(%arg0: i32, %arg1: memref<32x16x128xbf16, #tpu.memory_space<vmem>>, %arg2: memref<5x128x256xbf16, #tpu.memory_space<vmem>>, %arg3: memref<1x256xf32, #tpu.memory_space<vmem>>, %arg4: memref<5x128x256xbf16, #tpu.memory_space<vmem>>, %arg5: memref<1x256xf32, #tpu.memory_space<vmem>>, %arg6: memref<5x128x128xbf16, #tpu.memory_space<vmem>>, %arg7: memref<1x128xf32, #tpu.memory_space<vmem>>, %arg8: memref<128x128xbf16, #tpu.memory_space<vmem>>, %arg9: memref<1x128xf32, #tpu.memory_space<vmem>>, %arg10: memref<128x128xbf16, #tpu.memory_space<vmem>>, %arg11: memref<1x128xf32, #tpu.memory_space<vmem>>, %arg12: memref<16x128xf32, #tpu.memory_space<vmem>>) attributes {dimension_semantics = [#tpu.dimension_semantics<parallel>], iteration_bounds = array<i64: 2>, scalar_prefetch = 0 : i64, scratch_operands = 0 : i64, tpu.core_type = #tpu.core_type<tc>, window_params = [{transform_indices = @transform_0, window_bounds = array<i64: 32, 16, 128>}, {pipeline_mode = #tpu.pipeline_mode<synchronous>, transform_indices = @transform_1, window_bounds = array<i64: 5, 128, 256>}, {pipeline_mode = #tpu.pipeline_mode<synchronous>, transform_indices = @transform_2, window_bounds = array<i64: 1, 256>}, {pipeline_mode = #tpu.pipeline_mode<synchronous>, transform_indices = @transform_3, window_bounds = array<i64: 5, 128, 256>}, {pipeline_mode = #tpu.pipeline_mode<synchronous>, transform_indices = @transform_4, window_bounds = array<i64: 1, 256>}, {pipeline_mode = #tpu.pipeline_mode<synchronous>, transform_indices = @transform_5, window_bounds = array<i64: 5, 128, 128>}, {pipeline_mode = #tpu.pipeline_mode<synchronous>, transform_indices = @transform_6, window_bounds = array<i64: 1, 128>}, {pipeline_mode = #tpu.pipeline_mode<synchronous>, transform_indices = @transform_7, window_bounds = array<i64: 128, 128>}, {pipeline_mode = #tpu.pipeline_mode<synchronous>, transform_indices = @transform_8, window_bounds = array<i64: 1, 128>}, {pipeline_mode = #tpu.pipeline_mode<synchronous>, transform_indices = @transform_9, window_bounds = array<i64: 128, 128>}, {pipeline_mode = #tpu.pipeline_mode<synchronous>, transform_indices = @transform_10, window_bounds = array<i64: 1, 128>}, {transform_indices = @transform_11, window_bounds = array<i64: 16, 128>}]} {
    %c0 = arith.constant 0 : index
    %c0_0 = arith.constant 0 : index
    %c0_1 = arith.constant 0 : index
    %0 = vector.load %arg1[%c0, %c0_0, %c0_1] : memref<32x16x128xbf16, #tpu.memory_space<vmem>>, vector<32x16x128xbf16>
    %1 = vector.shape_cast %0 : vector<32x16x128xbf16> to vector<512x128xbf16>
    %2 = vector.extract_strided_slice %1 {offsets = [0, 0], sizes = [448, 128], strides = [1, 1]} : vector<512x128xbf16> to vector<448x128xbf16>
    %c0_2 = arith.constant 0 : index
    %c0_3 = arith.constant 0 : index
    %c0_4 = arith.constant 0 : index
    %3 = vector.load %arg2[%c0_2, %c0_3, %c0_4] : memref<5x128x256xbf16, #tpu.memory_space<vmem>>, vector<1x128x256xbf16>
    %4 = vector.shape_cast %3 : vector<1x128x256xbf16> to vector<128x256xbf16>
    %cst = arith.constant dense<0.000000e+00> : vector<448x256xf32>
    %5 = tpu.matmul %2, %4, %cst {dimension_numbers = #tpu.dot_dimension_numbers<[1], [0], [0], [1], [0, 0, 1, 1], [], []>} : vector<448x128xbf16>, vector<128x256xbf16>, vector<448x256xf32> -> vector<448x256xf32>
    %6 = vector.extract_strided_slice %1 {offsets = [16, 0], sizes = [448, 128], strides = [1, 1]} : vector<512x128xbf16> to vector<448x128xbf16>
    %c1 = arith.constant 1 : index
    %c0_5 = arith.constant 0 : index
    %c0_6 = arith.constant 0 : index
    %7 = vector.load %arg2[%c1, %c0_5, %c0_6] : memref<5x128x256xbf16, #tpu.memory_space<vmem>>, vector<1x128x256xbf16>
    %8 = vector.shape_cast %7 : vector<1x128x256xbf16> to vector<128x256xbf16>
    %cst_7 = arith.constant dense<0.000000e+00> : vector<448x256xf32>
    %9 = tpu.matmul %6, %8, %cst_7 {dimension_numbers = #tpu.dot_dimension_numbers<[1], [0], [0], [1], [0, 0, 1, 1], [], []>} : vector<448x128xbf16>, vector<128x256xbf16>, vector<448x256xf32> -> vector<448x256xf32>
    %10 = arith.addf %5, %9 : vector<448x256xf32>
    %11 = vector.extract_strided_slice %1 {offsets = [32, 0], sizes = [448, 128], strides = [1, 1]} : vector<512x128xbf16> to vector<448x128xbf16>
    %c2 = arith.constant 2 : index
    %c0_8 = arith.constant 0 : index
    %c0_9 = arith.constant 0 : index
    %12 = vector.load %arg2[%c2, %c0_8, %c0_9] : memref<5x128x256xbf16, #tpu.memory_space<vmem>>, vector<1x128x256xbf16>
    %13 = vector.shape_cast %12 : vector<1x128x256xbf16> to vector<128x256xbf16>
    %cst_10 = arith.constant dense<0.000000e+00> : vector<448x256xf32>
    %14 = tpu.matmul %11, %13, %cst_10 {dimension_numbers = #tpu.dot_dimension_numbers<[1], [0], [0], [1], [0, 0, 1, 1], [], []>} : vector<448x128xbf16>, vector<128x256xbf16>, vector<448x256xf32> -> vector<448x256xf32>
    %15 = arith.addf %10, %14 : vector<448x256xf32>
    %16 = vector.extract_strided_slice %1 {offsets = [48, 0], sizes = [448, 128], strides = [1, 1]} : vector<512x128xbf16> to vector<448x128xbf16>
    %c3 = arith.constant 3 : index
    %c0_11 = arith.constant 0 : index
    %c0_12 = arith.constant 0 : index
    %17 = vector.load %arg2[%c3, %c0_11, %c0_12] : memref<5x128x256xbf16, #tpu.memory_space<vmem>>, vector<1x128x256xbf16>
    %18 = vector.shape_cast %17 : vector<1x128x256xbf16> to vector<128x256xbf16>
    %cst_13 = arith.constant dense<0.000000e+00> : vector<448x256xf32>
    %19 = tpu.matmul %16, %18, %cst_13 {dimension_numbers = #tpu.dot_dimension_numbers<[1], [0], [0], [1], [0, 0, 1, 1], [], []>} : vector<448x128xbf16>, vector<128x256xbf16>, vector<448x256xf32> -> vector<448x256xf32>
    %20 = arith.addf %15, %19 : vector<448x256xf32>
    %21 = vector.extract_strided_slice %1 {offsets = [64, 0], sizes = [448, 128], strides = [1, 1]} : vector<512x128xbf16> to vector<448x128xbf16>
    %c4 = arith.constant 4 : index
    %c0_14 = arith.constant 0 : index
    %c0_15 = arith.constant 0 : index
    %22 = vector.load %arg2[%c4, %c0_14, %c0_15] : memref<5x128x256xbf16, #tpu.memory_space<vmem>>, vector<1x128x256xbf16>
    %23 = vector.shape_cast %22 : vector<1x128x256xbf16> to vector<128x256xbf16>
    %cst_16 = arith.constant dense<0.000000e+00> : vector<448x256xf32>
    %24 = tpu.matmul %21, %23, %cst_16 {dimension_numbers = #tpu.dot_dimension_numbers<[1], [0], [0], [1], [0, 0, 1, 1], [], []>} : vector<448x128xbf16>, vector<128x256xbf16>, vector<448x256xf32> -> vector<448x256xf32>
    %25 = arith.addf %20, %24 : vector<448x256xf32>
    %c0_17 = arith.constant 0 : index
    %c0_18 = arith.constant 0 : index
    %26 = vector.load %arg3[%c0_17, %c0_18] : memref<1x256xf32, #tpu.memory_space<vmem>>, vector<1x256xf32>
    %27 = vector.broadcast %26 : vector<1x256xf32> to vector<448x256xf32>
    %28 = arith.addf %25, %27 : vector<448x256xf32>
    %cst_19 = arith.constant 0.000000e+00 : f32
    %29 = vector.broadcast %cst_19 : f32 to vector<448x256xf32>
    %30 = arith.maximumf %28, %29 : vector<448x256xf32>
    %31 = vector.extract_strided_slice %30 {offsets = [0, 0], sizes = [448, 128], strides = [1, 1]} : vector<448x256xf32> to vector<448x128xf32>
    %32 = vector.extract_strided_slice %30 {offsets = [0, 128], sizes = [448, 128], strides = [1, 1]} : vector<448x256xf32> to vector<448x128xf32>
    %33 = arith.maximumf %31, %32 : vector<448x128xf32>
    %34 = vector.shape_cast %33 : vector<448x128xf32> to vector<14x32x128xf32>
    %35 = vector.extract_strided_slice %34 {offsets = [0, 0, 0], sizes = [14, 16, 128], strides = [1, 1, 1]} : vector<14x32x128xf32> to vector<14x16x128xf32>
    %36 = vector.extract_strided_slice %34 {offsets = [0, 16, 0], sizes = [14, 16, 128], strides = [1, 1, 1]} : vector<14x32x128xf32> to vector<14x16x128xf32>
    %37 = arith.maximumf %35, %36 : vector<14x16x128xf32>
    %38 = vector.shape_cast %37 : vector<14x16x128xf32> to vector<224x128xf32>
    %39 = arith.truncf %38 : vector<224x128xf32> to vector<224x128xbf16>
    %40 = vector.extract_strided_slice %39 {offsets = [0, 0], sizes = [160, 128], strides = [1, 1]} : vector<224x128xbf16> to vector<160x128xbf16>
    %c0_20 = arith.constant 0 : index
    %c0_21 = arith.constant 0 : index
    %c0_22 = arith.constant 0 : index
    %41 = vector.load %arg4[%c0_20, %c0_21, %c0_22] : memref<5x128x256xbf16, #tpu.memory_space<vmem>>, vector<1x128x256xbf16>
    %42 = vector.shape_cast %41 : vector<1x128x256xbf16> to vector<128x256xbf16>
    %cst_23 = arith.constant dense<0.000000e+00> : vector<160x256xf32>
    %43 = tpu.matmul %40, %42, %cst_23 {dimension_numbers = #tpu.dot_dimension_numbers<[1], [0], [0], [1], [0, 0, 1, 1], [], []>} : vector<160x128xbf16>, vector<128x256xbf16>, vector<160x256xf32> -> vector<160x256xf32>
    %44 = vector.extract_strided_slice %39 {offsets = [16, 0], sizes = [160, 128], strides = [1, 1]} : vector<224x128xbf16> to vector<160x128xbf16>
    %c1_24 = arith.constant 1 : index
    %c0_25 = arith.constant 0 : index
    %c0_26 = arith.constant 0 : index
    %45 = vector.load %arg4[%c1_24, %c0_25, %c0_26] : memref<5x128x256xbf16, #tpu.memory_space<vmem>>, vector<1x128x256xbf16>
    %46 = vector.shape_cast %45 : vector<1x128x256xbf16> to vector<128x256xbf16>
    %cst_27 = arith.constant dense<0.000000e+00> : vector<160x256xf32>
    %47 = tpu.matmul %44, %46, %cst_27 {dimension_numbers = #tpu.dot_dimension_numbers<[1], [0], [0], [1], [0, 0, 1, 1], [], []>} : vector<160x128xbf16>, vector<128x256xbf16>, vector<160x256xf32> -> vector<160x256xf32>
    %48 = arith.addf %43, %47 : vector<160x256xf32>
    %49 = vector.extract_strided_slice %39 {offsets = [32, 0], sizes = [160, 128], strides = [1, 1]} : vector<224x128xbf16> to vector<160x128xbf16>
    %c2_28 = arith.constant 2 : index
    %c0_29 = arith.constant 0 : index
    %c0_30 = arith.constant 0 : index
    %50 = vector.load %arg4[%c2_28, %c0_29, %c0_30] : memref<5x128x256xbf16, #tpu.memory_space<vmem>>, vector<1x128x256xbf16>
    %51 = vector.shape_cast %50 : vector<1x128x256xbf16> to vector<128x256xbf16>
    %cst_31 = arith.constant dense<0.000000e+00> : vector<160x256xf32>
    %52 = tpu.matmul %49, %51, %cst_31 {dimension_numbers = #tpu.dot_dimension_numbers<[1], [0], [0], [1], [0, 0, 1, 1], [], []>} : vector<160x128xbf16>, vector<128x256xbf16>, vector<160x256xf32> -> vector<160x256xf32>
    %53 = arith.addf %48, %52 : vector<160x256xf32>
    %54 = vector.extract_strided_slice %39 {offsets = [48, 0], sizes = [160, 128], strides = [1, 1]} : vector<224x128xbf16> to vector<160x128xbf16>
    %c3_32 = arith.constant 3 : index
    %c0_33 = arith.constant 0 : index
    %c0_34 = arith.constant 0 : index
    %55 = vector.load %arg4[%c3_32, %c0_33, %c0_34] : memref<5x128x256xbf16, #tpu.memory_space<vmem>>, vector<1x128x256xbf16>
    %56 = vector.shape_cast %55 : vector<1x128x256xbf16> to vector<128x256xbf16>
    %cst_35 = arith.constant dense<0.000000e+00> : vector<160x256xf32>
    %57 = tpu.matmul %54, %56, %cst_35 {dimension_numbers = #tpu.dot_dimension_numbers<[1], [0], [0], [1], [0, 0, 1, 1], [], []>} : vector<160x128xbf16>, vector<128x256xbf16>, vector<160x256xf32> -> vector<160x256xf32>
    %58 = arith.addf %53, %57 : vector<160x256xf32>
    %59 = vector.extract_strided_slice %39 {offsets = [64, 0], sizes = [160, 128], strides = [1, 1]} : vector<224x128xbf16> to vector<160x128xbf16>
    %c4_36 = arith.constant 4 : index
    %c0_37 = arith.constant 0 : index
    %c0_38 = arith.constant 0 : index
    %60 = vector.load %arg4[%c4_36, %c0_37, %c0_38] : memref<5x128x256xbf16, #tpu.memory_space<vmem>>, vector<1x128x256xbf16>
    %61 = vector.shape_cast %60 : vector<1x128x256xbf16> to vector<128x256xbf16>
    %cst_39 = arith.constant dense<0.000000e+00> : vector<160x256xf32>
    %62 = tpu.matmul %59, %61, %cst_39 {dimension_numbers = #tpu.dot_dimension_numbers<[1], [0], [0], [1], [0, 0, 1, 1], [], []>} : vector<160x128xbf16>, vector<128x256xbf16>, vector<160x256xf32> -> vector<160x256xf32>
    %63 = arith.addf %58, %62 : vector<160x256xf32>
    %c0_40 = arith.constant 0 : index
    %c0_41 = arith.constant 0 : index
    %64 = vector.load %arg5[%c0_40, %c0_41] : memref<1x256xf32, #tpu.memory_space<vmem>>, vector<1x256xf32>
    %65 = vector.broadcast %64 : vector<1x256xf32> to vector<160x256xf32>
    %66 = arith.addf %63, %65 : vector<160x256xf32>
    %cst_42 = arith.constant 0.000000e+00 : f32
    %67 = vector.broadcast %cst_42 : f32 to vector<160x256xf32>
    %68 = arith.maximumf %66, %67 : vector<160x256xf32>
    %69 = vector.extract_strided_slice %68 {offsets = [0, 0], sizes = [160, 128], strides = [1, 1]} : vector<160x256xf32> to vector<160x128xf32>
    %70 = vector.extract_strided_slice %68 {offsets = [0, 128], sizes = [160, 128], strides = [1, 1]} : vector<160x256xf32> to vector<160x128xf32>
    %71 = arith.maximumf %69, %70 : vector<160x128xf32>
    %72 = vector.shape_cast %71 : vector<160x128xf32> to vector<5x32x128xf32>
    %73 = vector.extract_strided_slice %72 {offsets = [0, 0, 0], sizes = [5, 16, 128], strides = [1, 1, 1]} : vector<5x32x128xf32> to vector<5x16x128xf32>
    %74 = vector.extract_strided_slice %72 {offsets = [0, 16, 0], sizes = [5, 16, 128], strides = [1, 1, 1]} : vector<5x32x128xf32> to vector<5x16x128xf32>
    %75 = arith.maximumf %73, %74 : vector<5x16x128xf32>
    %76 = vector.shape_cast %75 : vector<5x16x128xf32> to vector<80x128xf32>
    %77 = arith.truncf %76 : vector<80x128xf32> to vector<80x128xbf16>
    %78 = vector.extract_strided_slice %77 {offsets = [0, 0], sizes = [16, 128], strides = [1, 1]} : vector<80x128xbf16> to vector<16x128xbf16>
    %c0_43 = arith.constant 0 : index
    %c0_44 = arith.constant 0 : index
    %c0_45 = arith.constant 0 : index
    %79 = vector.load %arg6[%c0_43, %c0_44, %c0_45] : memref<5x128x128xbf16, #tpu.memory_space<vmem>>, vector<1x128x128xbf16>
    %80 = vector.shape_cast %79 : vector<1x128x128xbf16> to vector<128x128xbf16>
    %cst_46 = arith.constant dense<0.000000e+00> : vector<16x128xf32>
    %81 = tpu.matmul %78, %80, %cst_46 {dimension_numbers = #tpu.dot_dimension_numbers<[1], [0], [0], [1], [0, 0, 1, 1], [], []>} : vector<16x128xbf16>, vector<128x128xbf16>, vector<16x128xf32> -> vector<16x128xf32>
    %82 = vector.extract_strided_slice %77 {offsets = [16, 0], sizes = [16, 128], strides = [1, 1]} : vector<80x128xbf16> to vector<16x128xbf16>
    %c1_47 = arith.constant 1 : index
    %c0_48 = arith.constant 0 : index
    %c0_49 = arith.constant 0 : index
    %83 = vector.load %arg6[%c1_47, %c0_48, %c0_49] : memref<5x128x128xbf16, #tpu.memory_space<vmem>>, vector<1x128x128xbf16>
    %84 = vector.shape_cast %83 : vector<1x128x128xbf16> to vector<128x128xbf16>
    %cst_50 = arith.constant dense<0.000000e+00> : vector<16x128xf32>
    %85 = tpu.matmul %82, %84, %cst_50 {dimension_numbers = #tpu.dot_dimension_numbers<[1], [0], [0], [1], [0, 0, 1, 1], [], []>} : vector<16x128xbf16>, vector<128x128xbf16>, vector<16x128xf32> -> vector<16x128xf32>
    %86 = arith.addf %81, %85 : vector<16x128xf32>
    %87 = vector.extract_strided_slice %77 {offsets = [32, 0], sizes = [16, 128], strides = [1, 1]} : vector<80x128xbf16> to vector<16x128xbf16>
    %c2_51 = arith.constant 2 : index
    %c0_52 = arith.constant 0 : index
    %c0_53 = arith.constant 0 : index
    %88 = vector.load %arg6[%c2_51, %c0_52, %c0_53] : memref<5x128x128xbf16, #tpu.memory_space<vmem>>, vector<1x128x128xbf16>
    %89 = vector.shape_cast %88 : vector<1x128x128xbf16> to vector<128x128xbf16>
    %cst_54 = arith.constant dense<0.000000e+00> : vector<16x128xf32>
    %90 = tpu.matmul %87, %89, %cst_54 {dimension_numbers = #tpu.dot_dimension_numbers<[1], [0], [0], [1], [0, 0, 1, 1], [], []>} : vector<16x128xbf16>, vector<128x128xbf16>, vector<16x128xf32> -> vector<16x128xf32>
    %91 = arith.addf %86, %90 : vector<16x128xf32>
    %92 = vector.extract_strided_slice %77 {offsets = [48, 0], sizes = [16, 128], strides = [1, 1]} : vector<80x128xbf16> to vector<16x128xbf16>
    %c3_55 = arith.constant 3 : index
    %c0_56 = arith.constant 0 : index
    %c0_57 = arith.constant 0 : index
    %93 = vector.load %arg6[%c3_55, %c0_56, %c0_57] : memref<5x128x128xbf16, #tpu.memory_space<vmem>>, vector<1x128x128xbf16>
    %94 = vector.shape_cast %93 : vector<1x128x128xbf16> to vector<128x128xbf16>
    %cst_58 = arith.constant dense<0.000000e+00> : vector<16x128xf32>
    %95 = tpu.matmul %92, %94, %cst_58 {dimension_numbers = #tpu.dot_dimension_numbers<[1], [0], [0], [1], [0, 0, 1, 1], [], []>} : vector<16x128xbf16>, vector<128x128xbf16>, vector<16x128xf32> -> vector<16x128xf32>
    %96 = arith.addf %91, %95 : vector<16x128xf32>
    %97 = vector.extract_strided_slice %77 {offsets = [64, 0], sizes = [16, 128], strides = [1, 1]} : vector<80x128xbf16> to vector<16x128xbf16>
    %c4_59 = arith.constant 4 : index
    %c0_60 = arith.constant 0 : index
    %c0_61 = arith.constant 0 : index
    %98 = vector.load %arg6[%c4_59, %c0_60, %c0_61] : memref<5x128x128xbf16, #tpu.memory_space<vmem>>, vector<1x128x128xbf16>
    %99 = vector.shape_cast %98 : vector<1x128x128xbf16> to vector<128x128xbf16>
    %cst_62 = arith.constant dense<0.000000e+00> : vector<16x128xf32>
    %100 = tpu.matmul %97, %99, %cst_62 {dimension_numbers = #tpu.dot_dimension_numbers<[1], [0], [0], [1], [0, 0, 1, 1], [], []>} : vector<16x128xbf16>, vector<128x128xbf16>, vector<16x128xf32> -> vector<16x128xf32>
    %101 = arith.addf %96, %100 : vector<16x128xf32>
    %c0_63 = arith.constant 0 : index
    %c0_64 = arith.constant 0 : index
    %102 = vector.load %arg7[%c0_63, %c0_64] : memref<1x128xf32, #tpu.memory_space<vmem>>, vector<1x128xf32>
    %103 = vector.broadcast %102 : vector<1x128xf32> to vector<16x128xf32>
    %104 = arith.addf %101, %103 : vector<16x128xf32>
    %cst_65 = arith.constant 0.000000e+00 : f32
    %105 = vector.broadcast %cst_65 : f32 to vector<16x128xf32>
    %106 = arith.maximumf %104, %105 : vector<16x128xf32>
    %107 = arith.truncf %106 : vector<16x128xf32> to vector<16x128xbf16>
    %c0_66 = arith.constant 0 : index
    %c0_67 = arith.constant 0 : index
    %108 = vector.load %arg8[%c0_66, %c0_67] : memref<128x128xbf16, #tpu.memory_space<vmem>>, vector<128x128xbf16>
    %cst_68 = arith.constant dense<0.000000e+00> : vector<16x128xf32>
    %109 = tpu.matmul %107, %108, %cst_68 {dimension_numbers = #tpu.dot_dimension_numbers<[1], [0], [0], [1], [0, 0, 1, 1], [], []>} : vector<16x128xbf16>, vector<128x128xbf16>, vector<16x128xf32> -> vector<16x128xf32>
    %c0_69 = arith.constant 0 : index
    %c0_70 = arith.constant 0 : index
    %110 = vector.load %arg9[%c0_69, %c0_70] : memref<1x128xf32, #tpu.memory_space<vmem>>, vector<1x128xf32>
    %111 = vector.broadcast %110 : vector<1x128xf32> to vector<16x128xf32>
    %112 = arith.addf %109, %111 : vector<16x128xf32>
    %cst_71 = arith.constant 0.000000e+00 : f32
    %113 = vector.broadcast %cst_71 : f32 to vector<16x128xf32>
    %114 = arith.maximumf %112, %113 : vector<16x128xf32>
    %115 = arith.truncf %114 : vector<16x128xf32> to vector<16x128xbf16>
    %c0_72 = arith.constant 0 : index
    %c0_73 = arith.constant 0 : index
    %116 = vector.load %arg10[%c0_72, %c0_73] : memref<128x128xbf16, #tpu.memory_space<vmem>>, vector<128x128xbf16>
    %cst_74 = arith.constant dense<0.000000e+00> : vector<16x128xf32>
    %117 = tpu.matmul %115, %116, %cst_74 {dimension_numbers = #tpu.dot_dimension_numbers<[1], [0], [0], [1], [0, 0, 1, 1], [], []>} : vector<16x128xbf16>, vector<128x128xbf16>, vector<16x128xf32> -> vector<16x128xf32>
    %c0_75 = arith.constant 0 : index
    %c0_76 = arith.constant 0 : index
    %118 = vector.load %arg11[%c0_75, %c0_76] : memref<1x128xf32, #tpu.memory_space<vmem>>, vector<1x128xf32>
    %119 = vector.broadcast %118 : vector<1x128xf32> to vector<16x128xf32>
    %120 = arith.addf %117, %119 : vector<16x128xf32>
    %c0_77 = arith.constant 0 : index
    %c0_78 = arith.constant 0 : index
    %121 = vector.load %arg12[%c0_77, %c0_78] : memref<16x128xf32, #tpu.memory_space<vmem>>, vector<16x128xf32>
    tpu.vector_store %arg12[%c0_77, %c0_78], %120 {strides = array<i32>} : memref<16x128xf32, #tpu.memory_space<vmem>>, vector<16x128xf32>,
    return
  }
  func.func @transform_0(%arg0: i32) -> (i32, i32, i32) {
    %c0_i32 = arith.constant 0 : i32
    %c0_i32_0 = arith.constant 0 : i32
    %c0_i32_1 = arith.constant 0 : i32
    return %c0_i32, %arg0, %c0_i32_0 : i32, i32, i32
  }
  func.func @transform_1(%arg0: i32) -> (i32, i32, i32) {
    %c0_i32 = arith.constant 0 : i32
    %c0_i32_0 = arith.constant 0 : i32
    %c0_i32_1 = arith.constant 0 : i32
    %c0_i32_2 = arith.constant 0 : i32
    return %c0_i32, %c0_i32_0, %c0_i32_1 : i32, i32, i32
  }
  func.func @transform_2(%arg0: i32) -> (i32, i32) {
    %c0_i32 = arith.constant 0 : i32
    %c0_i32_0 = arith.constant 0 : i32
    %c0_i32_1 = arith.constant 0 : i32
    return %c0_i32, %c0_i32_0 : i32, i32
  }
  func.func @transform_3(%arg0: i32) -> (i32, i32, i32) {
    %c0_i32 = arith.constant 0 : i32
    %c0_i32_0 = arith.constant 0 : i32
    %c0_i32_1 = arith.constant 0 : i32
    %c0_i32_2 = arith.constant 0 : i32
    return %c0_i32, %c0_i32_0, %c0_i32_1 : i32, i32, i32
  }
  func.func @transform_4(%arg0: i32) -> (i32, i32) {
    %c0_i32 = arith.constant 0 : i32
    %c0_i32_0 = arith.constant 0 : i32
    %c0_i32_1 = arith.constant 0 : i32
    return %c0_i32, %c0_i32_0 : i32, i32
  }
  func.func @transform_5(%arg0: i32) -> (i32, i32, i32) {
    %c0_i32 = arith.constant 0 : i32
    %c0_i32_0 = arith.constant 0 : i32
    %c0_i32_1 = arith.constant 0 : i32
    %c0_i32_2 = arith.constant 0 : i32
    return %c0_i32, %c0_i32_0, %c0_i32_1 : i32, i32, i32
  }
  func.func @transform_6(%arg0: i32) -> (i32, i32) {
    %c0_i32 = arith.constant 0 : i32
    %c0_i32_0 = arith.constant 0 : i32
    %c0_i32_1 = arith.constant 0 : i32
    return %c0_i32, %c0_i32_0 : i32, i32
  }
  func.func @transform_7(%arg0: i32) -> (i32, i32) {
    %c0_i32 = arith.constant 0 : i32
    %c0_i32_0 = arith.constant 0 : i32
    %c0_i32_1 = arith.constant 0 : i32
    return %c0_i32, %c0_i32_0 : i32, i32
  }
  func.func @transform_8(%arg0: i32) -> (i32, i32) {
    %c0_i32 = arith.constant 0 : i32
    %c0_i32_0 = arith.constant 0 : i32
    %c0_i32_1 = arith.constant 0 : i32
    return %c0_i32, %c0_i32_0 : i32, i32
  }
  func.func @transform_9(%arg0: i32) -> (i32, i32) {
    %c0_i32 = arith.constant 0 : i32
    %c0_i32_0 = arith.constant 0 : i32
    %c0_i32_1 = arith.constant 0 : i32
    return %c0_i32, %c0_i32_0 : i32, i32
  }
  func.func @transform_10(%arg0: i32) -> (i32, i32) {
    %c0_i32 = arith.constant 0 : i32
    %c0_i32_0 = arith.constant 0 : i32
    %c0_i32_1 = arith.constant 0 : i32
    return %c0_i32, %c0_i32_0 : i32, i32
  }
  func.func @transform_11(%arg0: i32) -> (i32, i32) {
    %c0_i32 = arith.constant 0 : i32
    %c0_i32_0 = arith.constant 0 : i32
    return %arg0, %c0_i32 : i32, i32
  }
}

</mosaic_0001>

<llo_original>
// kernel: cnn_forward.1
$region0: #{cnn_forward.1}
  #allocation0 [shape = 'u32[]', space=smem, size = 0x4, offset = 0x4, fixed_abs, tag = 'smem constant byte address 0x4 - core index']
  #allocation1 [shape = 'u32[144,128]{1,0:T(1,128)}', space=vmem, size = 0x12000, scoped, tag = 'internal scratch']
  %s0 = inlined_call_operand.vmem [shape: bf16[32,32,128], index: 0, kind: input, shape index: {}]
  %s1 = inlined_call_operand.vmem [shape: bf16[5,128,256], index: 1, kind: input, shape index: {}]
  %s2 = inlined_call_operand.vmem [shape: f32[1,256], index: 2, kind: input, shape index: {}]
  %s3 = inlined_call_operand.vmem [shape: bf16[5,128,256], index: 3, kind: input, shape index: {}]
  %s4 = inlined_call_operand.vmem [shape: f32[1,256], index: 4, kind: input, shape index: {}]
  %s5 = inlined_call_operand.vmem [shape: bf16[5,128,128], index: 5, kind: input, shape index: {}]
  %s6 = inlined_call_operand.vmem [shape: f32[1,128], index: 6, kind: input, shape index: {}]
  %s7 = inlined_call_operand.vmem [shape: bf16[128,128], index: 7, kind: input, shape index: {}]
  %s8 = inlined_call_operand.vmem [shape: f32[1,128], index: 8, kind: input, shape index: {}]
  %s9 = inlined_call_operand.vmem [shape: bf16[128,128], index: 9, kind: input, shape index: {}]
  %s10 = inlined_call_operand.vmem [shape: f32[1,128], index: 10, kind: input, shape index: {}]
  %s11 = inlined_call_operand.vmem [shape: f32[32,128], index: 11, kind: output, shape index: {}]
  %s12 = sld [smem:[#allocation0]]
  $region118: #{cnn_forward.1} parent=0
    _
  %s14 = ssub.s32 1, %s12
  %s15 = scalar_select 0, %s14, %s12
  $region1: #{cnn_forward.1} parent=0
    #allocation2 [shape = 'u8[262144]{0}', space=vmem, size = 0x40000, scoped, tag = 'input window, operand 0']
    loop: start=0, step=1, limit=4
    $region2: #{cnn_forward.1} parent=1 // loop_pre_header
      _
    $region3: #{cnn_forward.1} parent=1 // loop_header
      %s17 = sphi 0, %s21
      %p18 = scmp.ge.s32.totalorder %s17, 4
      %s27 = sphi 0, %s29
      %s30 = sphi 0, %s27
      %s31 = sphi 0, %s30
      %s47 = sphi 0, %s31
      %s51 = sphi 0, %s51
      %s53 = sphi 0, %s51
      %s54 = sphi 0, %s53
      %s68 = sphi 0, %s54
      %s72 = sphi 0, %s72
      %s74 = sphi 0, %s72
      %s75 = sphi 0, %s74
      %s89 = sphi 0, %s75
      %s93 = sphi 0, %s93
      %s95 = sphi 0, %s93
      %s96 = sphi 0, %s95
      %s110 = sphi 0, %s96
      %s114 = sphi 0, %s114
      %s116 = sphi 0, %s114
      %s117 = sphi 0, %s116
      %s131 = sphi 0, %s117
      %s135 = sphi 0, %s135
      %s137 = sphi 0, %s135
      %s138 = sphi 0, %s137
      %s152 = sphi 0, %s138
      %s156 = sphi 0, %s156
      %s158 = sphi 0, %s156
      %s159 = sphi 0, %s158
      %s173 = sphi 0, %s159
      %s177 = sphi 0, %s177
      %s179 = sphi 0, %s177
      %s180 = sphi 0, %s179
      %s194 = sphi 0, %s180
      %s198 = sphi 0, %s198
      %s200 = sphi 0, %s198
      %s201 = sphi 0, %s200
      %s215 = sphi 0, %s201
      %s219 = sphi 0, %s219
      %s221 = sphi 0, %s219
      %s222 = sphi 0, %s221
      %s236 = sphi 0, %s222
      %s240 = sphi 0, %s240
      %s242 = sphi 0, %s240
      %s243 = sphi 0, %s242
      %s257 = sphi 0, %s243
      %s263 = sphi 0, %s265
      %s266 = sphi 0, %s263
      %s267 = sphi 0, %s266
      %s283 = sphi 0, %s267
    $region4: #{cnn_forward.1} parent=1 // loop_header_branch
      %20 = sbr.rel (%p18) target = $region8
    $region5: #{cnn_forward.1} parent=1 // loop_body
      %s22 = ssub.s32 %s17, 1
      %s23 = ssub.s32 %s17, 2
      %s24 = sadd.s32 %s17, 1
      %s25 = ssub.s32 %s17, %s24
      %p26 = scmp.eq.s32.totalorder %s25, 0
      %s28 = sadd.s32 %s27, 1
      %s29 = scalar_select %p26, %s27, %s28
      %p32 = pneg %p26
      %p33 = scmp.eq.s32.totalorder %s17, 1
      %p34 = por %p32, %p33
      %p35 = scmp.ne.s32.totalorder %s27, %s30
      %p36 = scmp.eq.s32.totalorder %s17, 0
      %p37 = por %p35, %p36
      %p38 = scmp.ne.s32.totalorder %s27, %s30
      %p39 = scmp.eq.s32.totalorder %s22, 1
      %p40 = por %p38, %p39
      %p41 = scmp.ne.s32.totalorder %s30, %s31
      %p42 = scmp.eq.s32.totalorder %s22, 0
      %p43 = por %p41, %p42
      %p44 = scmp.ne.s32.totalorder %s30, %s31
      %p45 = scmp.eq.s32.totalorder %s23, 1
      %p46 = por %p44, %p45
      %p48 = scmp.ne.s32.totalorder %s31, %s47
      %p49 = scmp.eq.s32.totalorder %s23, 0
      %p50 = por %p48, %p49
      %s52 = sadd.s32 %s51, 1
      %p55 = scmp.eq.s32.totalorder %s17, 1
      %p56 = scmp.ne.s32.totalorder %s51, %s53
      %p57 = scmp.eq.s32.totalorder %s17, 0
      %p58 = por %p56, %p57
      %p59 = scmp.ne.s32.totalorder %s51, %s53
      %p60 = scmp.eq.s32.totalorder %s22, 1
      %p61 = por %p59, %p60
      %p62 = scmp.ne.s32.totalorder %s53, %s54
      %p63 = scmp.eq.s32.totalorder %s22, 0
      %p64 = por %p62, %p63
      %p65 = scmp.ne.s32.totalorder %s53, %s54
      %p66 = scmp.eq.s32.totalorder %s23, 1
      %p67 = por %p65, %p66
      %p69 = scmp.ne.s32.totalorder %s54, %s68
      %p70 = scmp.eq.s32.totalorder %s23, 0
      %p71 = por %p69, %p70
      %s73 = sadd.s32 %s72, 1
      %p76 = scmp.eq.s32.totalorder %s17, 1
      %p77 = scmp.ne.s32.totalorder %s72, %s74
      %p78 = scmp.eq.s32.totalorder %s17, 0
      %p79 = por %p77, %p78
      %p80 = scmp.ne.s32.totalorder %s72, %s74
      %p81 = scmp.eq.s32.totalorder %s22, 1
      %p82 = por %p80, %p81
      %p83 = scmp.ne.s32.totalorder %s74, %s75
      %p84 = scmp.eq.s32.totalorder %s22, 0
      %p85 = por %p83, %p84
      %p86 = scmp.ne.s32.totalorder %s74, %s75
      %p87 = scmp.eq.s32.totalorder %s23, 1
      %p88 = por %p86, %p87
      %p90 = scmp.ne.s32.totalorder %s75, %s89
      %p91 = scmp.eq.s32.totalorder %s23, 0
      %p92 = por %p90, %p91
      %s94 = sadd.s32 %s93, 1
      %p97 = scmp.eq.s32.totalorder %s17, 1
      %p98 = scmp.ne.s32.totalorder %s93, %s95
      %p99 = scmp.eq.s32.totalorder %s17, 0
      %p100 = por %p98, %p99
      %p101 = scmp.ne.s32.totalorder %s93, %s95
      %p102 = scmp.eq.s32.totalorder %s22, 1
      %p103 = por %p101, %p102
      %p104 = scmp.ne.s32.totalorder %s95, %s96
      %p105 = scmp.eq.s32.totalorder %s22, 0
      %p106 = por %p104, %p105
      %p107 = scmp.ne.s32.totalorder %s95, %s96
      %p108 = scmp.eq.s32.totalorder %s23, 1
      %p109 = por %p107, %p108
      %p111 = scmp.ne.s32.totalorder %s96, %s110
      %p112 = scmp.eq.s32.totalorder %s23, 0
      %p113 = por %p111, %p112
      %s115 = sadd.s32 %s114, 1
      %p118 = scmp.eq.s32.totalorder %s17, 1
      %p119 = scmp.ne.s32.totalorder %s114, %s116
      %p120 = scmp.eq.s32.totalorder %s17, 0
      %p121 = por %p119, %p120
      %p122 = scmp.ne.s32.totalorder %s114, %s116
      %p123 = scmp.eq.s32.totalorder %s22, 1
      %p124 = por %p122, %p123
      %p125 = scmp.ne.s32.totalorder %s116, %s117
      %p126 = scmp.eq.s32.totalorder %s22, 0
      %p127 = por %p125, %p126
      %p128 = scmp.ne.s32.totalorder %s116, %s117
      %p129 = scmp.eq.s32.totalorder %s23, 1
      %p130 = por %p128, %p129
      %p132 = scmp.ne.s32.totalorder %s117, %s131
      %p133 = scmp.eq.s32.totalorder %s23, 0
      %p134 = por %p132, %p133
      %s136 = sadd.s32 %s135, 1
      %p139 = scmp.eq.s32.totalorder %s17, 1
      %p140 = scmp.ne.s32.totalorder %s135, %s137
      %p141 = scmp.eq.s32.totalorder %s17, 0
      %p142 = por %p140, %p141
      %p143 = scmp.ne.s32.totalorder %s135, %s137
      %p144 = scmp.eq.s32.totalorder %s22, 1
      %p145 = por %p143, %p144
      %p146 = scmp.ne.s32.totalorder %s137, %s138
      %p147 = scmp.eq.s32.totalorder %s22, 0
      %p148 = por %p146, %p147
      %p149 = scmp.ne.s32.totalorder %s137, %s138
      %p150 = scmp.eq.s32.totalorder %s23, 1
      %p151 = por %p149, %p150
      %p153 = scmp.ne.s32.totalorder %s138, %s152
      %p154 = scmp.eq.s32.totalorder %s23, 0
      %p155 = por %p153, %p154
      %s157 = sadd.s32 %s156, 1
      %p160 = scmp.eq.s32.totalorder %s17, 1
      %p161 = scmp.ne.s32.totalorder %s156, %s158
      %p162 = scmp.eq.s32.totalorder %s17, 0
      %p163 = por %p161, %p162
      %p164 = scmp.ne.s32.totalorder %s156, %s158
      %p165 = scmp.eq.s32.totalorder %s22, 1
      %p166 = por %p164, %p165
      %p167 = scmp.ne.s32.totalorder %s158, %s159
      %p168 = scmp.eq.s32.totalorder %s22, 0
      %p169 = por %p167, %p168
      %p170 = scmp.ne.s32.totalorder %s158, %s159
      %p171 = scmp.eq.s32.totalorder %s23, 1
      %p172 = por %p170, %p171
      %p174 = scmp.ne.s32.totalorder %s159, %s173
      %p175 = scmp.eq.s32.totalorder %s23, 0
      %p176 = por %p174, %p175
      %s178 = sadd.s32 %s177, 1
      %p181 = scmp.eq.s32.totalorder %s17, 1
      %p182 = scmp.ne.s32.totalorder %s177, %s179
      %p183 = scmp.eq.s32.totalorder %s17, 0
      %p184 = por %p182, %p183
      %p185 = scmp.ne.s32.totalorder %s177, %s179
      %p186 = scmp.eq.s32.totalorder %s22, 1
      %p187 = por %p185, %p186
      %p188 = scmp.ne.s32.totalorder %s179, %s180
      %p189 = scmp.eq.s32.totalorder %s22, 0
      %p190 = por %p188, %p189
      %p191 = scmp.ne.s32.totalorder %s179, %s180
      %p192 = scmp.eq.s32.totalorder %s23, 1
      %p193 = por %p191, %p192
      %p195 = scmp.ne.s32.totalorder %s180, %s194
      %p196 = scmp.eq.s32.totalorder %s23, 0
      %p197 = por %p195, %p196
      %s199 = sadd.s32 %s198, 1
      %p202 = scmp.eq.s32.totalorder %s17, 1
      %p203 = scmp.ne.s32.totalorder %s198, %s200
      %p204 = scmp.eq.s32.totalorder %s17, 0
      %p205 = por %p203, %p204
      %p206 = scmp.ne.s32.totalorder %s198, %s200
      %p207 = scmp.eq.s32.totalorder %s22, 1
      %p208 = por %p206, %p207
      %p209 = scmp.ne.s32.totalorder %s200, %s201
      %p210 = scmp.eq.s32.totalorder %s22, 0
      %p211 = por %p209, %p210
      %p212 = scmp.ne.s32.totalorder %s200, %s201
      %p213 = scmp.eq.s32.totalorder %s23, 1
      %p214 = por %p212, %p213
      %p216 = scmp.ne.s32.totalorder %s201, %s215
      %p217 = scmp.eq.s32.totalorder %s23, 0
      %p218 = por %p216, %p217
      %s220 = sadd.s32 %s219, 1
      %p223 = scmp.eq.s32.totalorder %s17, 1
      %p224 = scmp.ne.s32.totalorder %s219, %s221
      %p225 = scmp.eq.s32.totalorder %s17, 0
      %p226 = por %p224, %p225
      %p227 = scmp.ne.s32.totalorder %s219, %s221
      %p228 = scmp.eq.s32.totalorder %s22, 1
      %p229 = por %p227, %p228
      %p230 = scmp.ne.s32.totalorder %s221, %s222
      %p231 = scmp.eq.s32.totalorder %s22, 0
      %p232 = por %p230, %p231
      %p233 = scmp.ne.s32.totalorder %s221, %s222
      %p234 = scmp.eq.s32.totalorder %s23, 1
      %p235 = por %p233, %p234
      %p237 = scmp.ne.s32.totalorder %s222, %s236
      %p238 = scmp.eq.s32.totalorder %s23, 0
      %p239 = por %p237, %p238
      %s241 = sadd.s32 %s240, 1
      %p244 = scmp.eq.s32.totalorder %s17, 1
      %p245 = scmp.ne.s32.totalorder %s240, %s242
      %p246 = scmp.eq.s32.totalorder %s17, 0
      %p247 = por %p245, %p246
      %p248 = scmp.ne.s32.totalorder %s240, %s242
      %p249 = scmp.eq.s32.totalorder %s22, 1
      %p250 = por %p248, %p249
      %p251 = scmp.ne.s32.totalorder %s242, %s243
      %p252 = scmp.eq.s32.totalorder %s22, 0
      %p253 = por %p251, %p252
      %p254 = scmp.ne.s32.totalorder %s242, %s243
      %p255 = scmp.eq.s32.totalorder %s23, 1
      %p256 = por %p254, %p255
      %p258 = scmp.ne.s32.totalorder %s243, %s257
      %p259 = scmp.eq.s32.totalorder %s23, 0
      %p260 = por %p258, %p259
      %s261 = ssub.s32 %s17, %s24
      %p262 = scmp.eq.s32.totalorder %s261, 0
      %s264 = sadd.s32 %s263, 1
      %s265 = scalar_select %p262, %s263, %s264
      %p268 = pneg %p262
      %p269 = scmp.eq.s32.totalorder %s17, 1
      %p270 = por %p268, %p269
      %p271 = scmp.ne.s32.totalorder %s263, %s266
      %p272 = scmp.eq.s32.totalorder %s17, 0
      %p273 = por %p271, %p272
      %p274 = scmp.ne.s32.totalorder %s263, %s266
      %p275 = scmp.eq.s32.totalorder %s22, 1
      %p276 = por %p274, %p275
      %p277 = scmp.ne.s32.totalorder %s266, %s267
      %p278 = scmp.eq.s32.totalorder %s22, 0
      %p279 = por %p277, %p278
      %p280 = scmp.ne.s32.totalorder %s266, %s267
      %p281 = scmp.eq.s32.totalorder %s23, 1
      %p282 = por %p280, %p281
      %p284 = scmp.ne.s32.totalorder %s267, %s283
      %p285 = scmp.eq.s32.totalorder %s23, 0
      %p286 = por %p284, %p285
      %p287 = scmp.le.s32.totalorder 1, %s17
      %p288 = scmp.lt.s32.totalorder %s17, 3
      %p289 = pnand %p287, %p288
      %p290 = pneg %p289
      // Predicated region
      $region9: #{cnn_forward.1} parent=5 // pred_check
        _
      $region10: #{cnn_forward.1} parent=5 // pred_check_branch
        %292 = sbr.rel (%p289) target = $region12
      $region11: #{cnn_forward.1} parent=5 // pred_region
        %s293 = ssub.s32 %s17, 1
        // Predicated region
        $region13: #{cnn_forward.1} parent=11 // pred_check
          %p294 = pneg %p64
        $region14: #{cnn_forward.1} parent=11 // pred_check_branch
          %296 = sbr.rel (%p294) target = $region16
        $region15: #{cnn_forward.1} parent=11 // pred_region
          _
        $region16: #{cnn_forward.1} parent=11 // pred_fallthru
          _
        // Predicated region
        $region17: #{cnn_forward.1} parent=11 // pred_check
          %p297 = pneg %p85
        $region18: #{cnn_forward.1} parent=11 // pred_check_branch
          %299 = sbr.rel (%p297) target = $region20
        $region19: #{cnn_forward.1} parent=11 // pred_region
          _
        $region20: #{cnn_forward.1} parent=11 // pred_fallthru
          _
        // Predicated region
        $region21: #{cnn_forward.1} parent=11 // pred_check
          %p300 = pneg %p106
        $region22: #{cnn_forward.1} parent=11 // pred_check_branch
          %302 = sbr.rel (%p300) target = $region24
        $region23: #{cnn_forward.1} parent=11 // pred_region
          _
        $region24: #{cnn_forward.1} parent=11 // pred_fallthru
          _
        // Predicated region
        $region25: #{cnn_forward.1} parent=11 // pred_check
          %p303 = pneg %p127
        $region26: #{cnn_forward.1} parent=11 // pred_check_branch
          %305 = sbr.rel (%p303) target = $region28
        $region27: #{cnn_forward.1} parent=11 // pred_region
          _
        $region28: #{cnn_forward.1} parent=11 // pred_fallthru
          _
        // Predicated region
        $region29: #{cnn_forward.1} parent=11 // pred_check
          %p306 = pneg %p148
        $region30: #{cnn_forward.1} parent=11 // pred_check_branch
          %308 = sbr.rel (%p306) target = $region32
        $region31: #{cnn_forward.1} parent=11 // pred_region
          _
        $region32: #{cnn_forward.1} parent=11 // pred_fallthru
          _
        // Predicated region
        $region33: #{cnn_forward.1} parent=11 // pred_check
          %p309 = pneg %p169
        $region34: #{cnn_forward.1} parent=11 // pred_check_branch
          %311 = sbr.rel (%p309) target = $region36
        $region35: #{cnn_forward.1} parent=11 // pred_region
          _
        $region36: #{cnn_forward.1} parent=11 // pred_fallthru
          _
        // Predicated region
        $region37: #{cnn_forward.1} parent=11 // pred_check
          %p312 = pneg %p190
        $region38: #{cnn_forward.1} parent=11 // pred_check_branch
          %314 = sbr.rel (%p312) target = $region40
        $region39: #{cnn_forward.1} parent=11 // pred_region
          _
        $region40: #{cnn_forward.1} parent=11 // pred_fallthru
          _
        // Predicated region
        $region41: #{cnn_forward.1} parent=11 // pred_check
          %p315 = pneg %p211
        $region42: #{cnn_forward.1} parent=11 // pred_check_branch
          %317 = sbr.rel (%p315) target = $region44
        $region43: #{cnn_forward.1} parent=11 // pred_region
          _
        $region44: #{cnn_forward.1} parent=11 // pred_fallthru
          _
        // Predicated region
        $region45: #{cnn_forward.1} parent=11 // pred_check
          %p318 = pneg %p232
        $region46: #{cnn_forward.1} parent=11 // pred_check_branch
          %320 = sbr.rel (%p318) target = $region48
        $region47: #{cnn_forward.1} parent=11 // pred_region
          _
        $region48: #{cnn_forward.1} parent=11 // pred_fallthru
          _
        // Predicated region
        $region49: #{cnn_forward.1} parent=11 // pred_check
          %p321 = pneg %p253
        $region50: #{cnn_forward.1} parent=11 // pred_check_branch
          %323 = sbr.rel (%p321) target = $region52
        $region51: #{cnn_forward.1} parent=11 // pred_region
          _
        $region52: #{cnn_forward.1} parent=11 // pred_fallthru
          _
      $region12: #{cnn_forward.1} parent=5 // pred_fallthru
        _
      %p324 = scmp.lt.s32.totalorder %s17, 2
      // Predicated region
      $region53: #{cnn_forward.1} parent=5 // pred_check
        %p325 = pneg %p324
      $region54: #{cnn_forward.1} parent=5 // pred_check_branch
        %327 = sbr.rel (%p325) target = $region56
      $region55: #{cnn_forward.1} parent=5 // pred_region
        // Predicated region
        $region57: #{cnn_forward.1} parent=55 // pred_check
          %p328 = pneg %p37
        $region58: #{cnn_forward.1} parent=55 // pred_check_branch
          %330 = sbr.rel (%p328) target = $region60
        $region59: #{cnn_forward.1} parent=55 // pred_region
          %s331 = sand.u32 %s27, 1
          %s332 = sand.u32 %s27, 1
          %s333 = smul.addr %s332, 256
          %s334 = scalar_lea.vmem [#allocation2], %s333
          %s335 = smul.u32 2, %s17
          %s336 = smul.addr %s335, 4
          %s337 = scalar_lea.vmem %s0, %s336
          // Predicated region
          $region61: #{cnn_forward.1} parent=59 // pred_check
            _
          $region62: #{cnn_forward.1} parent=59 // pred_check_branch
            %339 = sbr.rel (0) target = $region64
          $region63: #{cnn_forward.1} parent=59 // pred_region
            // Predicated region
            $region65: #{cnn_forward.1} parent=63 // pred_check
              _
            $region66: #{cnn_forward.1} parent=63 // pred_check_branch
              %341 = sbr.rel target = $region68
            $region67: #{cnn_forward.1} parent=63 // pred_region
              // Predicated region
              $region80: #{cnn_forward.1} parent=67 // pred_check
                _
              $region81: #{cnn_forward.1} parent=67 // pred_check_branch
                %482 = sbr.rel (0) target = $region83
              $region82: #{cnn_forward.1} parent=67 // pred_region
                loop: start=0, step=1, limit=1
                $region84: #{cnn_forward.1} parent=82 // loop_pre_header
                  _
                $region85: #{cnn_forward.1} parent=82 // loop_header
                  %s484 = sphi 0, %s488
                  %p485 = scmp.ge.s32.totalorder %s484, 1
                  %s489 = sphi %s337, %s337
                  %s490 = sphi %s334, %s334
                $region86: #{cnn_forward.1} parent=82 // loop_header_branch
                  %487 = sbr.rel (%p485) target = $region90
                $region87: #{cnn_forward.1} parent=82 // loop_body
                  _
                $region88: #{cnn_forward.1} parent=82 // loop_footer
                  %s488 = sadd.s32 1, %s484
                $region89: #{cnn_forward.1} parent=82 // loop_footer_branch
                  %483 = sbr.rel target = $region85
                $region90: #{cnn_forward.1} parent=82 // loop_exit
                  _
                loop: start=0, step=1, limit=1
                $region91: #{cnn_forward.1} parent=82 // loop_pre_header
                  _
                $region92: #{cnn_forward.1} parent=82 // loop_header
                  %s493 = sphi 0, %s497
                  %p494 = scmp.ge.s32.totalorder %s493, 1
                  %s498 = sphi %s337, %s337
                  %s499 = sphi %s334, %s334
                $region93: #{cnn_forward.1} parent=82 // loop_header_branch
                  %496 = sbr.rel (%p494) target = $region97
                $region94: #{cnn_forward.1} parent=82 // loop_body
                  %v500 = vld [vmem:[%s498] sm:$0xf]
                  %501 = vst [vmem:[%s499] sm:$0xf] %v500
                  %v502 = vld [vmem:[%s498 + $0x4] sm:$0xf]
                  %503 = vst [vmem:[%s499 + $0x4] sm:$0xf] %v502
                  %v504 = vld [vmem:[%s498 + $0x10] sm:$0xf]
                  %505 = vst [vmem:[%s499 + $0x8] sm:$0xf] %v504
                  %v506 = vld [vmem:[%s498 + $0x14] sm:$0xf]
                  %507 = vst [vmem:[%s499 + $0xc] sm:$0xf] %v506
                  %v508 = vld [vmem:[%s498 + $0x20] sm:$0xf]
                  %509 = vst [vmem:[%s499 + $0x10] sm:$0xf] %v508
                  %v510 = vld [vmem:[%s498 + $0x24] sm:$0xf]
                  %511 = vst [vmem:[%s499 + $0x14] sm:$0xf] %v510
                  %v512 = vld [vmem:[%s498 + $0x30] sm:$0xf]
                  %513 = vst [vmem:[%s499 + $0x18] sm:$0xf] %v512
                  %v514 = vld [vmem:[%s498 + $0x34] sm:$0xf]
                  %515 = vst [vmem:[%s499 + $0x1c] sm:$0xf] %v514
                  %v516 = vld [vmem:[%s498 + $0x40] sm:$0xf]
                  %517 = vst [vmem:[%s499 + $0x20] sm:$0xf] %v516
                  %v518 = vld [vmem:[%s498 + $0x44] sm:$0xf]
                  %519 = vst [vmem:[%s499 + $0x24] sm:$0xf] %v518
                  %v520 = vld [vmem:[%s498 + $0x50] sm:$0xf]
                  %521 = vst [vmem:[%s499 + $0x28] sm:$0xf] %v520
                  %v522 = vld [vmem:[%s498 + $0x54] sm:$0xf]
                  %523 = vst [vmem:[%s499 + $0x2c] sm:$0xf] %v522
                  %v524 = vld [vmem:[%s498 + $0x60] sm:$0xf]
                  %525 = vst [vmem:[%s499 + $0x30] sm:$0xf] %v524
                  %v526 = vld [vmem:[%s498 + $0x64] sm:$0xf]
                  %527 = vst [vmem:[%s499 + $0x34] sm:$0xf] %v526
                  %v528 = vld [vmem:[%s498 + $0x70] sm:$0xf]
                  %529 = vst [vmem:[%s499 + $0x38] sm:$0xf] %v528
                  %v530 = vld [vmem:[%s498 + $0x74] sm:$0xf]
                  %531 = vst [vmem:[%s499 + $0x3c] sm:$0xf] %v530
                  %v532 = vld [vmem:[%s498 + $0x80] sm:$0xf]
                  %533 = vst [vmem:[%s499 + $0x40] sm:$0xf] %v532
                  %v534 = vld [vmem:[%s498 + $0x84] sm:$0xf]
                  %535 = vst [vmem:[%s499 + $0x44] sm:$0xf] %v534
                  %v536 = vld [vmem:[%s498 + $0x90] sm:$0xf]
                  %537 = vst [vmem:[%s499 + $0x48] sm:$0xf] %v536
                  %v538 = vld [vmem:[%s498 + $0x94] sm:$0xf]
                  %539 = vst [vmem:[%s499 + $0x4c] sm:$0xf] %v538
                  %v540 = vld [vmem:[%s498 + $0xa0] sm:$0xf]
                  %541 = vst [vmem:[%s499 + $0x50] sm:$0xf] %v540
                  %v542 = vld [vmem:[%s498 + $0xa4] sm:$0xf]
                  %543 = vst [vmem:[%s499 + $0x54] sm:$0xf] %v542
                  %v544 = vld [vmem:[%s498 + $0xb0] sm:$0xf]
                  %545 = vst [vmem:[%s499 + $0x58] sm:$0xf] %v544
                  %v546 = vld [vmem:[%s498 + $0xb4] sm:$0xf]
                  %547 = vst [vmem:[%s499 + $0x5c] sm:$0xf] %v546
                  %v548 = vld [vmem:[%s498 + $0xc0] sm:$0xf]
                  %549 = vst [vmem:[%s499 + $0x60] sm:$0xf] %v548
                  %v550 = vld [vmem:[%s498 + $0xc4] sm:$0xf]
                  %551 = vst [vmem:[%s499 + $0x64] sm:$0xf] %v550
                  %v552 = vld [vmem:[%s498 + $0xd0] sm:$0xf]
                  %553 = vst [vmem:[%s499 + $0x68] sm:$0xf] %v552
                  %v554 = vld [vmem:[%s498 + $0xd4] sm:$0xf]
                  %555 = vst [vmem:[%s499 + $0x6c] sm:$0xf] %v554
                  %v556 = vld [vmem:[%s498 + $0xe0] sm:$0xf]
                  %557 = vst [vmem:[%s499 + $0x70] sm:$0xf] %v556
                  %v558 = vld [vmem:[%s498 + $0xe4] sm:$0xf]
                  %559 = vst [vmem:[%s499 + $0x74] sm:$0xf] %v558
                  %v560 = vld [vmem:[%s498 + $0xf0] sm:$0xf]
                  %561 = vst [vmem:[%s499 + $0x78] sm:$0xf] %v560
                  %v562 = vld [vmem:[%s498 + $0xf4] sm:$0xf]
                  %563 = vst [vmem:[%s499 + $0x7c] sm:$0xf] %v562
                  %v564 = vld [vmem:[%s498 + $0x100] sm:$0xf]
                  %565 = vst [vmem:[%s499 + $0x80] sm:$0xf] %v564
                  %v566 = vld [vmem:[%s498 + $0x104] sm:$0xf]
                  %567 = vst [vmem:[%s499 + $0x84] sm:$0xf] %v566
                  %v568 = vld [vmem:[%s498 + $0x110] sm:$0xf]
                  %569 = vst [vmem:[%s499 + $0x88] sm:$0xf] %v568
                  %v570 = vld [vmem:[%s498 + $0x114] sm:$0xf]
                  %571 = vst [vmem:[%s499 + $0x8c] sm:$0xf] %v570
                  %v572 = vld [vmem:[%s498 + $0x120] sm:$0xf]
                  %573 = vst [vmem:[%s499 + $0x90] sm:$0xf] %v572
                  %v574 = vld [vmem:[%s498 + $0x124] sm:$0xf]
                  %575 = vst [vmem:[%s499 + $0x94] sm:$0xf] %v574
                  %v576 = vld [vmem:[%s498 + $0x130] sm:$0xf]
                  %577 = vst [vmem:[%s499 + $0x98] sm:$0xf] %v576
                  %v578 = vld [vmem:[%s498 + $0x134] sm:$0xf]
                  %579 = vst [vmem:[%s499 + $0x9c] sm:$0xf] %v578
                  %v580 = vld [vmem:[%s498 + $0x140] sm:$0xf]
                  %581 = vst [vmem:[%s499 + $0xa0] sm:$0xf] %v580
                  %v582 = vld [vmem:[%s498 + $0x144] sm:$0xf]
                  %583 = vst [vmem:[%s499 + $0xa4] sm:$0xf] %v582
                  %v584 = vld [vmem:[%s498 + $0x150] sm:$0xf]
                  %585 = vst [vmem:[%s499 + $0xa8] sm:$0xf] %v584
                  %v586 = vld [vmem:[%s498 + $0x154] sm:$0xf]
                  %587 = vst [vmem:[%s499 + $0xac] sm:$0xf] %v586
                  %v588 = vld [vmem:[%s498 + $0x160] sm:$0xf]
                  %589 = vst [vmem:[%s499 + $0xb0] sm:$0xf] %v588
                  %v590 = vld [vmem:[%s498 + $0x164] sm:$0xf]
                  %591 = vst [vmem:[%s499 + $0xb4] sm:$0xf] %v590
                  %v592 = vld [vmem:[%s498 + $0x170] sm:$0xf]
                  %593 = vst [vmem:[%s499 + $0xb8] sm:$0xf] %v592
                  %v594 = vld [vmem:[%s498 + $0x174] sm:$0xf]
                  %595 = vst [vmem:[%s499 + $0xbc] sm:$0xf] %v594
                  %v596 = vld [vmem:[%s498 + $0x180] sm:$0xf]
                  %597 = vst [vmem:[%s499 + $0xc0] sm:$0xf] %v596
                  %v598 = vld [vmem:[%s498 + $0x184] sm:$0xf]
                  %599 = vst [vmem:[%s499 + $0xc4] sm:$0xf] %v598
                  %v600 = vld [vmem:[%s498 + $0x190] sm:$0xf]
                  %601 = vst [vmem:[%s499 + $0xc8] sm:$0xf] %v600
                  %v602 = vld [vmem:[%s498 + $0x194] sm:$0xf]
                  %603 = vst [vmem:[%s499 + $0xcc] sm:$0xf] %v602
                  %v604 = vld [vmem:[%s498 + $0x1a0] sm:$0xf]
                  %605 = vst [vmem:[%s499 + $0xd0] sm:$0xf] %v604
                  %v606 = vld [vmem:[%s498 + $0x1a4] sm:$0xf]
                  %607 = vst [vmem:[%s499 + $0xd4] sm:$0xf] %v606
                  %v608 = vld [vmem:[%s498 + $0x1b0] sm:$0xf]
                  %609 = vst [vmem:[%s499 + $0xd8] sm:$0xf] %v608
                  %v610 = vld [vmem:[%s498 + $0x1b4] sm:$0xf]
                  %611 = vst [vmem:[%s499 + $0xdc] sm:$0xf] %v610
                  %v612 = vld [vmem:[%s498 + $0x1c0] sm:$0xf]
                  %613 = vst [vmem:[%s499 + $0xe0] sm:$0xf] %v612
                  %v614 = vld [vmem:[%s498 + $0x1c4] sm:$0xf]
                  %615 = vst [vmem:[%s499 + $0xe4] sm:$0xf] %v614
                  %v616 = vld [vmem:[%s498 + $0x1d0] sm:$0xf]
                  %617 = vst [vmem:[%s499 + $0xe8] sm:$0xf] %v616
                  %v618 = vld [vmem:[%s498 + $0x1d4] sm:$0xf]
                  %619 = vst [vmem:[%s499 + $0xec] sm:$0xf] %v618
                  %v620 = vld [vmem:[%s498 + $0x1e0] sm:$0xf]
                  %621 = vst [vmem:[%s499 + $0xf0] sm:$0xf] %v620
                  %v622 = vld [vmem:[%s498 + $0x1e4] sm:$0xf]
                  %623 = vst [vmem:[%s499 + $0xf4] sm:$0xf] %v622
                  %v624 = vld [vmem:[%s498 + $0x1f0] sm:$0xf]
                  %625 = vst [vmem:[%s499 + $0xf8] sm:$0xf] %v624
                  %v626 = vld [vmem:[%s498 + $0x1f4] sm:$0xf]
                  %627 = vst [vmem:[%s499 + $0xfc] sm:$0xf] %v626
                $region95: #{cnn_forward.1} parent=82 // loop_footer
                  %s497 = sadd.s32 1, %s493
                $region96: #{cnn_forward.1} parent=82 // loop_footer_branch
                  %492 = sbr.rel target = $region92
                $region97: #{cnn_forward.1} parent=82 // loop_exit
                  _
              $region83: #{cnn_forward.1} parent=67 // pred_fallthru
                _
            $region68: #{cnn_forward.1} parent=63 // pred_fallthru
              _
            // Predicated region
            $region69: #{cnn_forward.1} parent=63 // pred_check
              _
            $region70: #{cnn_forward.1} parent=63 // pred_check_branch
              %343 = sbr.rel (0) target = $region72
            $region71: #{cnn_forward.1} parent=63 // pred_region
              loop: start=0, step=1, limit=1
              $region73: #{cnn_forward.1} parent=71 // loop_pre_header
                _
              $region74: #{cnn_forward.1} parent=71 // loop_header
                %s346 = sphi 0, %s350
                %p347 = scmp.ge.s32.totalorder %s346, 1
                %s351 = sphi %s337, %s337
                %s352 = sphi %s334, %s334
              $region75: #{cnn_forward.1} parent=71 // loop_header_branch
                %349 = sbr.rel (%p347) target = $region79
              $region76: #{cnn_forward.1} parent=71 // loop_body
                %v353 = vld [vmem:[%s351] sm:$0xf]
                %354 = vst [vmem:[%s352] sm:$0xf] %v353
                %v355 = vld [vmem:[%s351 + $0x4] sm:$0xf]
                %356 = vst [vmem:[%s352 + $0x4] sm:$0xf] %v355
                %v357 = vld [vmem:[%s351 + $0x10] sm:$0xf]
                %358 = vst [vmem:[%s352 + $0x8] sm:$0xf] %v357
                %v359 = vld [vmem:[%s351 + $0x14] sm:$0xf]
                %360 = vst [vmem:[%s352 + $0xc] sm:$0xf] %v359
                %v361 = vld [vmem:[%s351 + $0x20] sm:$0xf]
                %362 = vst [vmem:[%s352 + $0x10] sm:$0xf] %v361
                %v363 = vld [vmem:[%s351 + $0x24] sm:$0xf]
                %364 = vst [vmem:[%s352 + $0x14] sm:$0xf] %v363
                %v365 = vld [vmem:[%s351 + $0x30] sm:$0xf]
                %366 = vst [vmem:[%s352 + $0x18] sm:$0xf] %v365
                %v367 = vld [vmem:[%s351 + $0x34] sm:$0xf]
                %368 = vst [vmem:[%s352 + $0x1c] sm:$0xf] %v367
                %v369 = vld [vmem:[%s351 + $0x40] sm:$0xf]
                %370 = vst [vmem:[%s352 + $0x20] sm:$0xf] %v369
                %v371 = vld [vmem:[%s351 + $0x44] sm:$0xf]
                %372 = vst [vmem:[%s352 + $0x24] sm:$0xf] %v371
                %v373 = vld [vmem:[%s351 + $0x50] sm:$0xf]
                %374 = vst [vmem:[%s352 + $0x28] sm:$0xf] %v373
                %v375 = vld [vmem:[%s351 + $0x54] sm:$0xf]
                %376 = vst [vmem:[%s352 + $0x2c] sm:$0xf] %v375
                %v377 = vld [vmem:[%s351 + $0x60] sm:$0xf]
                %378 = vst [vmem:[%s352 + $0x30] sm:$0xf] %v377
                %v379 = vld [vmem:[%s351 + $0x64] sm:$0xf]
                %380 = vst [vmem:[%s352 + $0x34] sm:$0xf] %v379
                %v381 = vld [vmem:[%s351 + $0x70] sm:$0xf]
                %382 = vst [vmem:[%s352 + $0x38] sm:$0xf] %v381
                %v383 = vld [vmem:[%s351 + $0x74] sm:$0xf]
                %384 = vst [vmem:[%s352 + $0x3c] sm:$0xf] %v383
                %v385 = vld [vmem:[%s351 + $0x80] sm:$0xf]
                %386 = vst [vmem:[%s352 + $0x40] sm:$0xf] %v385
                %v387 = vld [vmem:[%s351 + $0x84] sm:$0xf]
                %388 = vst [vmem:[%s352 + $0x44] sm:$0xf] %v387
                %v389 = vld [vmem:[%s351 + $0x90] sm:$0xf]
                %390 = vst [vmem:[%s352 + $0x48] sm:$0xf] %v389
                %v391 = vld [vmem:[%s351 + $0x94] sm:$0xf]
                %392 = vst [vmem:[%s352 + $0x4c] sm:$0xf] %v391
                %v393 = vld [vmem:[%s351 + $0xa0] sm:$0xf]
                %394 = vst [vmem:[%s352 + $0x50] sm:$0xf] %v393
                %v395 = vld [vmem:[%s351 + $0xa4] sm:$0xf]
                %396 = vst [vmem:[%s352 + $0x54] sm:$0xf] %v395
                %v397 = vld [vmem:[%s351 + $0xb0] sm:$0xf]
                %398 = vst [vmem:[%s352 + $0x58] sm:$0xf] %v397
                %v399 = vld [vmem:[%s351 + $0xb4] sm:$0xf]
                %400 = vst [vmem:[%s352 + $0x5c] sm:$0xf] %v399
                %v401 = vld [vmem:[%s351 + $0xc0] sm:$0xf]
                %402 = vst [vmem:[%s352 + $0x60] sm:$0xf] %v401
                %v403 = vld [vmem:[%s351 + $0xc4] sm:$0xf]
                %404 = vst [vmem:[%s352 + $0x64] sm:$0xf] %v403
                %v405 = vld [vmem:[%s351 + $0xd0] sm:$0xf]
                %406 = vst [vmem:[%s352 + $0x68] sm:$0xf] %v405
                %v407 = vld [vmem:[%s351 + $0xd4] sm:$0xf]
                %408 = vst [vmem:[%s352 + $0x6c] sm:$0xf] %v407
                %v409 = vld [vmem:[%s351 + $0xe0] sm:$0xf]
                %410 = vst [vmem:[%s352 + $0x70] sm:$0xf] %v409
                %v411 = vld [vmem:[%s351 + $0xe4] sm:$0xf]
                %412 = vst [vmem:[%s352 + $0x74] sm:$0xf] %v411
                %v413 = vld [vmem:[%s351 + $0xf0] sm:$0xf]
                %414 = vst [vmem:[%s352 + $0x78] sm:$0xf] %v413
                %v415 = vld [vmem:[%s351 + $0xf4] sm:$0xf]
                %416 = vst [vmem:[%s352 + $0x7c] sm:$0xf] %v415
                %v417 = vld [vmem:[%s351 + $0x100] sm:$0xf]
                %418 = vst [vmem:[%s352 + $0x80] sm:$0xf] %v417
                %v419 = vld [vmem:[%s351 + $0x104] sm:$0xf]
                %420 = vst [vmem:[%s352 + $0x84] sm:$0xf] %v419
                %v421 = vld [vmem:[%s351 + $0x110] sm:$0xf]
                %422 = vst [vmem:[%s352 + $0x88] sm:$0xf] %v421
                %v423 = vld [vmem:[%s351 + $0x114] sm:$0xf]
                %424 = vst [vmem:[%s352 + $0x8c] sm:$0xf] %v423
                %v425 = vld [vmem:[%s351 + $0x120] sm:$0xf]
                %426 = vst [vmem:[%s352 + $0x90] sm:$0xf] %v425
                %v427 = vld [vmem:[%s351 + $0x124] sm:$0xf]
                %428 = vst [vmem:[%s352 + $0x94] sm:$0xf] %v427
                %v429 = vld [vmem:[%s351 + $0x130] sm:$0xf]
                %430 = vst [vmem:[%s352 + $0x98] sm:$0xf] %v429
                %v431 = vld [vmem:[%s351 + $0x134] sm:$0xf]
                %432 = vst [vmem:[%s352 + $0x9c] sm:$0xf] %v431
                %v433 = vld [vmem:[%s351 + $0x140] sm:$0xf]
                %434 = vst [vmem:[%s352 + $0xa0] sm:$0xf] %v433
                %v435 = vld [vmem:[%s351 + $0x144] sm:$0xf]
                %436 = vst [vmem:[%s352 + $0xa4] sm:$0xf] %v435
                %v437 = vld [vmem:[%s351 + $0x150] sm:$0xf]
                %438 = vst [vmem:[%s352 + $0xa8] sm:$0xf] %v437
                %v439 = vld [vmem:[%s351 + $0x154] sm:$0xf]
                %440 = vst [vmem:[%s352 + $0xac] sm:$0xf] %v439
                %v441 = vld [vmem:[%s351 + $0x160] sm:$0xf]
                %442 = vst [vmem:[%s352 + $0xb0] sm:$0xf] %v441
                %v443 = vld [vmem:[%s351 + $0x164] sm:$0xf]
                %444 = vst [vmem:[%s352 + $0xb4] sm:$0xf] %v443
                %v445 = vld [vmem:[%s351 + $0x170] sm:$0xf]
                %446 = vst [vmem:[%s352 + $0xb8] sm:$0xf] %v445
                %v447 = vld [vmem:[%s351 + $0x174] sm:$0xf]
                %448 = vst [vmem:[%s352 + $0xbc] sm:$0xf] %v447
                %v449 = vld [vmem:[%s351 + $0x180] sm:$0xf]
                %450 = vst [vmem:[%s352 + $0xc0] sm:$0xf] %v449
                %v451 = vld [vmem:[%s351 + $0x184] sm:$0xf]
                %452 = vst [vmem:[%s352 + $0xc4] sm:$0xf] %v451
                %v453 = vld [vmem:[%s351 + $0x190] sm:$0xf]
                %454 = vst [vmem:[%s352 + $0xc8] sm:$0xf] %v453
                %v455 = vld [vmem:[%s351 + $0x194] sm:$0xf]
                %456 = vst [vmem:[%s352 + $0xcc] sm:$0xf] %v455
                %v457 = vld [vmem:[%s351 + $0x1a0] sm:$0xf]
                %458 = vst [vmem:[%s352 + $0xd0] sm:$0xf] %v457
                %v459 = vld [vmem:[%s351 + $0x1a4] sm:$0xf]
                %460 = vst [vmem:[%s352 + $0xd4] sm:$0xf] %v459
                %v461 = vld [vmem:[%s351 + $0x1b0] sm:$0xf]
                %462 = vst [vmem:[%s352 + $0xd8] sm:$0xf] %v461
                %v463 = vld [vmem:[%s351 + $0x1b4] sm:$0xf]
                %464 = vst [vmem:[%s352 + $0xdc] sm:$0xf] %v463
                %v465 = vld [vmem:[%s351 + $0x1c0] sm:$0xf]
                %466 = vst [vmem:[%s352 + $0xe0] sm:$0xf] %v465
                %v467 = vld [vmem:[%s351 + $0x1c4] sm:$0xf]
                %468 = vst [vmem:[%s352 + $0xe4] sm:$0xf] %v467
                %v469 = vld [vmem:[%s351 + $0x1d0] sm:$0xf]
                %470 = vst [vmem:[%s352 + $0xe8] sm:$0xf] %v469
                %v471 = vld [vmem:[%s351 + $0x1d4] sm:$0xf]
                %472 = vst [vmem:[%s352 + $0xec] sm:$0xf] %v471
                %v473 = vld [vmem:[%s351 + $0x1e0] sm:$0xf]
                %474 = vst [vmem:[%s352 + $0xf0] sm:$0xf] %v473
                %v475 = vld [vmem:[%s351 + $0x1e4] sm:$0xf]
                %476 = vst [vmem:[%s352 + $0xf4] sm:$0xf] %v475
                %v477 = vld [vmem:[%s351 + $0x1f0] sm:$0xf]
                %478 = vst [vmem:[%s352 + $0xf8] sm:$0xf] %v477
                %v479 = vld [vmem:[%s351 + $0x1f4] sm:$0xf]
                %480 = vst [vmem:[%s352 + $0xfc] sm:$0xf] %v479
              $region77: #{cnn_forward.1} parent=71 // loop_footer
                %s350 = sadd.s32 1, %s346
              $region78: #{cnn_forward.1} parent=71 // loop_footer_branch
                %345 = sbr.rel target = $region74
              $region79: #{cnn_forward.1} parent=71 // loop_exit
                _
            $region72: #{cnn_forward.1} parent=63 // pred_fallthru
              _
          $region64: #{cnn_forward.1} parent=59 // pred_fallthru
            _
          %628 = vnop
        $region60: #{cnn_forward.1} parent=55 // pred_fallthru
          _
      $region56: #{cnn_forward.1} parent=5 // pred_fallthru
        _
      %p629 = scmp.le.s32.totalorder 1, %s17
      %p630 = scmp.lt.s32.totalorder %s17, 3
      %p631 = pnand %p629, %p630
      %p632 = pneg %p631
      // Predicated region
      $region98: #{cnn_forward.1} parent=5 // pred_check
        _
      $region99: #{cnn_forward.1} parent=5 // pred_check_branch
        %634 = sbr.rel (%p631) target = $region101
      $region100: #{cnn_forward.1} parent=5 // pred_region
        %s635 = ssub.s32 %s17, 1
        %s636 = sand.u32 %s30, 1
        %s637 = sand.u32 %s30, 1
        %s638 = smul.addr %s637, 256
        %s639 = scalar_lea.vmem [#allocation2], %s638
        // Predicated region
        $region102: #{cnn_forward.1} parent=100 // pred_check
          %p640 = pneg %p43
        $region103: #{cnn_forward.1} parent=100 // pred_check_branch
          %642 = sbr.rel (%p640) target = $region105
        $region104: #{cnn_forward.1} parent=100 // pred_region
          _
        $region105: #{cnn_forward.1} parent=100 // pred_fallthru
          _
        %s643 = sand.u32 %s30, 1
        %s644 = sand.u32 %s30, 1
        %s645 = smul.addr %s644, 256
        %s646 = scalar_lea.vmem [#allocation2], %s645
        %p647 = pneg %p43
        %p648 = pneg %p40
        %p649 = pneg %p64
        %p650 = pneg %p61
        %p651 = pneg %p85
        %p652 = pneg %p82
        %p653 = pneg %p106
        %p654 = pneg %p103
        %p655 = pneg %p127
        %p656 = pneg %p124
        %p657 = pneg %p148
        %p658 = pneg %p145
        %p659 = pneg %p169
        %p660 = pneg %p166
        %p661 = pneg %p190
        %p662 = pneg %p187
        %p663 = pneg %p211
        %p664 = pneg %p208
        %p665 = pneg %p232
        %p666 = pneg %p229
        %p667 = pneg %p253
        %p668 = pneg %p250
        %p669 = pneg %p279
        %p670 = pneg %p276
        %s671 = smul.u32 2, %s22
        %p672 = scmp.lt.s32.totalorder %s671, 3
        %s673 = scalar_select %p672, %s671, 3
        %s674 = smul.addr %s673, 8
        %s675 = scalar_lea.vmem %s11, %s674
        %s676 = smul.u32 2, %s22
        %s677 = smul.u32 2, %s22
        %p678 = scmp.lt.s32.totalorder %s677, 3
        %s679 = scalar_select %p678, %s677, 3
        %s680 = smul.addr %s679, 8
        %s681 = scalar_lea.vmem %s11, %s680
        %s682 = smul.u32 2, %s22
        %v684 = vld [vmem:[%s639] sm:$0xf]
        %v685 = vld [vmem:[%s639 + $0x4] sm:$0xf]
        %v686 = vld [vmem:[%s639 + $0x8] sm:$0xf]
        %v687 = vld [vmem:[%s639 + $0xc] sm:$0xf]
        %v688 = vld [vmem:[%s639 + $0x10] sm:$0xf]
        %v689 = vld [vmem:[%s639 + $0x14] sm:$0xf]
        %v690 = vld [vmem:[%s639 + $0x18] sm:$0xf]
        %v691 = vld [vmem:[%s639 + $0x1c] sm:$0xf]
        %v692 = vld [vmem:[%s639 + $0x20] sm:$0xf]
        %v693 = vld [vmem:[%s639 + $0x24] sm:$0xf]
        %v694 = vld [vmem:[%s639 + $0x28] sm:$0xf]
        %v695 = vld [vmem:[%s639 + $0x2c] sm:$0xf]
        %v696 = vld [vmem:[%s639 + $0x30] sm:$0xf]
        %v697 = vld [vmem:[%s639 + $0x34] sm:$0xf]
        %v698 = vld [vmem:[%s639 + $0x38] sm:$0xf]
        %v699 = vld [vmem:[%s639 + $0x3c] sm:$0xf]
        %v700 = vld [vmem:[%s639 + $0x40] sm:$0xf]
        %v701 = vld [vmem:[%s639 + $0x44] sm:$0xf]
        %v702 = vld [vmem:[%s639 + $0x48] sm:$0xf]
        %v703 = vld [vmem:[%s639 + $0x4c] sm:$0xf]
        %v704 = vld [vmem:[%s639 + $0x50] sm:$0xf]
        %v705 = vld [vmem:[%s639 + $0x54] sm:$0xf]
        %v706 = vld [vmem:[%s639 + $0x58] sm:$0xf]
        %v707 = vld [vmem:[%s639 + $0x5c] sm:$0xf]
        %v708 = vld [vmem:[%s639 + $0x60] sm:$0xf]
        %v709 = vld [vmem:[%s639 + $0x64] sm:$0xf]
        %v710 = vld [vmem:[%s639 + $0x68] sm:$0xf]
        %v711 = vld [vmem:[%s639 + $0x6c] sm:$0xf]
        %v712 = vld [vmem:[%s639 + $0x70] sm:$0xf]
        %v713 = vld [vmem:[%s639 + $0x74] sm:$0xf]
        %v714 = vld [vmem:[%s639 + $0x78] sm:$0xf]
        %v715 = vld [vmem:[%s639 + $0x7c] sm:$0xf]
        %v716 = vld [vmem:[%s639 + $0x80] sm:$0xf]
        %v717 = vld [vmem:[%s639 + $0x84] sm:$0xf]
        %v718 = vld [vmem:[%s639 + $0x88] sm:$0xf]
        %v719 = vld [vmem:[%s639 + $0x8c] sm:$0xf]
        %v720 = vld [vmem:[%s639 + $0x90] sm:$0xf]
        %v721 = vld [vmem:[%s639 + $0x94] sm:$0xf]
        %v722 = vld [vmem:[%s639 + $0x98] sm:$0xf]
        %v723 = vld [vmem:[%s639 + $0x9c] sm:$0xf]
        %v724 = vld [vmem:[%s639 + $0xa0] sm:$0xf]
        %v725 = vld [vmem:[%s639 + $0xa4] sm:$0xf]
        %v726 = vld [vmem:[%s639 + $0xa8] sm:$0xf]
        %v727 = vld [vmem:[%s639 + $0xac] sm:$0xf]
        %v728 = vld [vmem:[%s639 + $0xb0] sm:$0xf]
        %v729 = vld [vmem:[%s639 + $0xb4] sm:$0xf]
        %v730 = vld [vmem:[%s639 + $0xb8] sm:$0xf]
        %v731 = vld [vmem:[%s639 + $0xbc] sm:$0xf]
        %v732 = vld [vmem:[%s639 + $0xc0] sm:$0xf]
        %v733 = vld [vmem:[%s639 + $0xc4] sm:$0xf]
        %v734 = vld [vmem:[%s639 + $0xc8] sm:$0xf]
        %v735 = vld [vmem:[%s639 + $0xcc] sm:$0xf]
        %v736 = vld [vmem:[%s639 + $0xd0] sm:$0xf]
        %v737 = vld [vmem:[%s639 + $0xd4] sm:$0xf]
        %v738 = vld [vmem:[%s639 + $0xd8] sm:$0xf]
        %v739 = vld [vmem:[%s639 + $0xdc] sm:$0xf]
        %v740 = vld [vmem:[%s639 + $0xe0] sm:$0xf]
        %v741 = vld [vmem:[%s639 + $0xe4] sm:$0xf]
        %v742 = vld [vmem:[%s639 + $0xe8] sm:$0xf]
        %v743 = vld [vmem:[%s639 + $0xec] sm:$0xf]
        %v744 = vld [vmem:[%s639 + $0xf0] sm:$0xf]
        %v745 = vld [vmem:[%s639 + $0xf4] sm:$0xf]
        %v746 = vld [vmem:[%s639 + $0xf8] sm:$0xf]
        %v747 = vld [vmem:[%s639 + $0xfc] sm:$0xf]
        %v748 = vld [vmem:[%s1] sm:$0xff]
        %v749 = vld [vmem:[%s1 + $0x8] sm:$0xff]
        %v750 = vld [vmem:[%s1 + $0x10] sm:$0xff]
        %v751 = vld [vmem:[%s1 + $0x18] sm:$0xff]
        %v752 = vld [vmem:[%s1 + $0x20] sm:$0xff]
        %v753 = vld [vmem:[%s1 + $0x28] sm:$0xff]
        %v754 = vld [vmem:[%s1 + $0x30] sm:$0xff]
        %v755 = vld [vmem:[%s1 + $0x38] sm:$0xff]
        %v756 = vld [vmem:[%s1 + $0x40] sm:$0xff]
        %v757 = vld [vmem:[%s1 + $0x48] sm:$0xff]
        %v758 = vld [vmem:[%s1 + $0x50] sm:$0xff]
        %v759 = vld [vmem:[%s1 + $0x58] sm:$0xff]
        %v760 = vld [vmem:[%s1 + $0x60] sm:$0xff]
        %v761 = vld [vmem:[%s1 + $0x68] sm:$0xff]
        %v762 = vld [vmem:[%s1 + $0x70] sm:$0xff]
        %v763 = vld [vmem:[%s1 + $0x78] sm:$0xff]
        %s764 = scalar_lea.vmem %s1, 128
        %v765 = vld [vmem:[%s764] sm:$0xff]
        %v766 = vld [vmem:[%s764 + $0x8] sm:$0xff]
        %v767 = vld [vmem:[%s764 + $0x10] sm:$0xff]
        %v768 = vld [vmem:[%s764 + $0x18] sm:$0xff]
        %v769 = vld [vmem:[%s764 + $0x20] sm:$0xff]
        %v770 = vld [vmem:[%s764 + $0x28] sm:$0xff]
        %v771 = vld [vmem:[%s764 + $0x30] sm:$0xff]
        %v772 = vld [vmem:[%s764 + $0x38] sm:$0xff]
        %v773 = vld [vmem:[%s764 + $0x40] sm:$0xff]
        %v774 = vld [vmem:[%s764 + $0x48] sm:$0xff]
        %v775 = vld [vmem:[%s764 + $0x50] sm:$0xff]
        %v776 = vld [vmem:[%s764 + $0x58] sm:$0xff]
        %v777 = vld [vmem:[%s764 + $0x60] sm:$0xff]
        %v778 = vld [vmem:[%s764 + $0x68] sm:$0xff]
        %v779 = vld [vmem:[%s764 + $0x70] sm:$0xff]
        %v780 = vld [vmem:[%s764 + $0x78] sm:$0xff]
        %v837 = vunpack.c.l.b16 %v686
        %v838 = vunpack.c.l.b16 %v687
        %v839 = vunpack.c.l.b16 %v688
        %v840 = vunpack.c.l.b16 %v689
        %v841 = vunpack.c.l.b16 %v690
        %v842 = vunpack.c.l.b16 %v691
        %v843 = vunpack.c.l.b16 %v692
        %v844 = vunpack.c.l.b16 %v693
        %v845 = vunpack.c.l.b16 %v694
        %v846 = vunpack.c.l.b16 %v695
        %v847 = vunpack.c.l.b16 %v696
        %v848 = vunpack.c.l.b16 %v697
        %v849 = vunpack.c.l.b16 %v698
        %v850 = vunpack.c.l.b16 %v699
        %v851 = vunpack.c.l.b16 %v700
        %v852 = vunpack.c.l.b16 %v701
        %v853 = vunpack.c.l.b16 %v702
        %v854 = vunpack.c.l.b16 %v703
        %v855 = vunpack.c.l.b16 %v704
        %v856 = vunpack.c.l.b16 %v705
        %v857 = vunpack.c.l.b16 %v706
        %v858 = vunpack.c.l.b16 %v707
        %v859 = vunpack.c.l.b16 %v708
        %v860 = vunpack.c.l.b16 %v709
        %v861 = vunpack.c.l.b16 %v710
        %v862 = vunpack.c.l.b16 %v711
        %v863 = vunpack.c.l.b16 %v712
        %v864 = vunpack.c.l.b16 %v713
        %v865 = vunpack.c.l.b16 %v714
        %v866 = vunpack.c.l.b16 %v715
        %v867 = vunpack.c.l.b16 %v716
        %v868 = vunpack.c.l.b16 %v717
        %v869 = vunpack.c.l.b16 %v718
        %v870 = vunpack.c.l.b16 %v719
        %v871 = vunpack.c.l.b16 %v720
        %v872 = vunpack.c.l.b16 %v721
        %v873 = vunpack.c.l.b16 %v722
        %v874 = vunpack.c.l.b16 %v723
        %v875 = vunpack.c.l.b16 %v724
        %v876 = vunpack.c.l.b16 %v725
        %v877 = vunpack.c.l.b16 %v726
        %v878 = vunpack.c.l.b16 %v727
        %v879 = vunpack.c.l.b16 %v728
        %v880 = vunpack.c.l.b16 %v729
        %v881 = vunpack.c.l.b16 %v730
        %v882 = vunpack.c.l.b16 %v731
        %v883 = vunpack.c.l.b16 %v732
        %v884 = vunpack.c.l.b16 %v733
        %v885 = vunpack.c.l.b16 %v734
        %v886 = vunpack.c.l.b16 %v735
        %v887 = vunpack.c.l.b16 %v736
        %v888 = vunpack.c.l.b16 %v737
        %v889 = vunpack.c.l.b16 %v738
        %v890 = vunpack.c.l.b16 %v739
        %v891 = vunpack.c.l.b16 %v740
        %v892 = vunpack.c.l.b16 %v741
        %v893 = vpack.c.b16 %v838, %v837
        %v894 = vpack.c.b16 %v840, %v839
        %v895 = vpack.c.b16 %v842, %v841
        %v896 = vpack.c.b16 %v844, %v843
        %v897 = vpack.c.b16 %v846, %v845
        %v898 = vpack.c.b16 %v848, %v847
        %v899 = vpack.c.b16 %v850, %v849
        %v900 = vpack.c.b16 %v852, %v851
        %v901 = vpack.c.b16 %v854, %v853
        %v902 = vpack.c.b16 %v856, %v855
        %v903 = vpack.c.b16 %v858, %v857
        %v904 = vpack.c.b16 %v860, %v859
        %v905 = vpack.c.b16 %v862, %v861
        %v906 = vpack.c.b16 %v864, %v863
        %v907 = vpack.c.b16 %v866, %v865
        %v908 = vpack.c.b16 %v868, %v867
        %v909 = vpack.c.b16 %v870, %v869
        %v910 = vpack.c.b16 %v872, %v871
        %v911 = vpack.c.b16 %v874, %v873
        %v912 = vpack.c.b16 %v876, %v875
        %v913 = vpack.c.b16 %v878, %v877
        %v914 = vpack.c.b16 %v880, %v879
        %v915 = vpack.c.b16 %v882, %v881
        %v916 = vpack.c.b16 %v884, %v883
        %v917 = vpack.c.b16 %v886, %v885
        %v918 = vpack.c.b16 %v888, %v887
        %v919 = vpack.c.b16 %v890, %v889
        %v920 = vpack.c.b16 %v892, %v891
        %v965 = vunpack.c.l.b16 %v765
        %v966 = vunpack.c.h.b16 %v765
        %v967 = vunpack.c.l.b16 %v766
        %v968 = vunpack.c.h.b16 %v766
        %v969 = vunpack.c.l.b16 %v767
        %v970 = vunpack.c.h.b16 %v767
        %v971 = vunpack.c.l.b16 %v768
        %v972 = vunpack.c.h.b16 %v768
        %v973 = vunpack.c.l.b16 %v769
        %v974 = vunpack.c.h.b16 %v769
        %v975 = vunpack.c.l.b16 %v770
        %v976 = vunpack.c.h.b16 %v770
        %v977 = vunpack.c.l.b16 %v771
        %v978 = vunpack.c.h.b16 %v771
        %v979 = vunpack.c.l.b16 %v772
        %v980 = vunpack.c.h.b16 %v772
        %v981 = vunpack.c.l.b16 %v773
        %v982 = vunpack.c.h.b16 %v773
        %v983 = vunpack.c.l.b16 %v774
        %v984 = vunpack.c.h.b16 %v774
        %v985 = vunpack.c.l.b16 %v775
        %v986 = vunpack.c.h.b16 %v775
        %v987 = vunpack.c.l.b16 %v776
        %v988 = vunpack.c.h.b16 %v776
        %v989 = vunpack.c.l.b16 %v777
        %v990 = vunpack.c.h.b16 %v777
        %v991 = vunpack.c.l.b16 %v778
        %v992 = vunpack.c.h.b16 %v778
        %v993 = vunpack.c.l.b16 %v779
        %v994 = vunpack.c.h.b16 %v779
        %v995 = vunpack.c.l.b16 %v780
        %v996 = vunpack.c.h.b16 %v780
        %v997 = vpack.c.b16 %v967, %v965
        %v998 = vpack.c.b16 %v968, %v966
        %v999 = vpack.c.b16 %v971, %v969
        %v1000 = vpack.c.b16 %v972, %v970
        %v1001 = vpack.c.b16 %v975, %v973
        %v1002 = vpack.c.b16 %v976, %v974
        %v1003 = vpack.c.b16 %v979, %v977
        %v1004 = vpack.c.b16 %v980, %v978
        %v1005 = vpack.c.b16 %v983, %v981
        %v1006 = vpack.c.b16 %v984, %v982
        %v1007 = vpack.c.b16 %v987, %v985
        %v1008 = vpack.c.b16 %v988, %v986
        %v1009 = vpack.c.b16 %v991, %v989
        %v1010 = vpack.c.b16 %v992, %v990
        %v1011 = vpack.c.b16 %v995, %v993
        %v1012 = vpack.c.b16 %v996, %v994
        %1029 = vmatprep.subr.bf16.mxu0 %v998
        %1030 = vmatpush1.bf16.msra.mxu0 %v997
        %1031 = vmatprep.subr.bf16.mxu0 %v1000
        %1032 = vmatpush1.bf16.msra.mxu0 %v999
        %1033 = vmatprep.subr.bf16.mxu0 %v1002
        %1034 = vmatpush1.bf16.msra.mxu0 %v1001
        %1035 = vmatprep.subr.bf16.mxu0 %v1004
        %1036 = vmatpush1.bf16.msra.mxu0 %v1003
        %1037 = vmatprep.subr.bf16.mxu0 %v1006
        %1038 = vmatpush1.bf16.msra.mxu0 %v1005
        %1039 = vmatprep.subr.bf16.mxu0 %v1008
        %1040 = vmatpush1.bf16.msra.mxu0 %v1007
        %1041 = vmatprep.subr.bf16.mxu0 %v1010
        %1042 = vmatpush1.bf16.msra.mxu0 %v1009
        %1043 = vmatprep.subr.bf16.mxu0 %v1012
        %1044 = vmatpush1.bf16.msra.mxu0 %v1011
        %1045 = vmatprep.subr.bf16.mxu0 0
        %1046 = vmatpush1.bf16.msra.mxu0 0
        %1047 = vmatprep.subr.bf16.mxu0 0
        %1048 = vmatpush1.bf16.msra.mxu0 0
        %1049 = vmatprep.subr.bf16.mxu0 0
        %1050 = vmatpush1.bf16.msra.mxu0 0
        %1051 = vmatprep.subr.bf16.mxu0 0
        %1052 = vmatpush1.bf16.msra.mxu0 0
        %1053 = vmatprep.subr.bf16.mxu0 0
        %1054 = vmatpush1.bf16.msra.mxu0 0
        %1055 = vmatprep.subr.bf16.mxu0 0
        %1056 = vmatpush1.bf16.msra.mxu0 0
        %1057 = vmatprep.subr.bf16.mxu0 0
        %1058 = vmatpush1.bf16.msra.mxu0 0
        %1059 = vmatprep.subr.bf16.mxu0 0
        %1060 = vmatpush1.bf16.msra.mxu0 0
        %1061 = vmatprep.mubr.bf16.mxu0 0
        %1062 = vmatmul.mubr.bf16.gmra.mrb[0].mxu0 %v893
        %v1063 = vpop.f32.mrb[0].mxu0
        %v1064 = vadd.f32 0.0, %v1063
        %v1065 = vpop.f32.mrb[0].mxu0
        %v1066 = vadd.f32 0.0, %v1065
        %v1067 = vpop.f32.mrb[0].mxu0
        %v1068 = vadd.f32 0.0, %v1067
        %v1069 = vpop.f32.mrb[0].mxu0
        %v1070 = vadd.f32 0.0, %v1069
        %1071 = vmatprep.mubr.bf16.mxu0 0
        %1072 = vmatmul.mubr.bf16.gmra.mrb[0].mxu0 %v894
        %v1073 = vpop.f32.mrb[0].mxu0
        %v1074 = vadd.f32 0.0, %v1073
        %v1075 = vpop.f32.mrb[0].mxu0
        %v1076 = vadd.f32 0.0, %v1075
        %v1077 = vpop.f32.mrb[0].mxu0
        %v1078 = vadd.f32 0.0, %v1077
        %v1079 = vpop.f32.mrb[0].mxu0
        %v1080 = vadd.f32 0.0, %v1079
        %1081 = vmatprep.mubr.bf16.mxu0 0
        %1082 = vmatmul.mubr.bf16.gmra.mrb[0].mxu0 %v895
        %v1083 = vpop.f32.mrb[0].mxu0
        %v1084 = vadd.f32 0.0, %v1083
        %v1085 = vpop.f32.mrb[0].mxu0
        %v1086 = vadd.f32 0.0, %v1085
        %v1087 = vpop.f32.mrb[0].mxu0
        %v1088 = vadd.f32 0.0, %v1087
        %v1089 = vpop.f32.mrb[0].mxu0
        %v1090 = vadd.f32 0.0, %v1089
        %1091 = vmatprep.mubr.bf16.mxu0 0
        %1092 = vmatmul.mubr.bf16.gmra.mrb[0].mxu0 %v896
        %v1093 = vpop.f32.mrb[0].mxu0
        %v1094 = vadd.f32 0.0, %v1093
        %v1095 = vpop.f32.mrb[0].mxu0
        %v1096 = vadd.f32 0.0, %v1095
        %v1097 = vpop.f32.mrb[0].mxu0
        %v1098 = vadd.f32 0.0, %v1097
        %v1099 = vpop.f32.mrb[0].mxu0
        %v1100 = vadd.f32 0.0, %v1099
        %1101 = vmatprep.mubr.bf16.mxu0 0
        %1102 = vmatmul.mubr.bf16.gmra.mrb[0].mxu0 %v897
        %v1103 = vpop.f32.mrb[0].mxu0
        %v1104 = vadd.f32 0.0, %v1103
        %v1105 = vpop.f32.mrb[0].mxu0
        %v1106 = vadd.f32 0.0, %v1105
        %v1107 = vpop.f32.mrb[0].mxu0
        %v1108 = vadd.f32 0.0, %v1107
        %v1109 = vpop.f32.mrb[0].mxu0
        %v1110 = vadd.f32 0.0, %v1109
        %1111 = vmatprep.mubr.bf16.mxu0 0
        %1112 = vmatmul.mubr.bf16.gmra.mrb[0].mxu0 %v898
        %v1113 = vpop.f32.mrb[0].mxu0
        %v1114 = vadd.f32 0.0, %v1113
        %v1115 = vpop.f32.mrb[0].mxu0
        %v1116 = vadd.f32 0.0, %v1115
        %v1117 = vpop.f32.mrb[0].mxu0
        %v1118 = vadd.f32 0.0, %v1117
        %v1119 = vpop.f32.mrb[0].mxu0
        %v1120 = vadd.f32 0.0, %v1119
        %1121 = vmatprep.mubr.bf16.mxu0 0
        %1122 = vmatmul.mubr.bf16.gmra.mrb[0].mxu0 %v899
        %v1123 = vpop.f32.mrb[0].mxu0
        %v1124 = vadd.f32 0.0, %v1123
        %v1125 = vpop.f32.mrb[0].mxu0
        %v1126 = vadd.f32 0.0, %v1125
        %v1127 = vpop.f32.mrb[0].mxu0
        %v1128 = vadd.f32 0.0, %v1127
        %v1129 = vpop.f32.mrb[0].mxu0
        %v1130 = vadd.f32 0.0, %v1129
        %1131 = vmatprep.mubr.bf16.mxu0 0
        %1132 = vmatmul.mubr.bf16.gmra.mrb[0].mxu0 %v900
        %v1133 = vpop.f32.mrb[0].mxu0
        %v1134 = vadd.f32 0.0, %v1133
        %v1135 = vpop.f32.mrb[0].mxu0
        %v1136 = vadd.f32 0.0, %v1135
        %v1137 = vpop.f32.mrb[0].mxu0
        %v1138 = vadd.f32 0.0, %v1137
        %v1139 = vpop.f32.mrb[0].mxu0
        %v1140 = vadd.f32 0.0, %v1139
        %1141 = vmatprep.mubr.bf16.mxu0 0
        %1142 = vmatmul.mubr.bf16.gmra.mrb[0].mxu0 %v901
        %v1143 = vpop.f32.mrb[0].mxu0
        %v1144 = vadd.f32 0.0, %v1143
        %v1145 = vpop.f32.mrb[0].mxu0
        %v1146 = vadd.f32 0.0, %v1145
        %v1147 = vpop.f32.mrb[0].mxu0
        %v1148 = vadd.f32 0.0, %v1147
        %v1149 = vpop.f32.mrb[0].mxu0
        %v1150 = vadd.f32 0.0, %v1149
        %1151 = vmatprep.mubr.bf16.mxu0 0
        %1152 = vmatmul.mubr.bf16.gmra.mrb[0].mxu0 %v902
        %v1153 = vpop.f32.mrb[0].mxu0
        %v1154 = vadd.f32 0.0, %v1153
        %v1155 = vpop.f32.mrb[0].mxu0
        %v1156 = vadd.f32 0.0, %v1155
        %v1157 = vpop.f32.mrb[0].mxu0
        %v1158 = vadd.f32 0.0, %v1157
        %v1159 = vpop.f32.mrb[0].mxu0
        %v1160 = vadd.f32 0.0, %v1159
        %1161 = vmatprep.mubr.bf16.mxu0 0
        %1162 = vmatmul.mubr.bf16.gmra.mrb[0].mxu0 %v903
        %v1163 = vpop.f32.mrb[0].mxu0
        %v1164 = vadd.f32 0.0, %v1163
        %v1165 = vpop.f32.mrb[0].mxu0
        %v1166 = vadd.f32 0.0, %v1165
        %v1167 = vpop.f32.mrb[0].mxu0
        %v1168 = vadd.f32 0.0, %v1167
        %v1169 = vpop.f32.mrb[0].mxu0
        %v1170 = vadd.f32 0.0, %v1169
        %1171 = vmatprep.mubr.bf16.mxu0 0
        %1172 = vmatmul.mubr.bf16.gmra.mrb[0].mxu0 %v904
        %v1173 = vpop.f32.mrb[0].mxu0
        %v1174 = vadd.f32 0.0, %v1173
        %v1175 = vpop.f32.mrb[0].mxu0
        %v1176 = vadd.f32 0.0, %v1175
        %v1177 = vpop.f32.mrb[0].mxu0
        %v1178 = vadd.f32 0.0, %v1177
        %v1179 = vpop.f32.mrb[0].mxu0
        %v1180 = vadd.f32 0.0, %v1179
        %1181 = vmatprep.mubr.bf16.mxu0 0
        %1182 = vmatmul.mubr.bf16.gmra.mrb[0].mxu0 %v905
        %v1183 = vpop.f32.mrb[0].mxu0
        %v1184 = vadd.f32 0.0, %v1183
        %v1185 = vpop.f32.mrb[0].mxu0
        %v1186 = vadd.f32 0.0, %v1185
        %v1187 = vpop.f32.mrb[0].mxu0
        %v1188 = vadd.f32 0.0, %v1187
        %v1189 = vpop.f32.mrb[0].mxu0
        %v1190 = vadd.f32 0.0, %v1189
        %1191 = vmatprep.mubr.bf16.mxu0 0
        %1192 = vmatmul.mubr.bf16.gmra.mrb[0].mxu0 %v906
        %v1193 = vpop.f32.mrb[0].mxu0
        %v1194 = vadd.f32 0.0, %v1193
        %v1195 = vpop.f32.mrb[0].mxu0
        %v1196 = vadd.f32 0.0, %v1195
        %v1197 = vpop.f32.mrb[0].mxu0
        %v1198 = vadd.f32 0.0, %v1197
        %v1199 = vpop.f32.mrb[0].mxu0
        %v1200 = vadd.f32 0.0, %v1199
        %1201 = vmatprep.mubr.bf16.mxu0 0
        %1202 = vmatmul.mubr.bf16.gmra.mrb[0].mxu0 %v907
        %v1203 = vpop.f32.mrb[0].mxu0
        %v1204 = vadd.f32 0.0, %v1203
        %v1205 = vpop.f32.mrb[0].mxu0
        %v1206 = vadd.f32 0.0, %v1205
        %v1207 = vpop.f32.mrb[0].mxu0
        %v1208 = vadd.f32 0.0, %v1207
        %v1209 = vpop.f32.mrb[0].mxu0
        %v1210 = vadd.f32 0.0, %v1209
        %1211 = vmatprep.mubr.bf16.mxu0 0
        %1212 = vmatmul.mubr.bf16.gmra.mrb[0].mxu0 %v908
        %v1213 = vpop.f32.mrb[0].mxu0
        %v1214 = vadd.f32 0.0, %v1213
        %v1215 = vpop.f32.mrb[0].mxu0
        %v1216 = vadd.f32 0.0, %v1215
        %v1217 = vpop.f32.mrb[0].mxu0
        %v1218 = vadd.f32 0.0, %v1217
        %v1219 = vpop.f32.mrb[0].mxu0
        %v1220 = vadd.f32 0.0, %v1219
        %1221 = vmatprep.mubr.bf16.mxu0 0
        %1222 = vmatmul.mubr.bf16.gmra.mrb[0].mxu0 %v909
        %v1223 = vpop.f32.mrb[0].mxu0
        %v1224 = vadd.f32 0.0, %v1223
        %v1225 = vpop.f32.mrb[0].mxu0
        %v1226 = vadd.f32 0.0, %v1225
        %v1227 = vpop.f32.mrb[0].mxu0
        %v1228 = vadd.f32 0.0, %v1227
        %v1229 = vpop.f32.mrb[0].mxu0
        %v1230 = vadd.f32 0.0, %v1229
        %1231 = vmatprep.mubr.bf16.mxu0 0
        %1232 = vmatmul.mubr.bf16.gmra.mrb[0].mxu0 %v910
        %v1233 = vpop.f32.mrb[0].mxu0
        %v1234 = vadd.f32 0.0, %v1233
        %v1235 = vpop.f32.mrb[0].mxu0
        %v1236 = vadd.f32 0.0, %v1235
        %v1237 = vpop.f32.mrb[0].mxu0
        %v1238 = vadd.f32 0.0, %v1237
        %v1239 = vpop.f32.mrb[0].mxu0
        %v1240 = vadd.f32 0.0, %v1239
        %1241 = vmatprep.mubr.bf16.mxu0 0
        %1242 = vmatmul.mubr.bf16.gmra.mrb[0].mxu0 %v911
        %v1243 = vpop.f32.mrb[0].mxu0
        %v1244 = vadd.f32 0.0, %v1243
        %v1245 = vpop.f32.mrb[0].mxu0
        %v1246 = vadd.f32 0.0, %v1245
        %v1247 = vpop.f32.mrb[0].mxu0
        %v1248 = vadd.f32 0.0, %v1247
        %v1249 = vpop.f32.mrb[0].mxu0
        %v1250 = vadd.f32 0.0, %v1249
        %1251 = vmatprep.mubr.bf16.mxu0 0
        %1252 = vmatmul.mubr.bf16.gmra.mrb[0].mxu0 %v912
        %v1253 = vpop.f32.mrb[0].mxu0
        %v1254 = vadd.f32 0.0, %v1253
        %v1255 = vpop.f32.mrb[0].mxu0
        %v1256 = vadd.f32 0.0, %v1255
        %v1257 = vpop.f32.mrb[0].mxu0
        %v1258 = vadd.f32 0.0, %v1257
        %v1259 = vpop.f32.mrb[0].mxu0
        %v1260 = vadd.f32 0.0, %v1259
        %1261 = vmatprep.mubr.bf16.mxu0 0
        %1262 = vmatmul.mubr.bf16.gmra.mrb[0].mxu0 %v913
        %v1263 = vpop.f32.mrb[0].mxu0
        %v1264 = vadd.f32 0.0, %v1263
        %v1265 = vpop.f32.mrb[0].mxu0
        %v1266 = vadd.f32 0.0, %v1265
        %v1267 = vpop.f32.mrb[0].mxu0
        %v1268 = vadd.f32 0.0, %v1267
        %v1269 = vpop.f32.mrb[0].mxu0
        %v1270 = vadd.f32 0.0, %v1269
        %1271 = vmatprep.mubr.bf16.mxu0 0
        %1272 = vmatmul.mubr.bf16.gmra.mrb[0].mxu0 %v914
        %v1273 = vpop.f32.mrb[0].mxu0
        %v1274 = vadd.f32 0.0, %v1273
        %v1275 = vpop.f32.mrb[0].mxu0
        %v1276 = vadd.f32 0.0, %v1275
        %v1277 = vpop.f32.mrb[0].mxu0
        %v1278 = vadd.f32 0.0, %v1277
        %v1279 = vpop.f32.mrb[0].mxu0
        %v1280 = vadd.f32 0.0, %v1279
        %1281 = vmatprep.mubr.bf16.mxu0 0
        %1282 = vmatmul.mubr.bf16.gmra.mrb[0].mxu0 %v915
        %v1283 = vpop.f32.mrb[0].mxu0
        %v1284 = vadd.f32 0.0, %v1283
        %v1285 = vpop.f32.mrb[0].mxu0
        %v1286 = vadd.f32 0.0, %v1285
        %v1287 = vpop.f32.mrb[0].mxu0
        %v1288 = vadd.f32 0.0, %v1287
        %v1289 = vpop.f32.mrb[0].mxu0
        %v1290 = vadd.f32 0.0, %v1289
        %1291 = vmatprep.mubr.bf16.mxu0 0
        %1292 = vmatmul.mubr.bf16.gmra.mrb[0].mxu0 %v916
        %v1293 = vpop.f32.mrb[0].mxu0
        %v1294 = vadd.f32 0.0, %v1293
        %v1295 = vpop.f32.mrb[0].mxu0
        %v1296 = vadd.f32 0.0, %v1295
        %v1297 = vpop.f32.mrb[0].mxu0
        %v1298 = vadd.f32 0.0, %v1297
        %v1299 = vpop.f32.mrb[0].mxu0
        %v1300 = vadd.f32 0.0, %v1299
        %1301 = vmatprep.mubr.bf16.mxu0 0
        %1302 = vmatmul.mubr.bf16.gmra.mrb[0].mxu0 %v917
        %v1303 = vpop.f32.mrb[0].mxu0
        %v1304 = vadd.f32 0.0, %v1303
        %v1305 = vpop.f32.mrb[0].mxu0
        %v1306 = vadd.f32 0.0, %v1305
        %v1307 = vpop.f32.mrb[0].mxu0
        %v1308 = vadd.f32 0.0, %v1307
        %v1309 = vpop.f32.mrb[0].mxu0
        %v1310 = vadd.f32 0.0, %v1309
        %1311 = vmatprep.mubr.bf16.mxu0 0
        %1312 = vmatmul.mubr.bf16.gmra.mrb[0].mxu0 %v918
        %v1313 = vpop.f32.mrb[0].mxu0
        %v1314 = vadd.f32 0.0, %v1313
        %v1315 = vpop.f32.mrb[0].mxu0
        %v1316 = vadd.f32 0.0, %v1315
        %v1317 = vpop.f32.mrb[0].mxu0
        %v1318 = vadd.f32 0.0, %v1317
        %v1319 = vpop.f32.mrb[0].mxu0
        %v1320 = vadd.f32 0.0, %v1319
        %1321 = vmatprep.mubr.bf16.mxu0 0
        %1322 = vmatmul.mubr.bf16.gmra.mrb[0].mxu0 %v919
        %v1323 = vpop.f32.mrb[0].mxu0
        %v1324 = vadd.f32 0.0, %v1323
        %v1325 = vpop.f32.mrb[0].mxu0
        %v1326 = vadd.f32 0.0, %v1325
        %v1327 = vpop.f32.mrb[0].mxu0
        %v1328 = vadd.f32 0.0, %v1327
        %v1329 = vpop.f32.mrb[0].mxu0
        %v1330 = vadd.f32 0.0, %v1329
        %1331 = vmatprep.mubr.bf16.mxu0 0
        %1332 = vmatmul.mubr.bf16.gmra.mrb[0].mxu0 %v920
        %v1333 = vpop.f32.mrb[0].mxu0
        %v1334 = vadd.f32 0.0, %v1333
        %v1335 = vpop.f32.mrb[0].mxu0
        %v1336 = vadd.f32 0.0, %v1335
        %v1337 = vpop.f32.mrb[0].mxu0
        %v1338 = vadd.f32 0.0, %v1337
        %v1339 = vpop.f32.mrb[0].mxu0
        %v1340 = vadd.f32 0.0, %v1339
        %1341 = vdwg.mxu0
        %v1344 = vunpack.c.l.b16 %v684
        %v1345 = vunpack.c.l.b16 %v685
        %v1346 = vpack.c.b16 %v1345, %v1344
        %v1364 = vunpack.c.l.b16 %v748
        %v1365 = vunpack.c.h.b16 %v748
        %v1366 = vunpack.c.l.b16 %v749
        %v1367 = vunpack.c.h.b16 %v749
        %v1368 = vunpack.c.l.b16 %v750
        %v1369 = vunpack.c.h.b16 %v750
        %v1370 = vunpack.c.l.b16 %v751
        %v1371 = vunpack.c.h.b16 %v751
        %v1372 = vunpack.c.l.b16 %v752
        %v1373 = vunpack.c.h.b16 %v752
        %v1374 = vunpack.c.l.b16 %v753
        %v1375 = vunpack.c.h.b16 %v753
        %v1376 = vunpack.c.l.b16 %v754
        %v1377 = vunpack.c.h.b16 %v754
        %v1378 = vunpack.c.l.b16 %v755
        %v1379 = vunpack.c.h.b16 %v755
        %v1380 = vunpack.c.l.b16 %v756
        %v1381 = vunpack.c.h.b16 %v756
        %v1382 = vunpack.c.l.b16 %v757
        %v1383 = vunpack.c.h.b16 %v757
        %v1384 = vunpack.c.l.b16 %v758
        %v1385 = vunpack.c.h.b16 %v758
        %v1386 = vunpack.c.l.b16 %v759
        %v1387 = vunpack.c.h.b16 %v759
        %v1388 = vunpack.c.l.b16 %v760
        %v1389 = vunpack.c.h.b16 %v760
        %v1390 = vunpack.c.l.b16 %v761
        %v1391 = vunpack.c.h.b16 %v761
        %v1392 = vunpack.c.l.b16 %v762
        %v1393 = vunpack.c.h.b16 %v762
        %v1394 = vunpack.c.l.b16 %v763
        %v1395 = vunpack.c.h.b16 %v763
        %v1396 = vpack.c.b16 %v1366, %v1364
        %v1397 = vpack.c.b16 %v1367, %v1365
        %v1398 = vpack.c.b16 %v1370, %v1368
        %v1399 = vpack.c.b16 %v1371, %v1369
        %v1400 = vpack.c.b16 %v1374, %v1372
        %v1401 = vpack.c.b16 %v1375, %v1373
        %v1402 = vpack.c.b16 %v1378, %v1376
        %v1403 = vpack.c.b16 %v1379, %v1377
        %v1404 = vpack.c.b16 %v1382, %v1380
        %v1405 = vpack.c.b16 %v1383, %v1381
        %v1406 = vpack.c.b16 %v1386, %v1384
        %v1407 = vpack.c.b16 %v1387, %v1385
        %v1408 = vpack.c.b16 %v1390, %v1388
        %v1409 = vpack.c.b16 %v1391, %v1389
        %v1410 = vpack.c.b16 %v1394, %v1392
        %v1411 = vpack.c.b16 %v1395, %v1393
        %1428 = vmatprep.subr.bf16.mxu0 %v1397
        %1429 = vmatpush1.bf16.msra.mxu0 %v1396
        %1430 = vmatprep.subr.bf16.mxu0 %v1399
        %1431 = vmatpush1.bf16.msra.mxu0 %v1398
        %1432 = vmatprep.subr.bf16.mxu0 %v1401
        %1433 = vmatpush1.bf16.msra.mxu0 %v1400
        %1434 = vmatprep.subr.bf16.mxu0 %v1403
        %1435 = vmatpush1.bf16.msra.mxu0 %v1402
        %1436 = vmatprep.subr.bf16.mxu0 %v1405
        %1437 = vmatpush1.bf16.msra.mxu0 %v1404
        %1438 = vmatprep.subr.bf16.mxu0 %v1407
        %1439 = vmatpush1.bf16.msra.mxu0 %v1406
        %1440 = vmatprep.subr.bf16.mxu0 %v1409
        %1441 = vmatpush1.bf16.msra.mxu0 %v1408
        %1442 = vmatprep.subr.bf16.mxu0 %v1411
        %1443 = vmatpush1.bf16.msra.mxu0 %v1410
        %1444 = vmatprep.subr.bf16.mxu0 0
        %1445 = vmatpush1.bf16.msra.mxu0 0
        %1446 = vmatprep.subr.bf16.mxu0 0
        %1447 = vmatpush1.bf16.msra.mxu0 0
        %1448 = vmatprep.subr.bf16.mxu0 0
        %1449 = vmatpush1.bf16.msra.mxu0 0
        %1450 = vmatprep.subr.bf16.mxu0 0
        %1451 = vmatpush1.bf16.msra.mxu0 0
        %1452 = vmatprep.subr.bf16.mxu0 0
        %1453 = vmatpush1.bf16.msra.mxu0 0
        %1454 = vmatprep.subr.bf16.mxu0 0
        %1455 = vmatpush1.bf16.msra.mxu0 0
        %1456 = vmatprep.subr.bf16.mxu0 0
        %1457 = vmatpush1.bf16.msra.mxu0 0
        %1458 = vmatprep.subr.bf16.mxu0 0
        %1459 = vmatpush1.bf16.msra.mxu0 0
        %1460 = vmatprep.mubr.bf16.mxu0 0
        %1461 = vmatmul.mubr.bf16.gmra.mrb[0].mxu0 %v1346
        %v1462 = vpop.f32.mrb[0].mxu0
        %v1463 = vadd.f32 %v1064, %v1462
        %v1464 = vpop.f32.mrb[0].mxu0
        %v1465 = vadd.f32 %v1066, %v1464
        %v1466 = vpop.f32.mrb[0].mxu0
        %v1467 = vadd.f32 %v1068, %v1466
        %v1468 = vpop.f32.mrb[0].mxu0
        %v1469 = vadd.f32 %v1070, %v1468
        %1470 = vmatprep.mubr.bf16.mxu0 0
        %1471 = vmatmul.mubr.bf16.gmra.mrb[0].mxu0 %v893
        %v1472 = vpop.f32.mrb[0].mxu0
        %v1473 = vadd.f32 %v1074, %v1472
        %v1474 = vpop.f32.mrb[0].mxu0
        %v1475 = vadd.f32 %v1076, %v1474
        %v1476 = vpop.f32.mrb[0].mxu0
        %v1477 = vadd.f32 %v1078, %v1476
        %v1478 = vpop.f32.mrb[0].mxu0
        %v1479 = vadd.f32 %v1080, %v1478
        %1480 = vmatprep.mubr.bf16.mxu0 0
        %1481 = vmatmul.mubr.bf16.gmra.mrb[0].mxu0 %v894
        %v1482 = vpop.f32.mrb[0].mxu0
        %v1483 = vadd.f32 %v1084, %v1482
        %v1484 = vpop.f32.mrb[0].mxu0
        %v1485 = vadd.f32 %v1086, %v1484
        %v1486 = vpop.f32.mrb[0].mxu0
        %v1487 = vadd.f32 %v1088, %v1486
        %v1488 = vpop.f32.mrb[0].mxu0
        %v1489 = vadd.f32 %v1090, %v1488
        %1490 = vmatprep.mubr.bf16.mxu0 0
        %1491 = vmatmul.mubr.bf16.gmra.mrb[0].mxu0 %v895
        %v1492 = vpop.f32.mrb[0].mxu0
        %v1493 = vadd.f32 %v1094, %v1492
        %v1494 = vpop.f32.mrb[0].mxu0
        %v1495 = vadd.f32 %v1096, %v1494
        %v1496 = vpop.f32.mrb[0].mxu0
        %v1497 = vadd.f32 %v1098, %v1496
        %v1498 = vpop.f32.mrb[0].mxu0
        %v1499 = vadd.f32 %v1100, %v1498
        %1500 = vmatprep.mubr.bf16.mxu0 0
        %1501 = vmatmul.mubr.bf16.gmra.mrb[0].mxu0 %v896
        %v1502 = vpop.f32.mrb[0].mxu0
        %v1503 = vadd.f32 %v1104, %v1502
        %v1504 = vpop.f32.mrb[0].mxu0
        %v1505 = vadd.f32 %v1106, %v1504
        %v1506 = vpop.f32.mrb[0].mxu0
        %v1507 = vadd.f32 %v1108, %v1506
        %v1508 = vpop.f32.mrb[0].mxu0
        %v1509 = vadd.f32 %v1110, %v1508
        %1510 = vmatprep.mubr.bf16.mxu0 0
        %1511 = vmatmul.mubr.bf16.gmra.mrb[0].mxu0 %v897
        %v1512 = vpop.f32.mrb[0].mxu0
        %v1513 = vadd.f32 %v1114, %v1512
        %v1514 = vpop.f32.mrb[0].mxu0
        %v1515 = vadd.f32 %v1116, %v1514
        %v1516 = vpop.f32.mrb[0].mxu0
        %v1517 = vadd.f32 %v1118, %v1516
        %v1518 = vpop.f32.mrb[0].mxu0
        %v1519 = vadd.f32 %v1120, %v1518
        %1520 = vmatprep.mubr.bf16.mxu0 0
        %1521 = vmatmul.mubr.bf16.gmra.mrb[0].mxu0 %v898
        %v1522 = vpop.f32.mrb[0].mxu0
        %v1523 = vadd.f32 %v1124, %v1522
        %v1524 = vpop.f32.mrb[0].mxu0
        %v1525 = vadd.f32 %v1126, %v1524
        %v1526 = vpop.f32.mrb[0].mxu0
        %v1527 = vadd.f32 %v1128, %v1526
        %v1528 = vpop.f32.mrb[0].mxu0
        %v1529 = vadd.f32 %v1130, %v1528
        %1530 = vmatprep.mubr.bf16.mxu0 0
        %1531 = vmatmul.mubr.bf16.gmra.mrb[0].mxu0 %v899
        %v1532 = vpop.f32.mrb[0].mxu0
        %v1533 = vadd.f32 %v1134, %v1532
        %v1534 = vpop.f32.mrb[0].mxu0
        %v1535 = vadd.f32 %v1136, %v1534
        %v1536 = vpop.f32.mrb[0].mxu0
        %v1537 = vadd.f32 %v1138, %v1536
        %v1538 = vpop.f32.mrb[0].mxu0
        %v1539 = vadd.f32 %v1140, %v1538
        %1540 = vmatprep.mubr.bf16.mxu0 0
        %1541 = vmatmul.mubr.bf16.gmra.mrb[0].mxu0 %v900
        %v1542 = vpop.f32.mrb[0].mxu0
        %v1543 = vadd.f32 %v1144, %v1542
        %v1544 = vpop.f32.mrb[0].mxu0
        %v1545 = vadd.f32 %v1146, %v1544
        %v1546 = vpop.f32.mrb[0].mxu0
        %v1547 = vadd.f32 %v1148, %v1546
        %v1548 = vpop.f32.mrb[0].mxu0
        %v1549 = vadd.f32 %v1150, %v1548
        %1550 = vmatprep.mubr.bf16.mxu0 0
        %1551 = vmatmul.mubr.bf16.gmra.mrb[0].mxu0 %v901
        %v1552 = vpop.f32.mrb[0].mxu0
        %v1553 = vadd.f32 %v1154, %v1552
        %v1554 = vpop.f32.mrb[0].mxu0
        %v1555 = vadd.f32 %v1156, %v1554
        %v1556 = vpop.f32.mrb[0].mxu0
        %v1557 = vadd.f32 %v1158, %v1556
        %v1558 = vpop.f32.mrb[0].mxu0
        %v1559 = vadd.f32 %v1160, %v1558
        %1560 = vmatprep.mubr.bf16.mxu0 0
        %1561 = vmatmul.mubr.bf16.gmra.mrb[0].mxu0 %v902
        %v1562 = vpop.f32.mrb[0].mxu0
        %v1563 = vadd.f32 %v1164, %v1562
        %v1564 = vpop.f32.mrb[0].mxu0
        %v1565 = vadd.f32 %v1166, %v1564
        %v1566 = vpop.f32.mrb[0].mxu0
        %v1567 = vadd.f32 %v1168, %v1566
        %v1568 = vpop.f32.mrb[0].mxu0
        %v1569 = vadd.f32 %v1170, %v1568
        %1570 = vmatprep.mubr.bf16.mxu0 0
        %1571 = vmatmul.mubr.bf16.gmra.mrb[0].mxu0 %v903
        %v1572 = vpop.f32.mrb[0].mxu0
        %v1573 = vadd.f32 %v1174, %v1572
        %v1574 = vpop.f32.mrb[0].mxu0
        %v1575 = vadd.f32 %v1176, %v1574
        %v1576 = vpop.f32.mrb[0].mxu0
        %v1577 = vadd.f32 %v1178, %v1576
        %v1578 = vpop.f32.mrb[0].mxu0
        %v1579 = vadd.f32 %v1180, %v1578
        %1580 = vmatprep.mubr.bf16.mxu0 0
        %1581 = vmatmul.mubr.bf16.gmra.mrb[0].mxu0 %v904
        %v1582 = vpop.f32.mrb[0].mxu0
        %v1583 = vadd.f32 %v1184, %v1582
        %v1584 = vpop.f32.mrb[0].mxu0
        %v1585 = vadd.f32 %v1186, %v1584
        %v1586 = vpop.f32.mrb[0].mxu0
        %v1587 = vadd.f32 %v1188, %v1586
        %v1588 = vpop.f32.mrb[0].mxu0
        %v1589 = vadd.f32 %v1190, %v1588
        %1590 = vmatprep.mubr.bf16.mxu0 0
        %1591 = vmatmul.mubr.bf16.gmra.mrb[0].mxu0 %v905
        %v1592 = vpop.f32.mrb[0].mxu0
        %v1593 = vadd.f32 %v1194, %v1592
        %v1594 = vpop.f32.mrb[0].mxu0
        %v1595 = vadd.f32 %v1196, %v1594
        %v1596 = vpop.f32.mrb[0].mxu0
        %v1597 = vadd.f32 %v1198, %v1596
        %v1598 = vpop.f32.mrb[0].mxu0
        %v1599 = vadd.f32 %v1200, %v1598
        %1600 = vmatprep.mubr.bf16.mxu0 0
        %1601 = vmatmul.mubr.bf16.gmra.mrb[0].mxu0 %v906
        %v1602 = vpop.f32.mrb[0].mxu0
        %v1603 = vadd.f32 %v1204, %v1602
        %v1604 = vpop.f32.mrb[0].mxu0
        %v1605 = vadd.f32 %v1206, %v1604
        %v1606 = vpop.f32.mrb[0].mxu0
        %v1607 = vadd.f32 %v1208, %v1606
        %v1608 = vpop.f32.mrb[0].mxu0
        %v1609 = vadd.f32 %v1210, %v1608
        %1610 = vmatprep.mubr.bf16.mxu0 0
        %1611 = vmatmul.mubr.bf16.gmra.mrb[0].mxu0 %v907
        %v1612 = vpop.f32.mrb[0].mxu0
        %v1613 = vadd.f32 %v1214, %v1612
        %v1614 = vpop.f32.mrb[0].mxu0
        %v1615 = vadd.f32 %v1216, %v1614
        %v1616 = vpop.f32.mrb[0].mxu0
        %v1617 = vadd.f32 %v1218, %v1616
        %v1618 = vpop.f32.mrb[0].mxu0
        %v1619 = vadd.f32 %v1220, %v1618
        %1620 = vmatprep.mubr.bf16.mxu0 0
        %1621 = vmatmul.mubr.bf16.gmra.mrb[0].mxu0 %v908
        %v1622 = vpop.f32.mrb[0].mxu0
        %v1623 = vadd.f32 %v1224, %v1622
        %v1624 = vpop.f32.mrb[0].mxu0
        %v1625 = vadd.f32 %v1226, %v1624
        %v1626 = vpop.f32.mrb[0].mxu0
        %v1627 = vadd.f32 %v1228, %v1626
        %v1628 = vpop.f32.mrb[0].mxu0
        %v1629 = vadd.f32 %v1230, %v1628
        %1630 = vmatprep.mubr.bf16.mxu0 0
        %1631 = vmatmul.mubr.bf16.gmra.mrb[0].mxu0 %v909
        %v1632 = vpop.f32.mrb[0].mxu0
        %v1633 = vadd.f32 %v1234, %v1632
        %v1634 = vpop.f32.mrb[0].mxu0
        %v1635 = vadd.f32 %v1236, %v1634
        %v1636 = vpop.f32.mrb[0].mxu0
        %v1637 = vadd.f32 %v1238, %v1636
        %v1638 = vpop.f32.mrb[0].mxu0
        %v1639 = vadd.f32 %v1240, %v1638
        %1640 = vmatprep.mubr.bf16.mxu0 0
        %1641 = vmatmul.mubr.bf16.gmra.mrb[0].mxu0 %v910
        %v1642 = vpop.f32.mrb[0].mxu0
        %v1643 = vadd.f32 %v1244, %v1642
        %v1644 = vpop.f32.mrb[0].mxu0
        %v1645 = vadd.f32 %v1246, %v1644
        %v1646 = vpop.f32.mrb[0].mxu0
        %v1647 = vadd.f32 %v1248, %v1646
        %v1648 = vpop.f32.mrb[0].mxu0
        %v1649 = vadd.f32 %v1250, %v1648
        %1650 = vmatprep.mubr.bf16.mxu0 0
        %1651 = vmatmul.mubr.bf16.gmra.mrb[0].mxu0 %v911
        %v1652 = vpop.f32.mrb[0].mxu0
        %v1653 = vadd.f32 %v1254, %v1652
        %v1654 = vpop.f32.mrb[0].mxu0
        %v1655 = vadd.f32 %v1256, %v1654
        %v1656 = vpop.f32.mrb[0].mxu0
        %v1657 = vadd.f32 %v1258, %v1656
        %v1658 = vpop.f32.mrb[0].mxu0
        %v1659 = vadd.f32 %v1260, %v1658
        %1660 = vmatprep.mubr.bf16.mxu0 0
        %1661 = vmatmul.mubr.bf16.gmra.mrb[0].mxu0 %v912
        %v1662 = vpop.f32.mrb[0].mxu0
        %v1663 = vadd.f32 %v1264, %v1662
        %v1664 = vpop.f32.mrb[0].mxu0
        %v1665 = vadd.f32 %v1266, %v1664
        %v1666 = vpop.f32.mrb[0].mxu0
        %v1667 = vadd.f32 %v1268, %v1666
        %v1668 = vpop.f32.mrb[0].mxu0
        %v1669 = vadd.f32 %v1270, %v1668
        %1670 = vmatprep.mubr.bf16.mxu0 0
        %1671 = vmatmul.mubr.bf16.gmra.mrb[0].mxu0 %v913
        %v1672 = vpop.f32.mrb[0].mxu0
        %v1673 = vadd.f32 %v1274, %v1672
        %v1674 = vpop.f32.mrb[0].mxu0
        %v1675 = vadd.f32 %v1276, %v1674
        %v1676 = vpop.f32.mrb[0].mxu0
        %v1677 = vadd.f32 %v1278, %v1676
        %v1678 = vpop.f32.mrb[0].mxu0
        %v1679 = vadd.f32 %v1280, %v1678
        %1680 = vmatprep.mubr.bf16.mxu0 0
        %1681 = vmatmul.mubr.bf16.gmra.mrb[0].mxu0 %v914
        %v1682 = vpop.f32.mrb[0].mxu0
        %v1683 = vadd.f32 %v1284, %v1682
        %v1684 = vpop.f32.mrb[0].mxu0
        %v1685 = vadd.f32 %v1286, %v1684
        %v1686 = vpop.f32.mrb[0].mxu0
        %v1687 = vadd.f32 %v1288, %v1686
        %v1688 = vpop.f32.mrb[0].mxu0
        %v1689 = vadd.f32 %v1290, %v1688
        %1690 = vmatprep.mubr.bf16.mxu0 0
        %1691 = vmatmul.mubr.bf16.gmra.mrb[0].mxu0 %v915
        %v1692 = vpop.f32.mrb[0].mxu0
        %v1693 = vadd.f32 %v1294, %v1692
        %v1694 = vpop.f32.mrb[0].mxu0
        %v1695 = vadd.f32 %v1296, %v1694
        %v1696 = vpop.f32.mrb[0].mxu0
        %v1697 = vadd.f32 %v1298, %v1696
        %v1698 = vpop.f32.mrb[0].mxu0
        %v1699 = vadd.f32 %v1300, %v1698
        %1700 = vmatprep.mubr.bf16.mxu0 0
        %1701 = vmatmul.mubr.bf16.gmra.mrb[0].mxu0 %v916
        %v1702 = vpop.f32.mrb[0].mxu0
        %v1703 = vadd.f32 %v1304, %v1702
        %v1704 = vpop.f32.mrb[0].mxu0
        %v1705 = vadd.f32 %v1306, %v1704
        %v1706 = vpop.f32.mrb[0].mxu0
        %v1707 = vadd.f32 %v1308, %v1706
        %v1708 = vpop.f32.mrb[0].mxu0
        %v1709 = vadd.f32 %v1310, %v1708
        %1710 = vmatprep.mubr.bf16.mxu0 0
        %1711 = vmatmul.mubr.bf16.gmra.mrb[0].mxu0 %v917
        %v1712 = vpop.f32.mrb[0].mxu0
        %v1713 = vadd.f32 %v1314, %v1712
        %v1714 = vpop.f32.mrb[0].mxu0
        %v1715 = vadd.f32 %v1316, %v1714
        %v1716 = vpop.f32.mrb[0].mxu0
        %v1717 = vadd.f32 %v1318, %v1716
        %v1718 = vpop.f32.mrb[0].mxu0
        %v1719 = vadd.f32 %v1320, %v1718
        %1720 = vmatprep.mubr.bf16.mxu0 0
        %1721 = vmatmul.mubr.bf16.gmra.mrb[0].mxu0 %v918
        %v1722 = vpop.f32.mrb[0].mxu0
        %v1723 = vadd.f32 %v1324, %v1722
        %v1724 = vpop.f32.mrb[0].mxu0
        %v1725 = vadd.f32 %v1326, %v1724
        %v1726 = vpop.f32.mrb[0].mxu0
        %v1727 = vadd.f32 %v1328, %v1726
        %v1728 = vpop.f32.mrb[0].mxu0
        %v1729 = vadd.f32 %v1330, %v1728
        %1730 = vmatprep.mubr.bf16.mxu0 0
        %1731 = vmatmul.mubr.bf16.gmra.mrb[0].mxu0 %v919
        %v1732 = vpop.f32.mrb[0].mxu0
        %v1733 = vadd.f32 %v1334, %v1732
        %v1734 = vpop.f32.mrb[0].mxu0
        %v1735 = vadd.f32 %v1336, %v1734
        %v1736 = vpop.f32.mrb[0].mxu0
        %v1737 = vadd.f32 %v1338, %v1736
        %v1738 = vpop.f32.mrb[0].mxu0
        %v1739 = vadd.f32 %v1340, %v1738
        %1740 = vdwg.mxu0
        %s1741 = scalar_lea.vmem %s1, 256
        %v1742 = vld [vmem:[%s1741] sm:$0xff]
        %v1743 = vld [vmem:[%s1741 + $0x8] sm:$0xff]
        %v1744 = vld [vmem:[%s1741 + $0x10] sm:$0xff]
        %v1745 = vld [vmem:[%s1741 + $0x18] sm:$0xff]
        %v1746 = vld [vmem:[%s1741 + $0x20] sm:$0xff]
        %v1747 = vld [vmem:[%s1741 + $0x28] sm:$0xff]
        %v1748 = vld [vmem:[%s1741 + $0x30] sm:$0xff]
        %v1749 = vld [vmem:[%s1741 + $0x38] sm:$0xff]
        %v1750 = vld [vmem:[%s1741 + $0x40] sm:$0xff]
        %v1751 = vld [vmem:[%s1741 + $0x48] sm:$0xff]
        %v1752 = vld [vmem:[%s1741 + $0x50] sm:$0xff]
        %v1753 = vld [vmem:[%s1741 + $0x58] sm:$0xff]
        %v1754 = vld [vmem:[%s1741 + $0x60] sm:$0xff]
        %v1755 = vld [vmem:[%s1741 + $0x68] sm:$0xff]
        %v1756 = vld [vmem:[%s1741 + $0x70] sm:$0xff]
        %v1757 = vld [vmem:[%s1741 + $0x78] sm:$0xff]
        %v1760 = vunpack.c.l.b16 %v742
        %v1761 = vunpack.c.l.b16 %v743
        %v1762 = vpack.c.b16 %v1761, %v1760
        %v1780 = vunpack.c.l.b16 %v1742
        %v1781 = vunpack.c.h.b16 %v1742
        %v1782 = vunpack.c.l.b16 %v1743
        %v1783 = vunpack.c.h.b16 %v1743
        %v1784 = vunpack.c.l.b16 %v1744
        %v1785 = vunpack.c.h.b16 %v1744
        %v1786 = vunpack.c.l.b16 %v1745
        %v1787 = vunpack.c.h.b16 %v1745
        %v1788 = vunpack.c.l.b16 %v1746
        %v1789 = vunpack.c.h.b16 %v1746
        %v1790 = vunpack.c.l.b16 %v1747
        %v1791 = vunpack.c.h.b16 %v1747
        %v1792 = vunpack.c.l.b16 %v1748
        %v1793 = vunpack.c.h.b16 %v1748
        %v1794 = vunpack.c.l.b16 %v1749
        %v1795 = vunpack.c.h.b16 %v1749
        %v1796 = vunpack.c.l.b16 %v1750
        %v1797 = vunpack.c.h.b16 %v1750
        %v1798 = vunpack.c.l.b16 %v1751
        %v1799 = vunpack.c.h.b16 %v1751
        %v1800 = vunpack.c.l.b16 %v1752
        %v1801 = vunpack.c.h.b16 %v1752
        %v1802 = vunpack.c.l.b16 %v1753
        %v1803 = vunpack.c.h.b16 %v1753
        %v1804 = vunpack.c.l.b16 %v1754
        %v1805 = vunpack.c.h.b16 %v1754
        %v1806 = vunpack.c.l.b16 %v1755
        %v1807 = vunpack.c.h.b16 %v1755
        %v1808 = vunpack.c.l.b16 %v1756
        %v1809 = vunpack.c.h.b16 %v1756
        %v1810 = vunpack.c.l.b16 %v1757
        %v1811 = vunpack.c.h.b16 %v1757
        %v1812 = vpack.c.b16 %v1782, %v1780
        %v1813 = vpack.c.b16 %v1783, %v1781
        %v1814 = vpack.c.b16 %v1786, %v1784
        %v1815 = vpack.c.b16 %v1787, %v1785
        %v1816 = vpack.c.b16 %v1790, %v1788
        %v1817 = vpack.c.b16 %v1791, %v1789
        %v1818 = vpack.c.b16 %v1794, %v1792
        %v1819 = vpack.c.b16 %v1795, %v1793
        %v1820 = vpack.c.b16 %v1798, %v1796
        %v1821 = vpack.c.b16 %v1799, %v1797
        %v1822 = vpack.c.b16 %v1802, %v1800
        %v1823 = vpack.c.b16 %v1803, %v1801
        %v1824 = vpack.c.b16 %v1806, %v1804
        %v1825 = vpack.c.b16 %v1807, %v1805
        %v1826 = vpack.c.b16 %v1810, %v1808
        %v1827 = vpack.c.b16 %v1811, %v1809
        %1844 = vmatprep.subr.bf16.mxu0 %v1813
        %1845 = vmatpush1.bf16.msra.mxu0 %v1812
        %1846 = vmatprep.subr.bf16.mxu0 %v1815
        %1847 = vmatpush1.bf16.msra.mxu0 %v1814
        %1848 = vmatprep.subr.bf16.mxu0 %v1817
        %1849 = vmatpush1.bf16.msra.mxu0 %v1816
        %1850 = vmatprep.subr.bf16.mxu0 %v1819
        %1851 = vmatpush1.bf16.msra.mxu0 %v1818
        %1852 = vmatprep.subr.bf16.mxu0 %v1821
        %1853 = vmatpush1.bf16.msra.mxu0 %v1820
        %1854 = vmatprep.subr.bf16.mxu0 %v1823
        %1855 = vmatpush1.bf16.msra.mxu0 %v1822
        %1856 = vmatprep.subr.bf16.mxu0 %v1825
        %1857 = vmatpush1.bf16.msra.mxu0 %v1824
        %1858 = vmatprep.subr.bf16.mxu0 %v1827
        %1859 = vmatpush1.bf16.msra.mxu0 %v1826
        %1860 = vmatprep.subr.bf16.mxu0 0
        %1861 = vmatpush1.bf16.msra.mxu0 0
        %1862 = vmatprep.subr.bf16.mxu0 0
        %1863 = vmatpush1.bf16.msra.mxu0 0
        %1864 = vmatprep.subr.bf16.mxu0 0
        %1865 = vmatpush1.bf16.msra.mxu0 0
        %1866 = vmatprep.subr.bf16.mxu0 0
        %1867 = vmatpush1.bf16.msra.mxu0 0
        %1868 = vmatprep.subr.bf16.mxu0 0
        %1869 = vmatpush1.bf16.msra.mxu0 0
        %1870 = vmatprep.subr.bf16.mxu0 0
        %1871 = vmatpush1.bf16.msra.mxu0 0
        %1872 = vmatprep.subr.bf16.mxu0 0
        %1873 = vmatpush1.bf16.msra.mxu0 0
        %1874 = vmatprep.subr.bf16.mxu0 0
        %1875 = vmatpush1.bf16.msra.mxu0 0
        %1876 = vmatprep.mubr.bf16.mxu0 0
        %1877 = vmatmul.mubr.bf16.gmra.mrb[0].mxu0 %v894
        %v1878 = vpop.f32.mrb[0].mxu0
        %v1879 = vadd.f32 0.0, %v1878
        %v1880 = vpop.f32.mrb[0].mxu0
        %v1881 = vadd.f32 0.0, %v1880
        %v1882 = vpop.f32.mrb[0].mxu0
        %v1883 = vadd.f32 0.0, %v1882
        %v1884 = vpop.f32.mrb[0].mxu0
        %v1885 = vadd.f32 0.0, %v1884
        %1886 = vmatprep.mubr.bf16.mxu0 0
        %1887 = vmatmul.mubr.bf16.gmra.mrb[0].mxu0 %v895
        %v1888 = vpop.f32.mrb[0].mxu0
        %v1889 = vadd.f32 0.0, %v1888
        %v1890 = vpop.f32.mrb[0].mxu0
        %v1891 = vadd.f32 0.0, %v1890
        %v1892 = vpop.f32.mrb[0].mxu0
        %v1893 = vadd.f32 0.0, %v1892
        %v1894 = vpop.f32.mrb[0].mxu0
        %v1895 = vadd.f32 0.0, %v1894
        %1896 = vmatprep.mubr.bf16.mxu0 0
        %1897 = vmatmul.mubr.bf16.gmra.mrb[0].mxu0 %v896
        %v1898 = vpop.f32.mrb[0].mxu0
        %v1899 = vadd.f32 0.0, %v1898
        %v1900 = vpop.f32.mrb[0].mxu0
        %v1901 = vadd.f32 0.0, %v1900
        %v1902 = vpop.f32.mrb[0].mxu0
        %v1903 = vadd.f32 0.0, %v1902
        %v1904 = vpop.f32.mrb[0].mxu0
        %v1905 = vadd.f32 0.0, %v1904
        %1906 = vmatprep.mubr.bf16.mxu0 0
        %1907 = vmatmul.mubr.bf16.gmra.mrb[0].mxu0 %v897
        %v1908 = vpop.f32.mrb[0].mxu0
        %v1909 = vadd.f32 0.0, %v1908
        %v1910 = vpop.f32.mrb[0].mxu0
        %v1911 = vadd.f32 0.0, %v1910
        %v1912 = vpop.f32.mrb[0].mxu0
        %v1913 = vadd.f32 0.0, %v1912
        %v1914 = vpop.f32.mrb[0].mxu0
        %v1915 = vadd.f32 0.0, %v1914
        %1916 = vmatprep.mubr.bf16.mxu0 0
        %1917 = vmatmul.mubr.bf16.gmra.mrb[0].mxu0 %v898
        %v1918 = vpop.f32.mrb[0].mxu0
        %v1919 = vadd.f32 0.0, %v1918
        %v1920 = vpop.f32.mrb[0].mxu0
        %v1921 = vadd.f32 0.0, %v1920
        %v1922 = vpop.f32.mrb[0].mxu0
        %v1923 = vadd.f32 0.0, %v1922
        %v1924 = vpop.f32.mrb[0].mxu0
        %v1925 = vadd.f32 0.0, %v1924
        %1926 = vmatprep.mubr.bf16.mxu0 0
        %1927 = vmatmul.mubr.bf16.gmra.mrb[0].mxu0 %v899
        %v1928 = vpop.f32.mrb[0].mxu0
        %v1929 = vadd.f32 0.0, %v1928
        %v1930 = vpop.f32.mrb[0].mxu0
        %v1931 = vadd.f32 0.0, %v1930
        %v1932 = vpop.f32.mrb[0].mxu0
        %v1933 = vadd.f32 0.0, %v1932
        %v1934 = vpop.f32.mrb[0].mxu0
        %v1935 = vadd.f32 0.0, %v1934
        %1936 = vmatprep.mubr.bf16.mxu0 0
        %1937 = vmatmul.mubr.bf16.gmra.mrb[0].mxu0 %v900
        %v1938 = vpop.f32.mrb[0].mxu0
        %v1939 = vadd.f32 0.0, %v1938
        %v1940 = vpop.f32.mrb[0].mxu0
        %v1941 = vadd.f32 0.0, %v1940
        %v1942 = vpop.f32.mrb[0].mxu0
        %v1943 = vadd.f32 0.0, %v1942
        %v1944 = vpop.f32.mrb[0].mxu0
        %v1945 = vadd.f32 0.0, %v1944
        %1946 = vmatprep.mubr.bf16.mxu0 0
        %1947 = vmatmul.mubr.bf16.gmra.mrb[0].mxu0 %v901
        %v1948 = vpop.f32.mrb[0].mxu0
        %v1949 = vadd.f32 0.0, %v1948
        %v1950 = vpop.f32.mrb[0].mxu0
        %v1951 = vadd.f32 0.0, %v1950
        %v1952 = vpop.f32.mrb[0].mxu0
        %v1953 = vadd.f32 0.0, %v1952
        %v1954 = vpop.f32.mrb[0].mxu0
        %v1955 = vadd.f32 0.0, %v1954
        %1956 = vmatprep.mubr.bf16.mxu0 0
        %1957 = vmatmul.mubr.bf16.gmra.mrb[0].mxu0 %v902
        %v1958 = vpop.f32.mrb[0].mxu0
        %v1959 = vadd.f32 0.0, %v1958
        %v1960 = vpop.f32.mrb[0].mxu0
        %v1961 = vadd.f32 0.0, %v1960
        %v1962 = vpop.f32.mrb[0].mxu0
        %v1963 = vadd.f32 0.0, %v1962
        %v1964 = vpop.f32.mrb[0].mxu0
        %v1965 = vadd.f32 0.0, %v1964
        %1966 = vmatprep.mubr.bf16.mxu0 0
        %1967 = vmatmul.mubr.bf16.gmra.mrb[0].mxu0 %v903
        %v1968 = vpop.f32.mrb[0].mxu0
        %v1969 = vadd.f32 0.0, %v1968
        %v1970 = vpop.f32.mrb[0].mxu0
        %v1971 = vadd.f32 0.0, %v1970
        %v1972 = vpop.f32.mrb[0].mxu0
        %v1973 = vadd.f32 0.0, %v1972
        %v1974 = vpop.f32.mrb[0].mxu0
        %v1975 = vadd.f32 0.0, %v1974
        %1976 = vmatprep.mubr.bf16.mxu0 0
        %1977 = vmatmul.mubr.bf16.gmra.mrb[0].mxu0 %v904
        %v1978 = vpop.f32.mrb[0].mxu0
        %v1979 = vadd.f32 0.0, %v1978
        %v1980 = vpop.f32.mrb[0].mxu0
        %v1981 = vadd.f32 0.0, %v1980
        %v1982 = vpop.f32.mrb[0].mxu0
        %v1983 = vadd.f32 0.0, %v1982
        %v1984 = vpop.f32.mrb[0].mxu0
        %v1985 = vadd.f32 0.0, %v1984
        %1986 = vmatprep.mubr.bf16.mxu0 0
        %1987 = vmatmul.mubr.bf16.gmra.mrb[0].mxu0 %v905
        %v1988 = vpop.f32.mrb[0].mxu0
        %v1989 = vadd.f32 0.0, %v1988
        %v1990 = vpop.f32.mrb[0].mxu0
        %v1991 = vadd.f32 0.0, %v1990
        %v1992 = vpop.f32.mrb[0].mxu0
        %v1993 = vadd.f32 0.0, %v1992
        %v1994 = vpop.f32.mrb[0].mxu0
        %v1995 = vadd.f32 0.0, %v1994
        %1996 = vmatprep.mubr.bf16.mxu0 0
        %1997 = vmatmul.mubr.bf16.gmra.mrb[0].mxu0 %v906
        %v1998 = vpop.f32.mrb[0].mxu0
        %v1999 = vadd.f32 0.0, %v1998
        %v2000 = vpop.f32.mrb[0].mxu0
        %v2001 = vadd.f32 0.0, %v2000
        %v2002 = vpop.f32.mrb[0].mxu0
        %v2003 = vadd.f32 0.0, %v2002
        %v2004 = vpop.f32.mrb[0].mxu0
        %v2005 = vadd.f32 0.0, %v2004
        %2006 = vmatprep.mubr.bf16.mxu0 0
        %2007 = vmatmul.mubr.bf16.gmra.mrb[0].mxu0 %v907
        %v2008 = vpop.f32.mrb[0].mxu0
        %v2009 = vadd.f32 0.0, %v2008
        %v2010 = vpop.f32.mrb[0].mxu0
        %v2011 = vadd.f32 0.0, %v2010
        %v2012 = vpop.f32.mrb[0].mxu0
        %v2013 = vadd.f32 0.0, %v2012
        %v2014 = vpop.f32.mrb[0].mxu0
        %v2015 = vadd.f32 0.0, %v2014
        %2016 = vmatprep.mubr.bf16.mxu0 0
        %2017 = vmatmul.mubr.bf16.gmra.mrb[0].mxu0 %v908
        %v2018 = vpop.f32.mrb[0].mxu0
        %v2019 = vadd.f32 0.0, %v2018
        %v2020 = vpop.f32.mrb[0].mxu0
        %v2021 = vadd.f32 0.0, %v2020
        %v2022 = vpop.f32.mrb[0].mxu0
        %v2023 = vadd.f32 0.0, %v2022
        %v2024 = vpop.f32.mrb[0].mxu0
        %v2025 = vadd.f32 0.0, %v2024
        %2026 = vmatprep.mubr.bf16.mxu0 0
        %2027 = vmatmul.mubr.bf16.gmra.mrb[0].mxu0 %v909
        %v2028 = vpop.f32.mrb[0].mxu0
        %v2029 = vadd.f32 0.0, %v2028
        %v2030 = vpop.f32.mrb[0].mxu0
        %v2031 = vadd.f32 0.0, %v2030
        %v2032 = vpop.f32.mrb[0].mxu0
        %v2033 = vadd.f32 0.0, %v2032
        %v2034 = vpop.f32.mrb[0].mxu0
        %v2035 = vadd.f32 0.0, %v2034
        %2036 = vmatprep.mubr.bf16.mxu0 0
        %2037 = vmatmul.mubr.bf16.gmra.mrb[0].mxu0 %v910
        %v2038 = vpop.f32.mrb[0].mxu0
        %v2039 = vadd.f32 0.0, %v2038
        %v2040 = vpop.f32.mrb[0].mxu0
        %v2041 = vadd.f32 0.0, %v2040
        %v2042 = vpop.f32.mrb[0].mxu0
        %v2043 = vadd.f32 0.0, %v2042
        %v2044 = vpop.f32.mrb[0].mxu0
        %v2045 = vadd.f32 0.0, %v2044
        %2046 = vmatprep.mubr.bf16.mxu0 0
        %2047 = vmatmul.mubr.bf16.gmra.mrb[0].mxu0 %v911
        %v2048 = vpop.f32.mrb[0].mxu0
        %v2049 = vadd.f32 0.0, %v2048
        %v2050 = vpop.f32.mrb[0].mxu0
        %v2051 = vadd.f32 0.0, %v2050
        %v2052 = vpop.f32.mrb[0].mxu0
        %v2053 = vadd.f32 0.0, %v2052
        %v2054 = vpop.f32.mrb[0].mxu0
        %v2055 = vadd.f32 0.0, %v2054
        %2056 = vmatprep.mubr.bf16.mxu0 0
        %2057 = vmatmul.mubr.bf16.gmra.mrb[0].mxu0 %v912
        %v2058 = vpop.f32.mrb[0].mxu0
        %v2059 = vadd.f32 0.0, %v2058
        %v2060 = vpop.f32.mrb[0].mxu0
        %v2061 = vadd.f32 0.0, %v2060
        %v2062 = vpop.f32.mrb[0].mxu0
        %v2063 = vadd.f32 0.0, %v2062
        %v2064 = vpop.f32.mrb[0].mxu0
        %v2065 = vadd.f32 0.0, %v2064
        %2066 = vmatprep.mubr.bf16.mxu0 0
        %2067 = vmatmul.mubr.bf16.gmra.mrb[0].mxu0 %v913
        %v2068 = vpop.f32.mrb[0].mxu0
        %v2069 = vadd.f32 0.0, %v2068
        %v2070 = vpop.f32.mrb[0].mxu0
        %v2071 = vadd.f32 0.0, %v2070
        %v2072 = vpop.f32.mrb[0].mxu0
        %v2073 = vadd.f32 0.0, %v2072
        %v2074 = vpop.f32.mrb[0].mxu0
        %v2075 = vadd.f32 0.0, %v2074
        %2076 = vmatprep.mubr.bf16.mxu0 0
        %2077 = vmatmul.mubr.bf16.gmra.mrb[0].mxu0 %v914
        %v2078 = vpop.f32.mrb[0].mxu0
        %v2079 = vadd.f32 0.0, %v2078
        %v2080 = vpop.f32.mrb[0].mxu0
        %v2081 = vadd.f32 0.0, %v2080
        %v2082 = vpop.f32.mrb[0].mxu0
        %v2083 = vadd.f32 0.0, %v2082
        %v2084 = vpop.f32.mrb[0].mxu0
        %v2085 = vadd.f32 0.0, %v2084
        %2086 = vmatprep.mubr.bf16.mxu0 0
        %2087 = vmatmul.mubr.bf16.gmra.mrb[0].mxu0 %v915
        %v2088 = vpop.f32.mrb[0].mxu0
        %v2089 = vadd.f32 0.0, %v2088
        %v2090 = vpop.f32.mrb[0].mxu0
        %v2091 = vadd.f32 0.0, %v2090
        %v2092 = vpop.f32.mrb[0].mxu0
        %v2093 = vadd.f32 0.0, %v2092
        %v2094 = vpop.f32.mrb[0].mxu0
        %v2095 = vadd.f32 0.0, %v2094
        %2096 = vmatprep.mubr.bf16.mxu0 0
        %2097 = vmatmul.mubr.bf16.gmra.mrb[0].mxu0 %v916
        %v2098 = vpop.f32.mrb[0].mxu0
        %v2099 = vadd.f32 0.0, %v2098
        %v2100 = vpop.f32.mrb[0].mxu0
        %v2101 = vadd.f32 0.0, %v2100
        %v2102 = vpop.f32.mrb[0].mxu0
        %v2103 = vadd.f32 0.0, %v2102
        %v2104 = vpop.f32.mrb[0].mxu0
        %v2105 = vadd.f32 0.0, %v2104
        %2106 = vmatprep.mubr.bf16.mxu0 0
        %2107 = vmatmul.mubr.bf16.gmra.mrb[0].mxu0 %v917
        %v2108 = vpop.f32.mrb[0].mxu0
        %v2109 = vadd.f32 0.0, %v2108
        %v2110 = vpop.f32.mrb[0].mxu0
        %v2111 = vadd.f32 0.0, %v2110
        %v2112 = vpop.f32.mrb[0].mxu0
        %v2113 = vadd.f32 0.0, %v2112
        %v2114 = vpop.f32.mrb[0].mxu0
        %v2115 = vadd.f32 0.0, %v2114
        %2116 = vmatprep.mubr.bf16.mxu0 0
        %2117 = vmatmul.mubr.bf16.gmra.mrb[0].mxu0 %v918
        %v2118 = vpop.f32.mrb[0].mxu0
        %v2119 = vadd.f32 0.0, %v2118
        %v2120 = vpop.f32.mrb[0].mxu0
        %v2121 = vadd.f32 0.0, %v2120
        %v2122 = vpop.f32.mrb[0].mxu0
        %v2123 = vadd.f32 0.0, %v2122
        %v2124 = vpop.f32.mrb[0].mxu0
        %v2125 = vadd.f32 0.0, %v2124
        %2126 = vmatprep.mubr.bf16.mxu0 0
        %2127 = vmatmul.mubr.bf16.gmra.mrb[0].mxu0 %v919
        %v2128 = vpop.f32.mrb[0].mxu0
        %v2129 = vadd.f32 0.0, %v2128
        %v2130 = vpop.f32.mrb[0].mxu0
        %v2131 = vadd.f32 0.0, %v2130
        %v2132 = vpop.f32.mrb[0].mxu0
        %v2133 = vadd.f32 0.0, %v2132
        %v2134 = vpop.f32.mrb[0].mxu0
        %v2135 = vadd.f32 0.0, %v2134
        %2136 = vmatprep.mubr.bf16.mxu0 0
        %2137 = vmatmul.mubr.bf16.gmra.mrb[0].mxu0 %v920
        %v2138 = vpop.f32.mrb[0].mxu0
        %v2139 = vadd.f32 0.0, %v2138
        %v2140 = vpop.f32.mrb[0].mxu0
        %v2141 = vadd.f32 0.0, %v2140
        %v2142 = vpop.f32.mrb[0].mxu0
        %v2143 = vadd.f32 0.0, %v2142
        %v2144 = vpop.f32.mrb[0].mxu0
        %v2145 = vadd.f32 0.0, %v2144
        %2146 = vmatprep.mubr.bf16.mxu0 0
        %2147 = vmatmul.mubr.bf16.gmra.mrb[0].mxu0 %v1762
        %v2148 = vpop.f32.mrb[0].mxu0
        %v2149 = vadd.f32 0.0, %v2148
        %v2150 = vpop.f32.mrb[0].mxu0
        %v2151 = vadd.f32 0.0, %v2150
        %v2152 = vpop.f32.mrb[0].mxu0
        %v2153 = vadd.f32 0.0, %v2152
        %v2154 = vpop.f32.mrb[0].mxu0
        %v2155 = vadd.f32 0.0, %v2154
        %2156 = vdwg.mxu0
        %v2157 = vadd.f32 %v1463, %v1879
        %v2158 = vadd.f32 %v1465, %v1881
        %v2159 = vadd.f32 %v1467, %v1883
        %v2160 = vadd.f32 %v1469, %v1885
        %v2161 = vadd.f32 %v1473, %v1889
        %v2162 = vadd.f32 %v1475, %v1891
        %v2163 = vadd.f32 %v1477, %v1893
        %v2164 = vadd.f32 %v1479, %v1895
        %v2165 = vadd.f32 %v1483, %v1899
        %v2166 = vadd.f32 %v1485, %v1901
        %v2167 = vadd.f32 %v1487, %v1903
        %v2168 = vadd.f32 %v1489, %v1905
        %v2169 = vadd.f32 %v1493, %v1909
        %v2170 = vadd.f32 %v1495, %v1911
        %v2171 = vadd.f32 %v1497, %v1913
        %v2172 = vadd.f32 %v1499, %v1915
        %v2173 = vadd.f32 %v1503, %v1919
        %v2174 = vadd.f32 %v1505, %v1921
        %v2175 = vadd.f32 %v1507, %v1923
        %v2176 = vadd.f32 %v1509, %v1925
        %v2177 = vadd.f32 %v1513, %v1929
        %v2178 = vadd.f32 %v1515, %v1931
        %v2179 = vadd.f32 %v1517, %v1933
        %v2180 = vadd.f32 %v1519, %v1935
        %v2181 = vadd.f32 %v1523, %v1939
        %v2182 = vadd.f32 %v1525, %v1941
        %v2183 = vadd.f32 %v1527, %v1943
        %v2184 = vadd.f32 %v1529, %v1945
        %v2185 = vadd.f32 %v1533, %v1949
        %v2186 = vadd.f32 %v1535, %v1951
        %v2187 = vadd.f32 %v1537, %v1953
        %v2188 = vadd.f32 %v1539, %v1955
        %v2189 = vadd.f32 %v1543, %v1959
        %v2190 = vadd.f32 %v1545, %v1961
        %v2191 = vadd.f32 %v1547, %v1963
        %v2192 = vadd.f32 %v1549, %v1965
        %v2193 = vadd.f32 %v1553, %v1969
        %v2194 = vadd.f32 %v1555, %v1971
        %v2195 = vadd.f32 %v1557, %v1973
        %v2196 = vadd.f32 %v1559, %v1975
        %v2197 = vadd.f32 %v1563, %v1979
        %v2198 = vadd.f32 %v1565, %v1981
        %v2199 = vadd.f32 %v1567, %v1983
        %v2200 = vadd.f32 %v1569, %v1985
        %v2201 = vadd.f32 %v1573, %v1989
        %v2202 = vadd.f32 %v1575, %v1991
        %v2203 = vadd.f32 %v1577, %v1993
        %v2204 = vadd.f32 %v1579, %v1995
        %v2205 = vadd.f32 %v1583, %v1999
        %v2206 = vadd.f32 %v1585, %v2001
        %v2207 = vadd.f32 %v1587, %v2003
        %v2208 = vadd.f32 %v1589, %v2005
        %v2209 = vadd.f32 %v1593, %v2009
        %v2210 = vadd.f32 %v1595, %v2011
        %v2211 = vadd.f32 %v1597, %v2013
        %v2212 = vadd.f32 %v1599, %v2015
        %v2213 = vadd.f32 %v1603, %v2019
        %v2214 = vadd.f32 %v1605, %v2021
        %v2215 = vadd.f32 %v1607, %v2023
        %v2216 = vadd.f32 %v1609, %v2025
        %v2217 = vadd.f32 %v1613, %v2029
        %v2218 = vadd.f32 %v1615, %v2031
        %v2219 = vadd.f32 %v1617, %v2033
        %v2220 = vadd.f32 %v1619, %v2035
        %v2221 = vadd.f32 %v1623, %v2039
        %v2222 = vadd.f32 %v1625, %v2041
        %v2223 = vadd.f32 %v1627, %v2043
        %v2224 = vadd.f32 %v1629, %v2045
        %v2225 = vadd.f32 %v1633, %v2049
        %v2226 = vadd.f32 %v1635, %v2051
        %v2227 = vadd.f32 %v1637, %v2053
        %v2228 = vadd.f32 %v1639, %v2055
        %v2229 = vadd.f32 %v1643, %v2059
        %v2230 = vadd.f32 %v1645, %v2061
        %v2231 = vadd.f32 %v1647, %v2063
        %v2232 = vadd.f32 %v1649, %v2065
        %v2233 = vadd.f32 %v1653, %v2069
        %v2234 = vadd.f32 %v1655, %v2071
        %v2235 = vadd.f32 %v1657, %v2073
        %v2236 = vadd.f32 %v1659, %v2075
        %v2237 = vadd.f32 %v1663, %v2079
        %v2238 = vadd.f32 %v1665, %v2081
        %v2239 = vadd.f32 %v1667, %v2083
        %v2240 = vadd.f32 %v1669, %v2085
        %v2241 = vadd.f32 %v1673, %v2089
        %v2242 = vadd.f32 %v1675, %v2091
        %v2243 = vadd.f32 %v1677, %v2093
        %v2244 = vadd.f32 %v1679, %v2095
        %v2245 = vadd.f32 %v1683, %v2099
        %v2246 = vadd.f32 %v1685, %v2101
        %v2247 = vadd.f32 %v1687, %v2103
        %v2248 = vadd.f32 %v1689, %v2105
        %v2249 = vadd.f32 %v1693, %v2109
        %v2250 = vadd.f32 %v1695, %v2111
        %v2251 = vadd.f32 %v1697, %v2113
        %v2252 = vadd.f32 %v1699, %v2115
        %v2253 = vadd.f32 %v1703, %v2119
        %v2254 = vadd.f32 %v1705, %v2121
        %v2255 = vadd.f32 %v1707, %v2123
        %v2256 = vadd.f32 %v1709, %v2125
        %v2257 = vadd.f32 %v1713, %v2129
        %v2258 = vadd.f32 %v1715, %v2131
        %v2259 = vadd.f32 %v1717, %v2133
        %v2260 = vadd.f32 %v1719, %v2135
        %v2261 = vadd.f32 %v1723, %v2139
        %v2262 = vadd.f32 %v1725, %v2141
        %v2263 = vadd.f32 %v1727, %v2143
        %v2264 = vadd.f32 %v1729, %v2145
        %v2265 = vadd.f32 %v1733, %v2149
        %v2266 = vadd.f32 %v1735, %v2151
        %v2267 = vadd.f32 %v1737, %v2153
        %v2268 = vadd.f32 %v1739, %v2155
        %s2269 = scalar_lea.vmem %s1, 384
        %v2270 = vld [vmem:[%s2269] sm:$0xff]
        %v2271 = vld [vmem:[%s2269 + $0x8] sm:$0xff]
        %v2272 = vld [vmem:[%s2269 + $0x10] sm:$0xff]
        %v2273 = vld [vmem:[%s2269 + $0x18] sm:$0xff]
        %v2274 = vld [vmem:[%s2269 + $0x20] sm:$0xff]
        %v2275 = vld [vmem:[%s2269 + $0x28] sm:$0xff]
        %v2276 = vld [vmem:[%s2269 + $0x30] sm:$0xff]
        %v2277 = vld [vmem:[%s2269 + $0x38] sm:$0xff]
        %v2278 = vld [vmem:[%s2269 + $0x40] sm:$0xff]
        %v2279 = vld [vmem:[%s2269 + $0x48] sm:$0xff]
        %v2280 = vld [vmem:[%s2269 + $0x50] sm:$0xff]
        %v2281 = vld [vmem:[%s2269 + $0x58] sm:$0xff]
        %v2282 = vld [vmem:[%s2269 + $0x60] sm:$0xff]
        %v2283 = vld [vmem:[%s2269 + $0x68] sm:$0xff]
        %v2284 = vld [vmem:[%s2269 + $0x70] sm:$0xff]
        %v2285 = vld [vmem:[%s2269 + $0x78] sm:$0xff]
        %v2288 = vunpack.c.l.b16 %v744
        %v2289 = vunpack.c.l.b16 %v745
        %v2290 = vpack.c.b16 %v2289, %v2288
        %v2308 = vunpack.c.l.b16 %v2270
        %v2309 = vunpack.c.h.b16 %v2270
        %v2310 = vunpack.c.l.b16 %v2271
        %v2311 = vunpack.c.h.b16 %v2271
        %v2312 = vunpack.c.l.b16 %v2272
        %v2313 = vunpack.c.h.b16 %v2272
        %v2314 = vunpack.c.l.b16 %v2273
        %v2315 = vunpack.c.h.b16 %v2273
        %v2316 = vunpack.c.l.b16 %v2274
        %v2317 = vunpack.c.h.b16 %v2274
        %v2318 = vunpack.c.l.b16 %v2275
        %v2319 = vunpack.c.h.b16 %v2275
        %v2320 = vunpack.c.l.b16 %v2276
        %v2321 = vunpack.c.h.b16 %v2276
        %v2322 = vunpack.c.l.b16 %v2277
        %v2323 = vunpack.c.h.b16 %v2277
        %v2324 = vunpack.c.l.b16 %v2278
        %v2325 = vunpack.c.h.b16 %v2278
        %v2326 = vunpack.c.l.b16 %v2279
        %v2327 = vunpack.c.h.b16 %v2279
        %v2328 = vunpack.c.l.b16 %v2280
        %v2329 = vunpack.c.h.b16 %v2280
        %v2330 = vunpack.c.l.b16 %v2281
        %v2331 = vunpack.c.h.b16 %v2281
        %v2332 = vunpack.c.l.b16 %v2282
        %v2333 = vunpack.c.h.b16 %v2282
        %v2334 = vunpack.c.l.b16 %v2283
        %v2335 = vunpack.c.h.b16 %v2283
        %v2336 = vunpack.c.l.b16 %v2284
        %v2337 = vunpack.c.h.b16 %v2284
        %v2338 = vunpack.c.l.b16 %v2285
        %v2339 = vunpack.c.h.b16 %v2285
        %v2340 = vpack.c.b16 %v2310, %v2308
        %v2341 = vpack.c.b16 %v2311, %v2309
        %v2342 = vpack.c.b16 %v2314, %v2312
        %v2343 = vpack.c.b16 %v2315, %v2313
        %v2344 = vpack.c.b16 %v2318, %v2316
        %v2345 = vpack.c.b16 %v2319, %v2317
        %v2346 = vpack.c.b16 %v2322, %v2320
        %v2347 = vpack.c.b16 %v2323, %v2321
        %v2348 = vpack.c.b16 %v2326, %v2324
        %v2349 = vpack.c.b16 %v2327, %v2325
        %v2350 = vpack.c.b16 %v2330, %v2328
        %v2351 = vpack.c.b16 %v2331, %v2329
        %v2352 = vpack.c.b16 %v2334, %v2332
        %v2353 = vpack.c.b16 %v2335, %v2333
        %v2354 = vpack.c.b16 %v2338, %v2336
        %v2355 = vpack.c.b16 %v2339, %v2337
        %2372 = vmatprep.subr.bf16.mxu0 %v2341
        %2373 = vmatpush1.bf16.msra.mxu0 %v2340
        %2374 = vmatprep.subr.bf16.mxu0 %v2343
        %2375 = vmatpush1.bf16.msra.mxu0 %v2342
        %2376 = vmatprep.subr.bf16.mxu0 %v2345
        %2377 = vmatpush1.bf16.msra.mxu0 %v2344
        %2378 = vmatprep.subr.bf16.mxu0 %v2347
        %2379 = vmatpush1.bf16.msra.mxu0 %v2346
        %2380 = vmatprep.subr.bf16.mxu0 %v2349
        %2381 = vmatpush1.bf16.msra.mxu0 %v2348
        %2382 = vmatprep.subr.bf16.mxu0 %v2351
        %2383 = vmatpush1.bf16.msra.mxu0 %v2350
        %2384 = vmatprep.subr.bf16.mxu0 %v2353
        %2385 = vmatpush1.bf16.msra.mxu0 %v2352
        %2386 = vmatprep.subr.bf16.mxu0 %v2355
        %2387 = vmatpush1.bf16.msra.mxu0 %v2354
        %2388 = vmatprep.subr.bf16.mxu0 0
        %2389 = vmatpush1.bf16.msra.mxu0 0
        %2390 = vmatprep.subr.bf16.mxu0 0
        %2391 = vmatpush1.bf16.msra.mxu0 0
        %2392 = vmatprep.subr.bf16.mxu0 0
        %2393 = vmatpush1.bf16.msra.mxu0 0
        %2394 = vmatprep.subr.bf16.mxu0 0
        %2395 = vmatpush1.bf16.msra.mxu0 0
        %2396 = vmatprep.subr.bf16.mxu0 0
        %2397 = vmatpush1.bf16.msra.mxu0 0
        %2398 = vmatprep.subr.bf16.mxu0 0
        %2399 = vmatpush1.bf16.msra.mxu0 0
        %2400 = vmatprep.subr.bf16.mxu0 0
        %2401 = vmatpush1.bf16.msra.mxu0 0
        %2402 = vmatprep.subr.bf16.mxu0 0
        %2403 = vmatpush1.bf16.msra.mxu0 0
        %2404 = vmatprep.mubr.bf16.mxu0 0
        %2405 = vmatmul.mubr.bf16.gmra.mrb[0].mxu0 %v895
        %v2406 = vpop.f32.mrb[0].mxu0
        %v2407 = vadd.f32 0.0, %v2406
        %v2408 = vpop.f32.mrb[0].mxu0
        %v2409 = vadd.f32 0.0, %v2408
        %v2410 = vpop.f32.mrb[0].mxu0
        %v2411 = vadd.f32 0.0, %v2410
        %v2412 = vpop.f32.mrb[0].mxu0
        %v2413 = vadd.f32 0.0, %v2412
        %2414 = vmatprep.mubr.bf16.mxu0 0
        %2415 = vmatmul.mubr.bf16.gmra.mrb[0].mxu0 %v896
        %v2416 = vpop.f32.mrb[0].mxu0
        %v2417 = vadd.f32 0.0, %v2416
        %v2418 = vpop.f32.mrb[0].mxu0
        %v2419 = vadd.f32 0.0, %v2418
        %v2420 = vpop.f32.mrb[0].mxu0
        %v2421 = vadd.f32 0.0, %v2420
        %v2422 = vpop.f32.mrb[0].mxu0
        %v2423 = vadd.f32 0.0, %v2422
        %2424 = vmatprep.mubr.bf16.mxu0 0
        %2425 = vmatmul.mubr.bf16.gmra.mrb[0].mxu0 %v897
        %v2426 = vpop.f32.mrb[0].mxu0
        %v2427 = vadd.f32 0.0, %v2426
        %v2428 = vpop.f32.mrb[0].mxu0
        %v2429 = vadd.f32 0.0, %v2428
        %v2430 = vpop.f32.mrb[0].mxu0
        %v2431 = vadd.f32 0.0, %v2430
        %v2432 = vpop.f32.mrb[0].mxu0
        %v2433 = vadd.f32 0.0, %v2432
        %2434 = vmatprep.mubr.bf16.mxu0 0
        %2435 = vmatmul.mubr.bf16.gmra.mrb[0].mxu0 %v898
        %v2436 = vpop.f32.mrb[0].mxu0
        %v2437 = vadd.f32 0.0, %v2436
        %v2438 = vpop.f32.mrb[0].mxu0
        %v2439 = vadd.f32 0.0, %v2438
        %v2440 = vpop.f32.mrb[0].mxu0
        %v2441 = vadd.f32 0.0, %v2440
        %v2442 = vpop.f32.mrb[0].mxu0
        %v2443 = vadd.f32 0.0, %v2442
        %2444 = vmatprep.mubr.bf16.mxu0 0
        %2445 = vmatmul.mubr.bf16.gmra.mrb[0].mxu0 %v899
        %v2446 = vpop.f32.mrb[0].mxu0
        %v2447 = vadd.f32 0.0, %v2446
        %v2448 = vpop.f32.mrb[0].mxu0
        %v2449 = vadd.f32 0.0, %v2448
        %v2450 = vpop.f32.mrb[0].mxu0
        %v2451 = vadd.f32 0.0, %v2450
        %v2452 = vpop.f32.mrb[0].mxu0
        %v2453 = vadd.f32 0.0, %v2452
        %2454 = vmatprep.mubr.bf16.mxu0 0
        %2455 = vmatmul.mubr.bf16.gmra.mrb[0].mxu0 %v900
        %v2456 = vpop.f32.mrb[0].mxu0
        %v2457 = vadd.f32 0.0, %v2456
        %v2458 = vpop.f32.mrb[0].mxu0
        %v2459 = vadd.f32 0.0, %v2458
        %v2460 = vpop.f32.mrb[0].mxu0
        %v2461 = vadd.f32 0.0, %v2460
        %v2462 = vpop.f32.mrb[0].mxu0
        %v2463 = vadd.f32 0.0, %v2462
        %2464 = vmatprep.mubr.bf16.mxu0 0
        %2465 = vmatmul.mubr.bf16.gmra.mrb[0].mxu0 %v901
        %v2466 = vpop.f32.mrb[0].mxu0
        %v2467 = vadd.f32 0.0, %v2466
        %v2468 = vpop.f32.mrb[0].mxu0
        %v2469 = vadd.f32 0.0, %v2468
        %v2470 = vpop.f32.mrb[0].mxu0
        %v2471 = vadd.f32 0.0, %v2470
        %v2472 = vpop.f32.mrb[0].mxu0
        %v2473 = vadd.f32 0.0, %v2472
        %2474 = vmatprep.mubr.bf16.mxu0 0
        %2475 = vmatmul.mubr.bf16.gmra.mrb[0].mxu0 %v902
        %v2476 = vpop.f32.mrb[0].mxu0
        %v2477 = vadd.f32 0.0, %v2476
        %v2478 = vpop.f32.mrb[0].mxu0
        %v2479 = vadd.f32 0.0, %v2478
        %v2480 = vpop.f32.mrb[0].mxu0
        %v2481 = vadd.f32 0.0, %v2480
        %v2482 = vpop.f32.mrb[0].mxu0
        %v2483 = vadd.f32 0.0, %v2482
        %2484 = vmatprep.mubr.bf16.mxu0 0
        %2485 = vmatmul.mubr.bf16.gmra.mrb[0].mxu0 %v903
        %v2486 = vpop.f32.mrb[0].mxu0
        %v2487 = vadd.f32 0.0, %v2486
        %v2488 = vpop.f32.mrb[0].mxu0
        %v2489 = vadd.f32 0.0, %v2488
        %v2490 = vpop.f32.mrb[0].mxu0
        %v2491 = vadd.f32 0.0, %v2490
        %v2492 = vpop.f32.mrb[0].mxu0
        %v2493 = vadd.f32 0.0, %v2492
        %2494 = vmatprep.mubr.bf16.mxu0 0
        %2495 = vmatmul.mubr.bf16.gmra.mrb[0].mxu0 %v904
        %v2496 = vpop.f32.mrb[0].mxu0
        %v2497 = vadd.f32 0.0, %v2496
        %v2498 = vpop.f32.mrb[0].mxu0
        %v2499 = vadd.f32 0.0, %v2498
        %v2500 = vpop.f32.mrb[0].mxu0
        %v2501 = vadd.f32 0.0, %v2500
        %v2502 = vpop.f32.mrb[0].mxu0
        %v2503 = vadd.f32 0.0, %v2502
        %2504 = vmatprep.mubr.bf16.mxu0 0
        %2505 = vmatmul.mubr.bf16.gmra.mrb[0].mxu0 %v905
        %v2506 = vpop.f32.mrb[0].mxu0
        %v2507 = vadd.f32 0.0, %v2506
        %v2508 = vpop.f32.mrb[0].mxu0
        %v2509 = vadd.f32 0.0, %v2508
        %v2510 = vpop.f32.mrb[0].mxu0
        %v2511 = vadd.f32 0.0, %v2510
        %v2512 = vpop.f32.mrb[0].mxu0
        %v2513 = vadd.f32 0.0, %v2512
        %2514 = vmatprep.mubr.bf16.mxu0 0
        %2515 = vmatmul.mubr.bf16.gmra.mrb[0].mxu0 %v906
        %v2516 = vpop.f32.mrb[0].mxu0
        %v2517 = vadd.f32 0.0, %v2516
        %v2518 = vpop.f32.mrb[0].mxu0
        %v2519 = vadd.f32 0.0, %v2518
        %v2520 = vpop.f32.mrb[0].mxu0
        %v2521 = vadd.f32 0.0, %v2520
        %v2522 = vpop.f32.mrb[0].mxu0
        %v2523 = vadd.f32 0.0, %v2522
        %2524 = vmatprep.mubr.bf16.mxu0 0
        %2525 = vmatmul.mubr.bf16.gmra.mrb[0].mxu0 %v907
        %v2526 = vpop.f32.mrb[0].mxu0
        %v2527 = vadd.f32 0.0, %v2526
        %v2528 = vpop.f32.mrb[0].mxu0
        %v2529 = vadd.f32 0.0, %v2528
        %v2530 = vpop.f32.mrb[0].mxu0
        %v2531 = vadd.f32 0.0, %v2530
        %v2532 = vpop.f32.mrb[0].mxu0
        %v2533 = vadd.f32 0.0, %v2532
        %2534 = vmatprep.mubr.bf16.mxu0 0
        %2535 = vmatmul.mubr.bf16.gmra.mrb[0].mxu0 %v908
        %v2536 = vpop.f32.mrb[0].mxu0
        %v2537 = vadd.f32 0.0, %v2536
        %v2538 = vpop.f32.mrb[0].mxu0
        %v2539 = vadd.f32 0.0, %v2538
        %v2540 = vpop.f32.mrb[0].mxu0
        %v2541 = vadd.f32 0.0, %v2540
        %v2542 = vpop.f32.mrb[0].mxu0
        %v2543 = vadd.f32 0.0, %v2542
        %2544 = vmatprep.mubr.bf16.mxu0 0
        %2545 = vmatmul.mubr.bf16.gmra.mrb[0].mxu0 %v909
        %v2546 = vpop.f32.mrb[0].mxu0
        %v2547 = vadd.f32 0.0, %v2546
        %v2548 = vpop.f32.mrb[0].mxu0
        %v2549 = vadd.f32 0.0, %v2548
        %v2550 = vpop.f32.mrb[0].mxu0
        %v2551 = vadd.f32 0.0, %v2550
        %v2552 = vpop.f32.mrb[0].mxu0
        %v2553 = vadd.f32 0.0, %v2552
        %2554 = vmatprep.mubr.bf16.mxu0 0
        %2555 = vmatmul.mubr.bf16.gmra.mrb[0].mxu0 %v910
        %v2556 = vpop.f32.mrb[0].mxu0
        %v2557 = vadd.f32 0.0, %v2556
        %v2558 = vpop.f32.mrb[0].mxu0
        %v2559 = vadd.f32 0.0, %v2558
        %v2560 = vpop.f32.mrb[0].mxu0
        %v2561 = vadd.f32 0.0, %v2560
        %v2562 = vpop.f32.mrb[0].mxu0
        %v2563 = vadd.f32 0.0, %v2562
        %2564 = vmatprep.mubr.bf16.mxu0 0
        %2565 = vmatmul.mubr.bf16.gmra.mrb[0].mxu0 %v911
        %v2566 = vpop.f32.mrb[0].mxu0
        %v2567 = vadd.f32 0.0, %v2566
        %v2568 = vpop.f32.mrb[0].mxu0
        %v2569 = vadd.f32 0.0, %v2568
        %v2570 = vpop.f32.mrb[0].mxu0
        %v2571 = vadd.f32 0.0, %v2570
        %v2572 = vpop.f32.mrb[0].mxu0
        %v2573 = vadd.f32 0.0, %v2572
        %2574 = vmatprep.mubr.bf16.mxu0 0
        %2575 = vmatmul.mubr.bf16.gmra.mrb[0].mxu0 %v912
        %v2576 = vpop.f32.mrb[0].mxu0
        %v2577 = vadd.f32 0.0, %v2576
        %v2578 = vpop.f32.mrb[0].mxu0
        %v2579 = vadd.f32 0.0, %v2578
        %v2580 = vpop.f32.mrb[0].mxu0
        %v2581 = vadd.f32 0.0, %v2580
        %v2582 = vpop.f32.mrb[0].mxu0
        %v2583 = vadd.f32 0.0, %v2582
        %2584 = vmatprep.mubr.bf16.mxu0 0
        %2585 = vmatmul.mubr.bf16.gmra.mrb[0].mxu0 %v913
        %v2586 = vpop.f32.mrb[0].mxu0
        %v2587 = vadd.f32 0.0, %v2586
        %v2588 = vpop.f32.mrb[0].mxu0
        %v2589 = vadd.f32 0.0, %v2588
        %v2590 = vpop.f32.mrb[0].mxu0
        %v2591 = vadd.f32 0.0, %v2590
        %v2592 = vpop.f32.mrb[0].mxu0
        %v2593 = vadd.f32 0.0, %v2592
        %2594 = vmatprep.mubr.bf16.mxu0 0
        %2595 = vmatmul.mubr.bf16.gmra.mrb[0].mxu0 %v914
        %v2596 = vpop.f32.mrb[0].mxu0
        %v2597 = vadd.f32 0.0, %v2596
        %v2598 = vpop.f32.mrb[0].mxu0
        %v2599 = vadd.f32 0.0, %v2598
        %v2600 = vpop.f32.mrb[0].mxu0
        %v2601 = vadd.f32 0.0, %v2600
        %v2602 = vpop.f32.mrb[0].mxu0
        %v2603 = vadd.f32 0.0, %v2602
        %2604 = vmatprep.mubr.bf16.mxu0 0
        %2605 = vmatmul.mubr.bf16.gmra.mrb[0].mxu0 %v915
        %v2606 = vpop.f32.mrb[0].mxu0
        %v2607 = vadd.f32 0.0, %v2606
        %v2608 = vpop.f32.mrb[0].mxu0
        %v2609 = vadd.f32 0.0, %v2608
        %v2610 = vpop.f32.mrb[0].mxu0
        %v2611 = vadd.f32 0.0, %v2610
        %v2612 = vpop.f32.mrb[0].mxu0
        %v2613 = vadd.f32 0.0, %v2612
        %2614 = vmatprep.mubr.bf16.mxu0 0
        %2615 = vmatmul.mubr.bf16.gmra.mrb[0].mxu0 %v916
        %v2616 = vpop.f32.mrb[0].mxu0
        %v2617 = vadd.f32 0.0, %v2616
        %v2618 = vpop.f32.mrb[0].mxu0
        %v2619 = vadd.f32 0.0, %v2618
        %v2620 = vpop.f32.mrb[0].mxu0
        %v2621 = vadd.f32 0.0, %v2620
        %v2622 = vpop.f32.mrb[0].mxu0
        %v2623 = vadd.f32 0.0, %v2622
        %2624 = vmatprep.mubr.bf16.mxu0 0
        %2625 = vmatmul.mubr.bf16.gmra.mrb[0].mxu0 %v917
        %v2626 = vpop.f32.mrb[0].mxu0
        %v2627 = vadd.f32 0.0, %v2626
        %v2628 = vpop.f32.mrb[0].mxu0
        %v2629 = vadd.f32 0.0, %v2628
        %v2630 = vpop.f32.mrb[0].mxu0
        %v2631 = vadd.f32 0.0, %v2630
        %v2632 = vpop.f32.mrb[0].mxu0
        %v2633 = vadd.f32 0.0, %v2632
        %2634 = vmatprep.mubr.bf16.mxu0 0
        %2635 = vmatmul.mubr.bf16.gmra.mrb[0].mxu0 %v918
        %v2636 = vpop.f32.mrb[0].mxu0
        %v2637 = vadd.f32 0.0, %v2636
        %v2638 = vpop.f32.mrb[0].mxu0
        %v2639 = vadd.f32 0.0, %v2638
        %v2640 = vpop.f32.mrb[0].mxu0
        %v2641 = vadd.f32 0.0, %v2640
        %v2642 = vpop.f32.mrb[0].mxu0
        %v2643 = vadd.f32 0.0, %v2642
        %2644 = vmatprep.mubr.bf16.mxu0 0
        %2645 = vmatmul.mubr.bf16.gmra.mrb[0].mxu0 %v919
        %v2646 = vpop.f32.mrb[0].mxu0
        %v2647 = vadd.f32 0.0, %v2646
        %v2648 = vpop.f32.mrb[0].mxu0
        %v2649 = vadd.f32 0.0, %v2648
        %v2650 = vpop.f32.mrb[0].mxu0
        %v2651 = vadd.f32 0.0, %v2650
        %v2652 = vpop.f32.mrb[0].mxu0
        %v2653 = vadd.f32 0.0, %v2652
        %2654 = vmatprep.mubr.bf16.mxu0 0
        %2655 = vmatmul.mubr.bf16.gmra.mrb[0].mxu0 %v920
        %v2656 = vpop.f32.mrb[0].mxu0
        %v2657 = vadd.f32 0.0, %v2656
        %v2658 = vpop.f32.mrb[0].mxu0
        %v2659 = vadd.f32 0.0, %v2658
        %v2660 = vpop.f32.mrb[0].mxu0
        %v2661 = vadd.f32 0.0, %v2660
        %v2662 = vpop.f32.mrb[0].mxu0
        %v2663 = vadd.f32 0.0, %v2662
        %2664 = vmatprep.mubr.bf16.mxu0 0
        %2665 = vmatmul.mubr.bf16.gmra.mrb[0].mxu0 %v1762
        %v2666 = vpop.f32.mrb[0].mxu0
        %v2667 = vadd.f32 0.0, %v2666
        %v2668 = vpop.f32.mrb[0].mxu0
        %v2669 = vadd.f32 0.0, %v2668
        %v2670 = vpop.f32.mrb[0].mxu0
        %v2671 = vadd.f32 0.0, %v2670
        %v2672 = vpop.f32.mrb[0].mxu0
        %v2673 = vadd.f32 0.0, %v2672
        %2674 = vmatprep.mubr.bf16.mxu0 0
        %2675 = vmatmul.mubr.bf16.gmra.mrb[0].mxu0 %v2290
        %v2676 = vpop.f32.mrb[0].mxu0
        %v2677 = vadd.f32 0.0, %v2676
        %v2678 = vpop.f32.mrb[0].mxu0
        %v2679 = vadd.f32 0.0, %v2678
        %v2680 = vpop.f32.mrb[0].mxu0
        %v2681 = vadd.f32 0.0, %v2680
        %v2682 = vpop.f32.mrb[0].mxu0
        %v2683 = vadd.f32 0.0, %v2682
        %2684 = vdwg.mxu0
        %v2685 = vadd.f32 %v2157, %v2407
        %v2686 = vadd.f32 %v2158, %v2409
        %v2687 = vadd.f32 %v2159, %v2411
        %v2688 = vadd.f32 %v2160, %v2413
        %v2689 = vadd.f32 %v2161, %v2417
        %v2690 = vadd.f32 %v2162, %v2419
        %v2691 = vadd.f32 %v2163, %v2421
        %v2692 = vadd.f32 %v2164, %v2423
        %v2693 = vadd.f32 %v2165, %v2427
        %v2694 = vadd.f32 %v2166, %v2429
        %v2695 = vadd.f32 %v2167, %v2431
        %v2696 = vadd.f32 %v2168, %v2433
        %v2697 = vadd.f32 %v2169, %v2437
        %v2698 = vadd.f32 %v2170, %v2439
        %v2699 = vadd.f32 %v2171, %v2441
        %v2700 = vadd.f32 %v2172, %v2443
        %v2701 = vadd.f32 %v2173, %v2447
        %v2702 = vadd.f32 %v2174, %v2449
        %v2703 = vadd.f32 %v2175, %v2451
        %v2704 = vadd.f32 %v2176, %v2453
        %v2705 = vadd.f32 %v2177, %v2457
        %v2706 = vadd.f32 %v2178, %v2459
        %v2707 = vadd.f32 %v2179, %v2461
        %v2708 = vadd.f32 %v2180, %v2463
        %v2709 = vadd.f32 %v2181, %v2467
        %v2710 = vadd.f32 %v2182, %v2469
        %v2711 = vadd.f32 %v2183, %v2471
        %v2712 = vadd.f32 %v2184, %v2473
        %v2713 = vadd.f32 %v2185, %v2477
        %v2714 = vadd.f32 %v2186, %v2479
        %v2715 = vadd.f32 %v2187, %v2481
        %v2716 = vadd.f32 %v2188, %v2483
        %v2717 = vadd.f32 %v2189, %v2487
        %v2718 = vadd.f32 %v2190, %v2489
        %v2719 = vadd.f32 %v2191, %v2491
        %v2720 = vadd.f32 %v2192, %v2493
        %v2721 = vadd.f32 %v2193, %v2497
        %v2722 = vadd.f32 %v2194, %v2499
        %v2723 = vadd.f32 %v2195, %v2501
        %v2724 = vadd.f32 %v2196, %v2503
        %v2725 = vadd.f32 %v2197, %v2507
        %v2726 = vadd.f32 %v2198, %v2509
        %v2727 = vadd.f32 %v2199, %v2511
        %v2728 = vadd.f32 %v2200, %v2513
        %v2729 = vadd.f32 %v2201, %v2517
        %v2730 = vadd.f32 %v2202, %v2519
        %v2731 = vadd.f32 %v2203, %v2521
        %v2732 = vadd.f32 %v2204, %v2523
        %v2733 = vadd.f32 %v2205, %v2527
        %v2734 = vadd.f32 %v2206, %v2529
        %v2735 = vadd.f32 %v2207, %v2531
        %v2736 = vadd.f32 %v2208, %v2533
        %v2737 = vadd.f32 %v2209, %v2537
        %v2738 = vadd.f32 %v2210, %v2539
        %v2739 = vadd.f32 %v2211, %v2541
        %v2740 = vadd.f32 %v2212, %v2543
        %v2741 = vadd.f32 %v2213, %v2547
        %v2742 = vadd.f32 %v2214, %v2549
        %v2743 = vadd.f32 %v2215, %v2551
        %v2744 = vadd.f32 %v2216, %v2553
        %v2745 = vadd.f32 %v2217, %v2557
        %v2746 = vadd.f32 %v2218, %v2559
        %v2747 = vadd.f32 %v2219, %v2561
        %v2748 = vadd.f32 %v2220, %v2563
        %v2749 = vadd.f32 %v2221, %v2567
        %v2750 = vadd.f32 %v2222, %v2569
        %v2751 = vadd.f32 %v2223, %v2571
        %v2752 = vadd.f32 %v2224, %v2573
        %v2753 = vadd.f32 %v2225, %v2577
        %v2754 = vadd.f32 %v2226, %v2579
        %v2755 = vadd.f32 %v2227, %v2581
        %v2756 = vadd.f32 %v2228, %v2583
        %v2757 = vadd.f32 %v2229, %v2587
        %v2758 = vadd.f32 %v2230, %v2589
        %v2759 = vadd.f32 %v2231, %v2591
        %v2760 = vadd.f32 %v2232, %v2593
        %v2761 = vadd.f32 %v2233, %v2597
        %v2762 = vadd.f32 %v2234, %v2599
        %v2763 = vadd.f32 %v2235, %v2601
        %v2764 = vadd.f32 %v2236, %v2603
        %v2765 = vadd.f32 %v2237, %v2607
        %v2766 = vadd.f32 %v2238, %v2609
        %v2767 = vadd.f32 %v2239, %v2611
        %v2768 = vadd.f32 %v2240, %v2613
        %v2769 = vadd.f32 %v2241, %v2617
        %v2770 = vadd.f32 %v2242, %v2619
        %v2771 = vadd.f32 %v2243, %v2621
        %v2772 = vadd.f32 %v2244, %v2623
        %v2773 = vadd.f32 %v2245, %v2627
        %v2774 = vadd.f32 %v2246, %v2629
        %v2775 = vadd.f32 %v2247, %v2631
        %v2776 = vadd.f32 %v2248, %v2633
        %v2777 = vadd.f32 %v2249, %v2637
        %v2778 = vadd.f32 %v2250, %v2639
        %v2779 = vadd.f32 %v2251, %v2641
        %v2780 = vadd.f32 %v2252, %v2643
        %v2781 = vadd.f32 %v2253, %v2647
        %v2782 = vadd.f32 %v2254, %v2649
        %v2783 = vadd.f32 %v2255, %v2651
        %v2784 = vadd.f32 %v2256, %v2653
        %v2785 = vadd.f32 %v2257, %v2657
        %v2786 = vadd.f32 %v2258, %v2659
        %v2787 = vadd.f32 %v2259, %v2661
        %v2788 = vadd.f32 %v2260, %v2663
        %v2789 = vadd.f32 %v2261, %v2667
        %v2790 = vadd.f32 %v2262, %v2669
        %v2791 = vadd.f32 %v2263, %v2671
        %v2792 = vadd.f32 %v2264, %v2673
        %v2793 = vadd.f32 %v2265, %v2677
        %v2794 = vadd.f32 %v2266, %v2679
        %v2795 = vadd.f32 %v2267, %v2681
        %v2796 = vadd.f32 %v2268, %v2683
        %s2797 = scalar_lea.vmem %s1, 512
        %v2798 = vld [vmem:[%s2797] sm:$0xff]
        %v2799 = vld [vmem:[%s2797 + $0x8] sm:$0xff]
        %v2800 = vld [vmem:[%s2797 + $0x10] sm:$0xff]
        %v2801 = vld [vmem:[%s2797 + $0x18] sm:$0xff]
        %v2802 = vld [vmem:[%s2797 + $0x20] sm:$0xff]
        %v2803 = vld [vmem:[%s2797 + $0x28] sm:$0xff]
        %v2804 = vld [vmem:[%s2797 + $0x30] sm:$0xff]
        %v2805 = vld [vmem:[%s2797 + $0x38] sm:$0xff]
        %v2806 = vld [vmem:[%s2797 + $0x40] sm:$0xff]
        %v2807 = vld [vmem:[%s2797 + $0x48] sm:$0xff]
        %v2808 = vld [vmem:[%s2797 + $0x50] sm:$0xff]
        %v2809 = vld [vmem:[%s2797 + $0x58] sm:$0xff]
        %v2810 = vld [vmem:[%s2797 + $0x60] sm:$0xff]
        %v2811 = vld [vmem:[%s2797 + $0x68] sm:$0xff]
        %v2812 = vld [vmem:[%s2797 + $0x70] sm:$0xff]
        %v2813 = vld [vmem:[%s2797 + $0x78] sm:$0xff]
        %v2816 = vunpack.c.l.b16 %v746
        %v2817 = vunpack.c.l.b16 %v747
        %v2818 = vpack.c.b16 %v2817, %v2816
        %v2836 = vunpack.c.l.b16 %v2798
        %v2837 = vunpack.c.h.b16 %v2798
        %v2838 = vunpack.c.l.b16 %v2799
        %v2839 = vunpack.c.h.b16 %v2799
        %v2840 = vunpack.c.l.b16 %v2800
        %v2841 = vunpack.c.h.b16 %v2800
        %v2842 = vunpack.c.l.b16 %v2801
        %v2843 = vunpack.c.h.b16 %v2801
        %v2844 = vunpack.c.l.b16 %v2802
        %v2845 = vunpack.c.h.b16 %v2802
        %v2846 = vunpack.c.l.b16 %v2803
        %v2847 = vunpack.c.h.b16 %v2803
        %v2848 = vunpack.c.l.b16 %v2804
        %v2849 = vunpack.c.h.b16 %v2804
        %v2850 = vunpack.c.l.b16 %v2805
        %v2851 = vunpack.c.h.b16 %v2805
        %v2852 = vunpack.c.l.b16 %v2806
        %v2853 = vunpack.c.h.b16 %v2806
        %v2854 = vunpack.c.l.b16 %v2807
        %v2855 = vunpack.c.h.b16 %v2807
        %v2856 = vunpack.c.l.b16 %v2808
        %v2857 = vunpack.c.h.b16 %v2808
        %v2858 = vunpack.c.l.b16 %v2809
        %v2859 = vunpack.c.h.b16 %v2809
        %v2860 = vunpack.c.l.b16 %v2810
        %v2861 = vunpack.c.h.b16 %v2810
        %v2862 = vunpack.c.l.b16 %v2811
        %v2863 = vunpack.c.h.b16 %v2811
        %v2864 = vunpack.c.l.b16 %v2812
        %v2865 = vunpack.c.h.b16 %v2812
        %v2866 = vunpack.c.l.b16 %v2813
        %v2867 = vunpack.c.h.b16 %v2813
        %v2868 = vpack.c.b16 %v2838, %v2836
        %v2869 = vpack.c.b16 %v2839, %v2837
        %v2870 = vpack.c.b16 %v2842, %v2840
        %v2871 = vpack.c.b16 %v2843, %v2841
        %v2872 = vpack.c.b16 %v2846, %v2844
        %v2873 = vpack.c.b16 %v2847, %v2845
        %v2874 = vpack.c.b16 %v2850, %v2848
        %v2875 = vpack.c.b16 %v2851, %v2849
        %v2876 = vpack.c.b16 %v2854, %v2852
        %v2877 = vpack.c.b16 %v2855, %v2853
        %v2878 = vpack.c.b16 %v2858, %v2856
        %v2879 = vpack.c.b16 %v2859, %v2857
        %v2880 = vpack.c.b16 %v2862, %v2860
        %v2881 = vpack.c.b16 %v2863, %v2861
        %v2882 = vpack.c.b16 %v2866, %v2864
        %v2883 = vpack.c.b16 %v2867, %v2865
        %2900 = vmatprep.subr.bf16.mxu0 %v2869
        %2901 = vmatpush1.bf16.msra.mxu0 %v2868
        %2902 = vmatprep.subr.bf16.mxu0 %v2871
        %2903 = vmatpush1.bf16.msra.mxu0 %v2870
        %2904 = vmatprep.subr.bf16.mxu0 %v2873
        %2905 = vmatpush1.bf16.msra.mxu0 %v2872
        %2906 = vmatprep.subr.bf16.mxu0 %v2875
        %2907 = vmatpush1.bf16.msra.mxu0 %v2874
        %2908 = vmatprep.subr.bf16.mxu0 %v2877
        %2909 = vmatpush1.bf16.msra.mxu0 %v2876
        %2910 = vmatprep.subr.bf16.mxu0 %v2879
        %2911 = vmatpush1.bf16.msra.mxu0 %v2878
        %2912 = vmatprep.subr.bf16.mxu0 %v2881
        %2913 = vmatpush1.bf16.msra.mxu0 %v2880
        %2914 = vmatprep.subr.bf16.mxu0 %v2883
        %2915 = vmatpush1.bf16.msra.mxu0 %v2882
        %2916 = vmatprep.subr.bf16.mxu0 0
        %2917 = vmatpush1.bf16.msra.mxu0 0
        %2918 = vmatprep.subr.bf16.mxu0 0
        %2919 = vmatpush1.bf16.msra.mxu0 0
        %2920 = vmatprep.subr.bf16.mxu0 0
        %2921 = vmatpush1.bf16.msra.mxu0 0
        %2922 = vmatprep.subr.bf16.mxu0 0
        %2923 = vmatpush1.bf16.msra.mxu0 0
        %2924 = vmatprep.subr.bf16.mxu0 0
        %2925 = vmatpush1.bf16.msra.mxu0 0
        %2926 = vmatprep.subr.bf16.mxu0 0
        %2927 = vmatpush1.bf16.msra.mxu0 0
        %2928 = vmatprep.subr.bf16.mxu0 0
        %2929 = vmatpush1.bf16.msra.mxu0 0
        %2930 = vmatprep.subr.bf16.mxu0 0
        %2931 = vmatpush1.bf16.msra.mxu0 0
        %2932 = vmatprep.mubr.bf16.mxu0 0
        %2933 = vmatmul.mubr.bf16.gmra.mrb[0].mxu0 %v896
        %v2934 = vpop.f32.mrb[0].mxu0
        %v2935 = vadd.f32 0.0, %v2934
        %v2936 = vpop.f32.mrb[0].mxu0
        %v2937 = vadd.f32 0.0, %v2936
        %v2938 = vpop.f32.mrb[0].mxu0
        %v2939 = vadd.f32 0.0, %v2938
        %v2940 = vpop.f32.mrb[0].mxu0
        %v2941 = vadd.f32 0.0, %v2940
        %2942 = vmatprep.mubr.bf16.mxu0 0
        %2943 = vmatmul.mubr.bf16.gmra.mrb[0].mxu0 %v897
        %v2944 = vpop.f32.mrb[0].mxu0
        %v2945 = vadd.f32 0.0, %v2944
        %v2946 = vpop.f32.mrb[0].mxu0
        %v2947 = vadd.f32 0.0, %v2946
        %v2948 = vpop.f32.mrb[0].mxu0
        %v2949 = vadd.f32 0.0, %v2948
        %v2950 = vpop.f32.mrb[0].mxu0
        %v2951 = vadd.f32 0.0, %v2950
        %2952 = vmatprep.mubr.bf16.mxu0 0
        %2953 = vmatmul.mubr.bf16.gmra.mrb[0].mxu0 %v898
        %v2954 = vpop.f32.mrb[0].mxu0
        %v2955 = vadd.f32 0.0, %v2954
        %v2956 = vpop.f32.mrb[0].mxu0
        %v2957 = vadd.f32 0.0, %v2956
        %v2958 = vpop.f32.mrb[0].mxu0
        %v2959 = vadd.f32 0.0, %v2958
        %v2960 = vpop.f32.mrb[0].mxu0
        %v2961 = vadd.f32 0.0, %v2960
        %2962 = vmatprep.mubr.bf16.mxu0 0
        %2963 = vmatmul.mubr.bf16.gmra.mrb[0].mxu0 %v899
        %v2964 = vpop.f32.mrb[0].mxu0
        %v2965 = vadd.f32 0.0, %v2964
        %v2966 = vpop.f32.mrb[0].mxu0
        %v2967 = vadd.f32 0.0, %v2966
        %v2968 = vpop.f32.mrb[0].mxu0
        %v2969 = vadd.f32 0.0, %v2968
        %v2970 = vpop.f32.mrb[0].mxu0
        %v2971 = vadd.f32 0.0, %v2970
        %2972 = vmatprep.mubr.bf16.mxu0 0
        %2973 = vmatmul.mubr.bf16.gmra.mrb[0].mxu0 %v900
        %v2974 = vpop.f32.mrb[0].mxu0
        %v2975 = vadd.f32 0.0, %v2974
        %v2976 = vpop.f32.mrb[0].mxu0
        %v2977 = vadd.f32 0.0, %v2976
        %v2978 = vpop.f32.mrb[0].mxu0
        %v2979 = vadd.f32 0.0, %v2978
        %v2980 = vpop.f32.mrb[0].mxu0
        %v2981 = vadd.f32 0.0, %v2980
        %2982 = vmatprep.mubr.bf16.mxu0 0
        %2983 = vmatmul.mubr.bf16.gmra.mrb[0].mxu0 %v901
        %v2984 = vpop.f32.mrb[0].mxu0
        %v2985 = vadd.f32 0.0, %v2984
        %v2986 = vpop.f32.mrb[0].mxu0
        %v2987 = vadd.f32 0.0, %v2986
        %v2988 = vpop.f32.mrb[0].mxu0
        %v2989 = vadd.f32 0.0, %v2988
        %v2990 = vpop.f32.mrb[0].mxu0
        %v2991 = vadd.f32 0.0, %v2990
        %2992 = vmatprep.mubr.bf16.mxu0 0
        %2993 = vmatmul.mubr.bf16.gmra.mrb[0].mxu0 %v902
        %v2994 = vpop.f32.mrb[0].mxu0
        %v2995 = vadd.f32 0.0, %v2994
        %v2996 = vpop.f32.mrb[0].mxu0
        %v2997 = vadd.f32 0.0, %v2996
        %v2998 = vpop.f32.mrb[0].mxu0
        %v2999 = vadd.f32 0.0, %v2998
        %v3000 = vpop.f32.mrb[0].mxu0
        %v3001 = vadd.f32 0.0, %v3000
        %3002 = vmatprep.mubr.bf16.mxu0 0
        %3003 = vmatmul.mubr.bf16.gmra.mrb[0].mxu0 %v903
        %v3004 = vpop.f32.mrb[0].mxu0
        %v3005 = vadd.f32 0.0, %v3004
        %v3006 = vpop.f32.mrb[0].mxu0
        %v3007 = vadd.f32 0.0, %v3006
        %v3008 = vpop.f32.mrb[0].mxu0
        %v3009 = vadd.f32 0.0, %v3008
        %v3010 = vpop.f32.mrb[0].mxu0
        %v3011 = vadd.f32 0.0, %v3010
        %3012 = vmatprep.mubr.bf16.mxu0 0
        %3013 = vmatmul.mubr.bf16.gmra.mrb[0].mxu0 %v904
        %v3014 = vpop.f32.mrb[0].mxu0
        %v3015 = vadd.f32 0.0, %v3014
        %v3016 = vpop.f32.mrb[0].mxu0
        %v3017 = vadd.f32 0.0, %v3016
        %v3018 = vpop.f32.mrb[0].mxu0
        %v3019 = vadd.f32 0.0, %v3018
        %v3020 = vpop.f32.mrb[0].mxu0
        %v3021 = vadd.f32 0.0, %v3020
        %3022 = vmatprep.mubr.bf16.mxu0 0
        %3023 = vmatmul.mubr.bf16.gmra.mrb[0].mxu0 %v905
        %v3024 = vpop.f32.mrb[0].mxu0
        %v3025 = vadd.f32 0.0, %v3024
        %v3026 = vpop.f32.mrb[0].mxu0
        %v3027 = vadd.f32 0.0, %v3026
        %v3028 = vpop.f32.mrb[0].mxu0
        %v3029 = vadd.f32 0.0, %v3028
        %v3030 = vpop.f32.mrb[0].mxu0
        %v3031 = vadd.f32 0.0, %v3030
        %3032 = vmatprep.mubr.bf16.mxu0 0
        %3033 = vmatmul.mubr.bf16.gmra.mrb[0].mxu0 %v906
        %v3034 = vpop.f32.mrb[0].mxu0
        %v3035 = vadd.f32 0.0, %v3034
        %v3036 = vpop.f32.mrb[0].mxu0
        %v3037 = vadd.f32 0.0, %v3036
        %v3038 = vpop.f32.mrb[0].mxu0
        %v3039 = vadd.f32 0.0, %v3038
        %v3040 = vpop.f32.mrb[0].mxu0
        %v3041 = vadd.f32 0.0, %v3040
        %3042 = vmatprep.mubr.bf16.mxu0 0
        %3043 = vmatmul.mubr.bf16.gmra.mrb[0].mxu0 %v907
        %v3044 = vpop.f32.mrb[0].mxu0
        %v3045 = vadd.f32 0.0, %v3044
        %v3046 = vpop.f32.mrb[0].mxu0
        %v3047 = vadd.f32 0.0, %v3046
        %v3048 = vpop.f32.mrb[0].mxu0
        %v3049 = vadd.f32 0.0, %v3048
        %v3050 = vpop.f32.mrb[0].mxu0
        %v3051 = vadd.f32 0.0, %v3050
        %3052 = vmatprep.mubr.bf16.mxu0 0
        %3053 = vmatmul.mubr.bf16.gmra.mrb[0].mxu0 %v908
        %v3054 = vpop.f32.mrb[0].mxu0
        %v3055 = vadd.f32 0.0, %v3054
        %v3056 = vpop.f32.mrb[0].mxu0
        %v3057 = vadd.f32 0.0, %v3056
        %v3058 = vpop.f32.mrb[0].mxu0
        %v3059 = vadd.f32 0.0, %v3058
        %v3060 = vpop.f32.mrb[0].mxu0
        %v3061 = vadd.f32 0.0, %v3060
        %3062 = vmatprep.mubr.bf16.mxu0 0
        %3063 = vmatmul.mubr.bf16.gmra.mrb[0].mxu0 %v909
        %v3064 = vpop.f32.mrb[0].mxu0
        %v3065 = vadd.f32 0.0, %v3064
        %v3066 = vpop.f32.mrb[0].mxu0
        %v3067 = vadd.f32 0.0, %v3066
        %v3068 = vpop.f32.mrb[0].mxu0
        %v3069 = vadd.f32 0.0, %v3068
        %v3070 = vpop.f32.mrb[0].mxu0
        %v3071 = vadd.f32 0.0, %v3070
        %3072 = vmatprep.mubr.bf16.mxu0 0
        %3073 = vmatmul.mubr.bf16.gmra.mrb[0].mxu0 %v910
        %v3074 = vpop.f32.mrb[0].mxu0
        %v3075 = vadd.f32 0.0, %v3074
        %v3076 = vpop.f32.mrb[0].mxu0
        %v3077 = vadd.f32 0.0, %v3076
        %v3078 = vpop.f32.mrb[0].mxu0
        %v3079 = vadd.f32 0.0, %v3078
        %v3080 = vpop.f32.mrb[0].mxu0
        %v3081 = vadd.f32 0.0, %v3080
        %3082 = vmatprep.mubr.bf16.mxu0 0
        %3083 = vmatmul.mubr.bf16.gmra.mrb[0].mxu0 %v911
        %v3084 = vpop.f32.mrb[0].mxu0
        %v3085 = vadd.f32 0.0, %v3084
        %v3086 = vpop.f32.mrb[0].mxu0
        %v3087 = vadd.f32 0.0, %v3086
        %v3088 = vpop.f32.mrb[0].mxu0
        %v3089 = vadd.f32 0.0, %v3088
        %v3090 = vpop.f32.mrb[0].mxu0
        %v3091 = vadd.f32 0.0, %v3090
        %3092 = vmatprep.mubr.bf16.mxu0 0
        %3093 = vmatmul.mubr.bf16.gmra.mrb[0].mxu0 %v912
        %v3094 = vpop.f32.mrb[0].mxu0
        %v3095 = vadd.f32 0.0, %v3094
        %v3096 = vpop.f32.mrb[0].mxu0
        %v3097 = vadd.f32 0.0, %v3096
        %v3098 = vpop.f32.mrb[0].mxu0
        %v3099 = vadd.f32 0.0, %v3098
        %v3100 = vpop.f32.mrb[0].mxu0
        %v3101 = vadd.f32 0.0, %v3100
        %3102 = vmatprep.mubr.bf16.mxu0 0
        %3103 = vmatmul.mubr.bf16.gmra.mrb[0].mxu0 %v913
        %v3104 = vpop.f32.mrb[0].mxu0
        %v3105 = vadd.f32 0.0, %v3104
        %v3106 = vpop.f32.mrb[0].mxu0
        %v3107 = vadd.f32 0.0, %v3106
        %v3108 = vpop.f32.mrb[0].mxu0
        %v3109 = vadd.f32 0.0, %v3108
        %v3110 = vpop.f32.mrb[0].mxu0
        %v3111 = vadd.f32 0.0, %v3110
        %3112 = vmatprep.mubr.bf16.mxu0 0
        %3113 = vmatmul.mubr.bf16.gmra.mrb[0].mxu0 %v914
        %v3114 = vpop.f32.mrb[0].mxu0
        %v3115 = vadd.f32 0.0, %v3114
        %v3116 = vpop.f32.mrb[0].mxu0
        %v3117 = vadd.f32 0.0, %v3116
        %v3118 = vpop.f32.mrb[0].mxu0
        %v3119 = vadd.f32 0.0, %v3118
        %v3120 = vpop.f32.mrb[0].mxu0
        %v3121 = vadd.f32 0.0, %v3120
        %3122 = vmatprep.mubr.bf16.mxu0 0
        %3123 = vmatmul.mubr.bf16.gmra.mrb[0].mxu0 %v915
        %v3124 = vpop.f32.mrb[0].mxu0
        %v3125 = vadd.f32 0.0, %v3124
        %v3126 = vpop.f32.mrb[0].mxu0
        %v3127 = vadd.f32 0.0, %v3126
        %v3128 = vpop.f32.mrb[0].mxu0
        %v3129 = vadd.f32 0.0, %v3128
        %v3130 = vpop.f32.mrb[0].mxu0
        %v3131 = vadd.f32 0.0, %v3130
        %3132 = vmatprep.mubr.bf16.mxu0 0
        %3133 = vmatmul.mubr.bf16.gmra.mrb[0].mxu0 %v916
        %v3134 = vpop.f32.mrb[0].mxu0
        %v3135 = vadd.f32 0.0, %v3134
        %v3136 = vpop.f32.mrb[0].mxu0
        %v3137 = vadd.f32 0.0, %v3136
        %v3138 = vpop.f32.mrb[0].mxu0
        %v3139 = vadd.f32 0.0, %v3138
        %v3140 = vpop.f32.mrb[0].mxu0
        %v3141 = vadd.f32 0.0, %v3140
        %3142 = vmatprep.mubr.bf16.mxu0 0
        %3143 = vmatmul.mubr.bf16.gmra.mrb[0].mxu0 %v917
        %v3144 = vpop.f32.mrb[0].mxu0
        %v3145 = vadd.f32 0.0, %v3144
        %v3146 = vpop.f32.mrb[0].mxu0
        %v3147 = vadd.f32 0.0, %v3146
        %v3148 = vpop.f32.mrb[0].mxu0
        %v3149 = vadd.f32 0.0, %v3148
        %v3150 = vpop.f32.mrb[0].mxu0
        %v3151 = vadd.f32 0.0, %v3150
        %3152 = vmatprep.mubr.bf16.mxu0 0
        %3153 = vmatmul.mubr.bf16.gmra.mrb[0].mxu0 %v918
        %v3154 = vpop.f32.mrb[0].mxu0
        %v3155 = vadd.f32 0.0, %v3154
        %v3156 = vpop.f32.mrb[0].mxu0
        %v3157 = vadd.f32 0.0, %v3156
        %v3158 = vpop.f32.mrb[0].mxu0
        %v3159 = vadd.f32 0.0, %v3158
        %v3160 = vpop.f32.mrb[0].mxu0
        %v3161 = vadd.f32 0.0, %v3160
        %3162 = vmatprep.mubr.bf16.mxu0 0
        %3163 = vmatmul.mubr.bf16.gmra.mrb[0].mxu0 %v919
        %v3164 = vpop.f32.mrb[0].mxu0
        %v3165 = vadd.f32 0.0, %v3164
        %v3166 = vpop.f32.mrb[0].mxu0
        %v3167 = vadd.f32 0.0, %v3166
        %v3168 = vpop.f32.mrb[0].mxu0
        %v3169 = vadd.f32 0.0, %v3168
        %v3170 = vpop.f32.mrb[0].mxu0
        %v3171 = vadd.f32 0.0, %v3170
        %3172 = vmatprep.mubr.bf16.mxu0 0
        %3173 = vmatmul.mubr.bf16.gmra.mrb[0].mxu0 %v920
        %v3174 = vpop.f32.mrb[0].mxu0
        %v3175 = vadd.f32 0.0, %v3174
        %v3176 = vpop.f32.mrb[0].mxu0
        %v3177 = vadd.f32 0.0, %v3176
        %v3178 = vpop.f32.mrb[0].mxu0
        %v3179 = vadd.f32 0.0, %v3178
        %v3180 = vpop.f32.mrb[0].mxu0
        %v3181 = vadd.f32 0.0, %v3180
        %3182 = vmatprep.mubr.bf16.mxu0 0
        %3183 = vmatmul.mubr.bf16.gmra.mrb[0].mxu0 %v1762
        %v3184 = vpop.f32.mrb[0].mxu0
        %v3185 = vadd.f32 0.0, %v3184
        %v3186 = vpop.f32.mrb[0].mxu0
        %v3187 = vadd.f32 0.0, %v3186
        %v3188 = vpop.f32.mrb[0].mxu0
        %v3189 = vadd.f32 0.0, %v3188
        %v3190 = vpop.f32.mrb[0].mxu0
        %v3191 = vadd.f32 0.0, %v3190
        %3192 = vmatprep.mubr.bf16.mxu0 0
        %3193 = vmatmul.mubr.bf16.gmra.mrb[0].mxu0 %v2290
        %v3194 = vpop.f32.mrb[0].mxu0
        %v3195 = vadd.f32 0.0, %v3194
        %v3196 = vpop.f32.mrb[0].mxu0
        %v3197 = vadd.f32 0.0, %v3196
        %v3198 = vpop.f32.mrb[0].mxu0
        %v3199 = vadd.f32 0.0, %v3198
        %v3200 = vpop.f32.mrb[0].mxu0
        %v3201 = vadd.f32 0.0, %v3200
        %3202 = vmatprep.mubr.bf16.mxu0 0
        %3203 = vmatmul.mubr.bf16.gmra.mrb[0].mxu0 %v2818
        %v3204 = vpop.f32.mrb[0].mxu0
        %v3205 = vadd.f32 0.0, %v3204
        %v3206 = vpop.f32.mrb[0].mxu0
        %v3207 = vadd.f32 0.0, %v3206
        %v3208 = vpop.f32.mrb[0].mxu0
        %v3209 = vadd.f32 0.0, %v3208
        %v3210 = vpop.f32.mrb[0].mxu0
        %v3211 = vadd.f32 0.0, %v3210
        %3212 = vdwg.mxu0
        %v3213 = vadd.f32 %v2685, %v2935
        %v3214 = vadd.f32 %v2686, %v2937
        %v3215 = vadd.f32 %v2687, %v2939
        %v3216 = vadd.f32 %v2688, %v2941
        %v3217 = vadd.f32 %v2689, %v2945
        %v3218 = vadd.f32 %v2690, %v2947
        %v3219 = vadd.f32 %v2691, %v2949
        %v3220 = vadd.f32 %v2692, %v2951
        %v3221 = vadd.f32 %v2693, %v2955
        %v3222 = vadd.f32 %v2694, %v2957
        %v3223 = vadd.f32 %v2695, %v2959
        %v3224 = vadd.f32 %v2696, %v2961
        %v3225 = vadd.f32 %v2697, %v2965
        %v3226 = vadd.f32 %v2698, %v2967
        %v3227 = vadd.f32 %v2699, %v2969
        %v3228 = vadd.f32 %v2700, %v2971
        %v3229 = vadd.f32 %v2701, %v2975
        %v3230 = vadd.f32 %v2702, %v2977
        %v3231 = vadd.f32 %v2703, %v2979
        %v3232 = vadd.f32 %v2704, %v2981
        %v3233 = vadd.f32 %v2705, %v2985
        %v3234 = vadd.f32 %v2706, %v2987
        %v3235 = vadd.f32 %v2707, %v2989
        %v3236 = vadd.f32 %v2708, %v2991
        %v3237 = vadd.f32 %v2709, %v2995
        %v3238 = vadd.f32 %v2710, %v2997
        %v3239 = vadd.f32 %v2711, %v2999
        %v3240 = vadd.f32 %v2712, %v3001
        %v3241 = vadd.f32 %v2713, %v3005
        %v3242 = vadd.f32 %v2714, %v3007
        %v3243 = vadd.f32 %v2715, %v3009
        %v3244 = vadd.f32 %v2716, %v3011
        %v3245 = vadd.f32 %v2717, %v3015
        %v3246 = vadd.f32 %v2718, %v3017
        %v3247 = vadd.f32 %v2719, %v3019
        %v3248 = vadd.f32 %v2720, %v3021
        %v3249 = vadd.f32 %v2721, %v3025
        %v3250 = vadd.f32 %v2722, %v3027
        %v3251 = vadd.f32 %v2723, %v3029
        %v3252 = vadd.f32 %v2724, %v3031
        %v3253 = vadd.f32 %v2725, %v3035
        %v3254 = vadd.f32 %v2726, %v3037
        %v3255 = vadd.f32 %v2727, %v3039
        %v3256 = vadd.f32 %v2728, %v3041
        %v3257 = vadd.f32 %v2729, %v3045
        %v3258 = vadd.f32 %v2730, %v3047
        %v3259 = vadd.f32 %v2731, %v3049
        %v3260 = vadd.f32 %v2732, %v3051
        %v3261 = vadd.f32 %v2733, %v3055
        %v3262 = vadd.f32 %v2734, %v3057
        %v3263 = vadd.f32 %v2735, %v3059
        %v3264 = vadd.f32 %v2736, %v3061
        %v3265 = vadd.f32 %v2737, %v3065
        %v3266 = vadd.f32 %v2738, %v3067
        %v3267 = vadd.f32 %v2739, %v3069
        %v3268 = vadd.f32 %v2740, %v3071
        %v3269 = vadd.f32 %v2741, %v3075
        %v3270 = vadd.f32 %v2742, %v3077
        %v3271 = vadd.f32 %v2743, %v3079
        %v3272 = vadd.f32 %v2744, %v3081
        %v3273 = vadd.f32 %v2745, %v3085
        %v3274 = vadd.f32 %v2746, %v3087
        %v3275 = vadd.f32 %v2747, %v3089
        %v3276 = vadd.f32 %v2748, %v3091
        %v3277 = vadd.f32 %v2749, %v3095
        %v3278 = vadd.f32 %v2750, %v3097
        %v3279 = vadd.f32 %v2751, %v3099
        %v3280 = vadd.f32 %v2752, %v3101
        %v3281 = vadd.f32 %v2753, %v3105
        %v3282 = vadd.f32 %v2754, %v3107
        %v3283 = vadd.f32 %v2755, %v3109
        %v3284 = vadd.f32 %v2756, %v3111
        %v3285 = vadd.f32 %v2757, %v3115
        %v3286 = vadd.f32 %v2758, %v3117
        %v3287 = vadd.f32 %v2759, %v3119
        %v3288 = vadd.f32 %v2760, %v3121
        %v3289 = vadd.f32 %v2761, %v3125
        %v3290 = vadd.f32 %v2762, %v3127
        %v3291 = vadd.f32 %v2763, %v3129
        %v3292 = vadd.f32 %v2764, %v3131
        %v3293 = vadd.f32 %v2765, %v3135
        %v3294 = vadd.f32 %v2766, %v3137
        %v3295 = vadd.f32 %v2767, %v3139
        %v3296 = vadd.f32 %v2768, %v3141
        %v3297 = vadd.f32 %v2769, %v3145
        %v3298 = vadd.f32 %v2770, %v3147
        %v3299 = vadd.f32 %v2771, %v3149
        %v3300 = vadd.f32 %v2772, %v3151
        %v3301 = vadd.f32 %v2773, %v3155
        %v3302 = vadd.f32 %v2774, %v3157
        %v3303 = vadd.f32 %v2775, %v3159
        %v3304 = vadd.f32 %v2776, %v3161
        %v3305 = vadd.f32 %v2777, %v3165
        %v3306 = vadd.f32 %v2778, %v3167
        %v3307 = vadd.f32 %v2779, %v3169
        %v3308 = vadd.f32 %v2780, %v3171
        %v3309 = vadd.f32 %v2781, %v3175
        %v3310 = vadd.f32 %v2782, %v3177
        %v3311 = vadd.f32 %v2783, %v3179
        %v3312 = vadd.f32 %v2784, %v3181
        %v3313 = vadd.f32 %v2785, %v3185
        %v3314 = vadd.f32 %v2786, %v3187
        %v3315 = vadd.f32 %v2787, %v3189
        %v3316 = vadd.f32 %v2788, %v3191
        %v3317 = vadd.f32 %v2789, %v3195
        %v3318 = vadd.f32 %v2790, %v3197
        %v3319 = vadd.f32 %v2791, %v3199
        %v3320 = vadd.f32 %v2792, %v3201
        %v3321 = vadd.f32 %v2793, %v3205
        %v3322 = vadd.f32 %v2794, %v3207
        %v3323 = vadd.f32 %v2795, %v3209
        %v3324 = vadd.f32 %v2796, %v3211
        %v3325 = vld [vmem:[%s2] sm:$0x3]
        %v3327 = vlaneseq
        %v3328 = vshrl.u32 %v3327, 7
        %v3329 = vsub.s32 0, %v3328
        %v3330 = vrot.slane %v3325, %v3329
        %v3331 = vlaneseq
        %v3332 = vshrl.u32 %v3331, 7
        %v3333 = vsub.s32 1, %v3332
        %v3334 = vrot.slane %v3325, %v3333
        %v3337 = vadd.f32 %v3213, %v3330
        %v3338 = vadd.f32 %v3214, %v3334
        %v3339 = vadd.f32 %v3215, %v3330
        %v3340 = vadd.f32 %v3216, %v3334
        %v3341 = vadd.f32 %v3217, %v3330
        %v3342 = vadd.f32 %v3218, %v3334
        %v3343 = vadd.f32 %v3219, %v3330
        %v3344 = vadd.f32 %v3220, %v3334
        %v3345 = vadd.f32 %v3221, %v3330
        %v3346 = vadd.f32 %v3222, %v3334
        %v3347 = vadd.f32 %v3223, %v3330
        %v3348 = vadd.f32 %v3224, %v3334
        %v3349 = vadd.f32 %v3225, %v3330
        %v3350 = vadd.f32 %v3226, %v3334
        %v3351 = vadd.f32 %v3227, %v3330
        %v3352 = vadd.f32 %v3228, %v3334
        %v3353 = vadd.f32 %v3229, %v3330
        %v3354 = vadd.f32 %v3230, %v3334
        %v3355 = vadd.f32 %v3231, %v3330
        %v3356 = vadd.f32 %v3232, %v3334
        %v3357 = vadd.f32 %v3233, %v3330
        %v3358 = vadd.f32 %v3234, %v3334
        %v3359 = vadd.f32 %v3235, %v3330
        %v3360 = vadd.f32 %v3236, %v3334
        %v3361 = vadd.f32 %v3237, %v3330
        %v3362 = vadd.f32 %v3238, %v3334
        %v3363 = vadd.f32 %v3239, %v3330
        %v3364 = vadd.f32 %v3240, %v3334
        %v3365 = vadd.f32 %v3241, %v3330
        %v3366 = vadd.f32 %v3242, %v3334
        %v3367 = vadd.f32 %v3243, %v3330
        %v3368 = vadd.f32 %v3244, %v3334
        %v3369 = vadd.f32 %v3245, %v3330
        %v3370 = vadd.f32 %v3246, %v3334
        %v3371 = vadd.f32 %v3247, %v3330
        %v3372 = vadd.f32 %v3248, %v3334
        %v3373 = vadd.f32 %v3249, %v3330
        %v3374 = vadd.f32 %v3250, %v3334
        %v3375 = vadd.f32 %v3251, %v3330
        %v3376 = vadd.f32 %v3252, %v3334
        %v3377 = vadd.f32 %v3253, %v3330
        %v3378 = vadd.f32 %v3254, %v3334
        %v3379 = vadd.f32 %v3255, %v3330
        %v3380 = vadd.f32 %v3256, %v3334
        %v3381 = vadd.f32 %v3257, %v3330
        %v3382 = vadd.f32 %v3258, %v3334
        %v3383 = vadd.f32 %v3259, %v3330
        %v3384 = vadd.f32 %v3260, %v3334
        %v3385 = vadd.f32 %v3261, %v3330
        %v3386 = vadd.f32 %v3262, %v3334
        %v3387 = vadd.f32 %v3263, %v3330
        %v3388 = vadd.f32 %v3264, %v3334
        %v3389 = vadd.f32 %v3265, %v3330
        %v3390 = vadd.f32 %v3266, %v3334
        %v3391 = vadd.f32 %v3267, %v3330
        %v3392 = vadd.f32 %v3268, %v3334
        %v3393 = vadd.f32 %v3269, %v3330
        %v3394 = vadd.f32 %v3270, %v3334
        %v3395 = vadd.f32 %v3271, %v3330
        %v3396 = vadd.f32 %v3272, %v3334
        %v3397 = vadd.f32 %v3273, %v3330
        %v3398 = vadd.f32 %v3274, %v3334
        %v3399 = vadd.f32 %v3275, %v3330
        %v3400 = vadd.f32 %v3276, %v3334
        %v3401 = vadd.f32 %v3277, %v3330
        %v3402 = vadd.f32 %v3278, %v3334
        %v3403 = vadd.f32 %v3279, %v3330
        %v3404 = vadd.f32 %v3280, %v3334
        %v3405 = vadd.f32 %v3281, %v3330
        %v3406 = vadd.f32 %v3282, %v3334
        %v3407 = vadd.f32 %v3283, %v3330
        %v3408 = vadd.f32 %v3284, %v3334
        %v3409 = vadd.f32 %v3285, %v3330
        %v3410 = vadd.f32 %v3286, %v3334
        %v3411 = vadd.f32 %v3287, %v3330
        %v3412 = vadd.f32 %v3288, %v3334
        %v3413 = vadd.f32 %v3289, %v3330
        %v3414 = vadd.f32 %v3290, %v3334
        %v3415 = vadd.f32 %v3291, %v3330
        %v3416 = vadd.f32 %v3292, %v3334
        %v3417 = vadd.f32 %v3293, %v3330
        %v3418 = vadd.f32 %v3294, %v3334
        %v3419 = vadd.f32 %v3295, %v3330
        %v3420 = vadd.f32 %v3296, %v3334
        %v3421 = vadd.f32 %v3297, %v3330
        %v3422 = vadd.f32 %v3298, %v3334
        %v3423 = vadd.f32 %v3299, %v3330
        %v3424 = vadd.f32 %v3300, %v3334
        %v3425 = vadd.f32 %v3301, %v3330
        %v3426 = vadd.f32 %v3302, %v3334
        %v3427 = vadd.f32 %v3303, %v3330
        %v3428 = vadd.f32 %v3304, %v3334
        %v3429 = vadd.f32 %v3305, %v3330
        %v3430 = vadd.f32 %v3306, %v3334
        %v3431 = vadd.f32 %v3307, %v3330
        %v3432 = vadd.f32 %v3308, %v3334
        %v3433 = vadd.f32 %v3309, %v3330
        %v3434 = vadd.f32 %v3310, %v3334
        %v3435 = vadd.f32 %v3311, %v3330
        %v3436 = vadd.f32 %v3312, %v3334
        %v3437 = vadd.f32 %v3313, %v3330
        %v3438 = vadd.f32 %v3314, %v3334
        %v3439 = vadd.f32 %v3315, %v3330
        %v3440 = vadd.f32 %v3316, %v3334
        %v3441 = vadd.f32 %v3317, %v3330
        %v3442 = vadd.f32 %v3318, %v3334
        %v3443 = vadd.f32 %v3319, %v3330
        %v3444 = vadd.f32 %v3320, %v3334
        %v3445 = vadd.f32 %v3321, %v3330
        %v3446 = vadd.f32 %v3322, %v3334
        %v3447 = vadd.f32 %v3323, %v3330
        %v3448 = vadd.f32 %v3324, %v3334
        %v3449 = vmax.f32 %v3337, 0.0
        %v3450 = vmax.f32 %v3338, 0.0
        %v3451 = vmax.f32 %v3339, 0.0
        %v3452 = vmax.f32 %v3340, 0.0
        %v3453 = vmax.f32 %v3341, 0.0
        %v3454 = vmax.f32 %v3342, 0.0
        %v3455 = vmax.f32 %v3343, 0.0
        %v3456 = vmax.f32 %v3344, 0.0
        %v3457 = vmax.f32 %v3345, 0.0
        %v3458 = vmax.f32 %v3346, 0.0
        %v3459 = vmax.f32 %v3347, 0.0
        %v3460 = vmax.f32 %v3348, 0.0
        %v3461 = vmax.f32 %v3349, 0.0
        %v3462 = vmax.f32 %v3350, 0.0
        %v3463 = vmax.f32 %v3351, 0.0
        %v3464 = vmax.f32 %v3352, 0.0
        %v3465 = vmax.f32 %v3353, 0.0
        %v3466 = vmax.f32 %v3354, 0.0
        %v3467 = vmax.f32 %v3355, 0.0
        %v3468 = vmax.f32 %v3356, 0.0
        %v3469 = vmax.f32 %v3357, 0.0
        %v3470 = vmax.f32 %v3358, 0.0
        %v3471 = vmax.f32 %v3359, 0.0
        %v3472 = vmax.f32 %v3360, 0.0
        %v3473 = vmax.f32 %v3361, 0.0
        %v3474 = vmax.f32 %v3362, 0.0
        %v3475 = vmax.f32 %v3363, 0.0
        %v3476 = vmax.f32 %v3364, 0.0
        %v3477 = vmax.f32 %v3365, 0.0
        %v3478 = vmax.f32 %v3366, 0.0
        %v3479 = vmax.f32 %v3367, 0.0
        %v3480 = vmax.f32 %v3368, 0.0
        %v3481 = vmax.f32 %v3369, 0.0
        %v3482 = vmax.f32 %v3370, 0.0
        %v3483 = vmax.f32 %v3371, 0.0
        %v3484 = vmax.f32 %v3372, 0.0
        %v3485 = vmax.f32 %v3373, 0.0
        %v3486 = vmax.f32 %v3374, 0.0
        %v3487 = vmax.f32 %v3375, 0.0
        %v3488 = vmax.f32 %v3376, 0.0
        %v3489 = vmax.f32 %v3377, 0.0
        %v3490 = vmax.f32 %v3378, 0.0
        %v3491 = vmax.f32 %v3379, 0.0
        %v3492 = vmax.f32 %v3380, 0.0
        %v3493 = vmax.f32 %v3381, 0.0
        %v3494 = vmax.f32 %v3382, 0.0
        %v3495 = vmax.f32 %v3383, 0.0
        %v3496 = vmax.f32 %v3384, 0.0
        %v3497 = vmax.f32 %v3385, 0.0
        %v3498 = vmax.f32 %v3386, 0.0
        %v3499 = vmax.f32 %v3387, 0.0
        %v3500 = vmax.f32 %v3388, 0.0
        %v3501 = vmax.f32 %v3389, 0.0
        %v3502 = vmax.f32 %v3390, 0.0
        %v3503 = vmax.f32 %v3391, 0.0
        %v3504 = vmax.f32 %v3392, 0.0
        %v3505 = vmax.f32 %v3393, 0.0
        %v3506 = vmax.f32 %v3394, 0.0
        %v3507 = vmax.f32 %v3395, 0.0
        %v3508 = vmax.f32 %v3396, 0.0
        %v3509 = vmax.f32 %v3397, 0.0
        %v3510 = vmax.f32 %v3398, 0.0
        %v3511 = vmax.f32 %v3399, 0.0
        %v3512 = vmax.f32 %v3400, 0.0
        %v3513 = vmax.f32 %v3401, 0.0
        %v3514 = vmax.f32 %v3402, 0.0
        %v3515 = vmax.f32 %v3403, 0.0
        %v3516 = vmax.f32 %v3404, 0.0
        %v3517 = vmax.f32 %v3405, 0.0
        %v3518 = vmax.f32 %v3406, 0.0
        %v3519 = vmax.f32 %v3407, 0.0
        %v3520 = vmax.f32 %v3408, 0.0
        %v3521 = vmax.f32 %v3409, 0.0
        %v3522 = vmax.f32 %v3410, 0.0
        %v3523 = vmax.f32 %v3411, 0.0
        %v3524 = vmax.f32 %v3412, 0.0
        %v3525 = vmax.f32 %v3413, 0.0
        %v3526 = vmax.f32 %v3414, 0.0
        %v3527 = vmax.f32 %v3415, 0.0
        %v3528 = vmax.f32 %v3416, 0.0
        %v3529 = vmax.f32 %v3417, 0.0
        %v3530 = vmax.f32 %v3418, 0.0
        %v3531 = vmax.f32 %v3419, 0.0
        %v3532 = vmax.f32 %v3420, 0.0
        %v3533 = vmax.f32 %v3421, 0.0
        %v3534 = vmax.f32 %v3422, 0.0
        %v3535 = vmax.f32 %v3423, 0.0
        %v3536 = vmax.f32 %v3424, 0.0
        %v3537 = vmax.f32 %v3425, 0.0
        %v3538 = vmax.f32 %v3426, 0.0
        %v3539 = vmax.f32 %v3427, 0.0
        %v3540 = vmax.f32 %v3428, 0.0
        %v3541 = vmax.f32 %v3429, 0.0
        %v3542 = vmax.f32 %v3430, 0.0
        %v3543 = vmax.f32 %v3431, 0.0
        %v3544 = vmax.f32 %v3432, 0.0
        %v3545 = vmax.f32 %v3433, 0.0
        %v3546 = vmax.f32 %v3434, 0.0
        %v3547 = vmax.f32 %v3435, 0.0
        %v3548 = vmax.f32 %v3436, 0.0
        %v3549 = vmax.f32 %v3437, 0.0
        %v3550 = vmax.f32 %v3438, 0.0
        %v3551 = vmax.f32 %v3439, 0.0
        %v3552 = vmax.f32 %v3440, 0.0
        %v3553 = vmax.f32 %v3441, 0.0
        %v3554 = vmax.f32 %v3442, 0.0
        %v3555 = vmax.f32 %v3443, 0.0
        %v3556 = vmax.f32 %v3444, 0.0
        %v3557 = vmax.f32 %v3445, 0.0
        %v3558 = vmax.f32 %v3446, 0.0
        %v3559 = vmax.f32 %v3447, 0.0
        %v3560 = vmax.f32 %v3448, 0.0
        %v3561 = vmax.f32 %v3449, %v3450
        %v3562 = vmax.f32 %v3451, %v3452
        %v3563 = vmax.f32 %v3453, %v3454
        %v3564 = vmax.f32 %v3455, %v3456
        %v3565 = vmax.f32 %v3457, %v3458
        %v3566 = vmax.f32 %v3459, %v3460
        %v3567 = vmax.f32 %v3461, %v3462
        %v3568 = vmax.f32 %v3463, %v3464
        %v3569 = vmax.f32 %v3465, %v3466
        %v3570 = vmax.f32 %v3467, %v3468
        %v3571 = vmax.f32 %v3469, %v3470
        %v3572 = vmax.f32 %v3471, %v3472
        %v3573 = vmax.f32 %v3473, %v3474
        %v3574 = vmax.f32 %v3475, %v3476
        %v3575 = vmax.f32 %v3477, %v3478
        %v3576 = vmax.f32 %v3479, %v3480
        %v3577 = vmax.f32 %v3481, %v3482
        %v3578 = vmax.f32 %v3483, %v3484
        %v3579 = vmax.f32 %v3485, %v3486
        %v3580 = vmax.f32 %v3487, %v3488
        %v3581 = vmax.f32 %v3489, %v3490
        %v3582 = vmax.f32 %v3491, %v3492
        %v3583 = vmax.f32 %v3493, %v3494
        %v3584 = vmax.f32 %v3495, %v3496
        %v3585 = vmax.f32 %v3497, %v3498
        %v3586 = vmax.f32 %v3499, %v3500
        %v3587 = vmax.f32 %v3501, %v3502
        %v3588 = vmax.f32 %v3503, %v3504
        %v3589 = vmax.f32 %v3505, %v3506
        %v3590 = vmax.f32 %v3507, %v3508
        %v3591 = vmax.f32 %v3509, %v3510
        %v3592 = vmax.f32 %v3511, %v3512
        %v3593 = vmax.f32 %v3513, %v3514
        %v3594 = vmax.f32 %v3515, %v3516
        %v3595 = vmax.f32 %v3517, %v3518
        %v3596 = vmax.f32 %v3519, %v3520
        %v3597 = vmax.f32 %v3521, %v3522
        %v3598 = vmax.f32 %v3523, %v3524
        %v3599 = vmax.f32 %v3525, %v3526
        %v3600 = vmax.f32 %v3527, %v3528
        %v3601 = vmax.f32 %v3529, %v3530
        %v3602 = vmax.f32 %v3531, %v3532
        %v3603 = vmax.f32 %v3533, %v3534
        %v3604 = vmax.f32 %v3535, %v3536
        %v3605 = vmax.f32 %v3537, %v3538
        %v3606 = vmax.f32 %v3539, %v3540
        %v3607 = vmax.f32 %v3541, %v3542
        %v3608 = vmax.f32 %v3543, %v3544
        %v3609 = vmax.f32 %v3545, %v3546
        %v3610 = vmax.f32 %v3547, %v3548
        %v3611 = vmax.f32 %v3549, %v3550
        %v3612 = vmax.f32 %v3551, %v3552
        %v3613 = vmax.f32 %v3553, %v3554
        %v3614 = vmax.f32 %v3555, %v3556
        %v3615 = vmax.f32 %v3557, %v3558
        %v3616 = vmax.f32 %v3559, %v3560
        %v3617 = vmax.f32 %v3561, %v3563
        %v3618 = vmax.f32 %v3562, %v3564
        %v3619 = vmax.f32 %v3565, %v3567
        %v3620 = vmax.f32 %v3566, %v3568
        %v3621 = vmax.f32 %v3569, %v3571
        %v3622 = vmax.f32 %v3570, %v3572
        %v3623 = vmax.f32 %v3573, %v3575
        %v3624 = vmax.f32 %v3574, %v3576
        %v3625 = vmax.f32 %v3577, %v3579
        %v3626 = vmax.f32 %v3578, %v3580
        %v3627 = vmax.f32 %v3581, %v3583
        %v3628 = vmax.f32 %v3582, %v3584
        %v3629 = vmax.f32 %v3585, %v3587
        %v3630 = vmax.f32 %v3586, %v3588
        %v3631 = vmax.f32 %v3589, %v3591
        %v3632 = vmax.f32 %v3590, %v3592
        %v3633 = vmax.f32 %v3593, %v3595
        %v3634 = vmax.f32 %v3594, %v3596
        %v3635 = vmax.f32 %v3597, %v3599
        %v3636 = vmax.f32 %v3598, %v3600
        %v3637 = vmax.f32 %v3601, %v3603
        %v3638 = vmax.f32 %v3602, %v3604
        %v3639 = vmax.f32 %v3605, %v3607
        %v3640 = vmax.f32 %v3606, %v3608
        %v3641 = vmax.f32 %v3609, %v3611
        %v3642 = vmax.f32 %v3610, %v3612
        %v3643 = vmax.f32 %v3613, %v3615
        %v3644 = vmax.f32 %v3614, %v3616
        %v3645 = vpack.c.bf16 %v3618, %v3617
        %v3646 = vpack.c.bf16 %v3620, %v3619
        %v3647 = vpack.c.bf16 %v3622, %v3621
        %v3648 = vpack.c.bf16 %v3624, %v3623
        %v3649 = vpack.c.bf16 %v3626, %v3625
        %v3650 = vpack.c.bf16 %v3628, %v3627
        %v3651 = vpack.c.bf16 %v3630, %v3629
        %v3652 = vpack.c.bf16 %v3632, %v3631
        %v3653 = vpack.c.bf16 %v3634, %v3633
        %v3654 = vpack.c.bf16 %v3636, %v3635
        %v3655 = vpack.c.bf16 %v3638, %v3637
        %v3656 = vpack.c.bf16 %v3640, %v3639
        %v3657 = vpack.c.bf16 %v3642, %v3641
        %v3658 = vpack.c.bf16 %v3644, %v3643
        %v3659 = vld [vmem:[%s3] sm:$0xff]
        %v3660 = vld [vmem:[%s3 + $0x8] sm:$0xff]
        %v3661 = vld [vmem:[%s3 + $0x10] sm:$0xff]
        %v3662 = vld [vmem:[%s3 + $0x18] sm:$0xff]
        %v3663 = vld [vmem:[%s3 + $0x20] sm:$0xff]
        %v3664 = vld [vmem:[%s3 + $0x28] sm:$0xff]
        %v3665 = vld [vmem:[%s3 + $0x30] sm:$0xff]
        %v3666 = vld [vmem:[%s3 + $0x38] sm:$0xff]
        %v3667 = vld [vmem:[%s3 + $0x40] sm:$0xff]
        %v3668 = vld [vmem:[%s3 + $0x48] sm:$0xff]
        %v3669 = vld [vmem:[%s3 + $0x50] sm:$0xff]
        %v3670 = vld [vmem:[%s3 + $0x58] sm:$0xff]
        %v3671 = vld [vmem:[%s3 + $0x60] sm:$0xff]
        %v3672 = vld [vmem:[%s3 + $0x68] sm:$0xff]
        %v3673 = vld [vmem:[%s3 + $0x70] sm:$0xff]
        %v3674 = vld [vmem:[%s3 + $0x78] sm:$0xff]
        %s3675 = scalar_lea.vmem %s3, 128
        %v3676 = vld [vmem:[%s3675] sm:$0xff]
        %v3677 = vld [vmem:[%s3675 + $0x8] sm:$0xff]
        %v3678 = vld [vmem:[%s3675 + $0x10] sm:$0xff]
        %v3679 = vld [vmem:[%s3675 + $0x18] sm:$0xff]
        %v3680 = vld [vmem:[%s3675 + $0x20] sm:$0xff]
        %v3681 = vld [vmem:[%s3675 + $0x28] sm:$0xff]
        %v3682 = vld [vmem:[%s3675 + $0x30] sm:$0xff]
        %v3683 = vld [vmem:[%s3675 + $0x38] sm:$0xff]
        %v3684 = vld [vmem:[%s3675 + $0x40] sm:$0xff]
        %v3685 = vld [vmem:[%s3675 + $0x48] sm:$0xff]
        %v3686 = vld [vmem:[%s3675 + $0x50] sm:$0xff]
        %v3687 = vld [vmem:[%s3675 + $0x58] sm:$0xff]
        %v3688 = vld [vmem:[%s3675 + $0x60] sm:$0xff]
        %v3689 = vld [vmem:[%s3675 + $0x68] sm:$0xff]
        %v3690 = vld [vmem:[%s3675 + $0x70] sm:$0xff]
        %v3691 = vld [vmem:[%s3675 + $0x78] sm:$0xff]
        %v3708 = vunpack.c.l.b16 %v3676
        %v3709 = vunpack.c.h.b16 %v3676
        %v3710 = vunpack.c.l.b16 %v3677
        %v3711 = vunpack.c.h.b16 %v3677
        %v3712 = vunpack.c.l.b16 %v3678
        %v3713 = vunpack.c.h.b16 %v3678
        %v3714 = vunpack.c.l.b16 %v3679
        %v3715 = vunpack.c.h.b16 %v3679
        %v3716 = vunpack.c.l.b16 %v3680
        %v3717 = vunpack.c.h.b16 %v3680
        %v3718 = vunpack.c.l.b16 %v3681
        %v3719 = vunpack.c.h.b16 %v3681
        %v3720 = vunpack.c.l.b16 %v3682
        %v3721 = vunpack.c.h.b16 %v3682
        %v3722 = vunpack.c.l.b16 %v3683
        %v3723 = vunpack.c.h.b16 %v3683
        %v3724 = vunpack.c.l.b16 %v3684
        %v3725 = vunpack.c.h.b16 %v3684
        %v3726 = vunpack.c.l.b16 %v3685
        %v3727 = vunpack.c.h.b16 %v3685
        %v3728 = vunpack.c.l.b16 %v3686
        %v3729 = vunpack.c.h.b16 %v3686
        %v3730 = vunpack.c.l.b16 %v3687
        %v3731 = vunpack.c.h.b16 %v3687
        %v3732 = vunpack.c.l.b16 %v3688
        %v3733 = vunpack.c.h.b16 %v3688
        %v3734 = vunpack.c.l.b16 %v3689
        %v3735 = vunpack.c.h.b16 %v3689
        %v3736 = vunpack.c.l.b16 %v3690
        %v3737 = vunpack.c.h.b16 %v3690
        %v3738 = vunpack.c.l.b16 %v3691
        %v3739 = vunpack.c.h.b16 %v3691
        %v3740 = vpack.c.b16 %v3710, %v3708
        %v3741 = vpack.c.b16 %v3711, %v3709
        %v3742 = vpack.c.b16 %v3714, %v3712
        %v3743 = vpack.c.b16 %v3715, %v3713
        %v3744 = vpack.c.b16 %v3718, %v3716
        %v3745 = vpack.c.b16 %v3719, %v3717
        %v3746 = vpack.c.b16 %v3722, %v3720
        %v3747 = vpack.c.b16 %v3723, %v3721
        %v3748 = vpack.c.b16 %v3726, %v3724
        %v3749 = vpack.c.b16 %v3727, %v3725
        %v3750 = vpack.c.b16 %v3730, %v3728
        %v3751 = vpack.c.b16 %v3731, %v3729
        %v3752 = vpack.c.b16 %v3734, %v3732
        %v3753 = vpack.c.b16 %v3735, %v3733
        %v3754 = vpack.c.b16 %v3738, %v3736
        %v3755 = vpack.c.b16 %v3739, %v3737
        %3772 = vmatprep.subr.bf16.mxu0 %v3741
        %3773 = vmatpush1.bf16.msra.mxu0 %v3740
        %3774 = vmatprep.subr.bf16.mxu0 %v3743
        %3775 = vmatpush1.bf16.msra.mxu0 %v3742
        %3776 = vmatprep.subr.bf16.mxu0 %v3745
        %3777 = vmatpush1.bf16.msra.mxu0 %v3744
        %3778 = vmatprep.subr.bf16.mxu0 %v3747
        %3779 = vmatpush1.bf16.msra.mxu0 %v3746
        %3780 = vmatprep.subr.bf16.mxu0 %v3749
        %3781 = vmatpush1.bf16.msra.mxu0 %v3748
        %3782 = vmatprep.subr.bf16.mxu0 %v3751
        %3783 = vmatpush1.bf16.msra.mxu0 %v3750
        %3784 = vmatprep.subr.bf16.mxu0 %v3753
        %3785 = vmatpush1.bf16.msra.mxu0 %v3752
        %3786 = vmatprep.subr.bf16.mxu0 %v3755
        %3787 = vmatpush1.bf16.msra.mxu0 %v3754
        %3788 = vmatprep.subr.bf16.mxu0 0
        %3789 = vmatpush1.bf16.msra.mxu0 0
        %3790 = vmatprep.subr.bf16.mxu0 0
        %3791 = vmatpush1.bf16.msra.mxu0 0
        %3792 = vmatprep.subr.bf16.mxu0 0
        %3793 = vmatpush1.bf16.msra.mxu0 0
        %3794 = vmatprep.subr.bf16.mxu0 0
        %3795 = vmatpush1.bf16.msra.mxu0 0
        %3796 = vmatprep.subr.bf16.mxu0 0
        %3797 = vmatpush1.bf16.msra.mxu0 0
        %3798 = vmatprep.subr.bf16.mxu0 0
        %3799 = vmatpush1.bf16.msra.mxu0 0
        %3800 = vmatprep.subr.bf16.mxu0 0
        %3801 = vmatpush1.bf16.msra.mxu0 0
        %3802 = vmatprep.subr.bf16.mxu0 0
        %3803 = vmatpush1.bf16.msra.mxu0 0
        %3804 = vmatprep.mubr.bf16.mxu0 0
        %3805 = vmatmul.mubr.bf16.gmra.mrb[0].mxu0 %v3646
        %v3806 = vpop.f32.mrb[0].mxu0
        %v3807 = vadd.f32 0.0, %v3806
        %v3808 = vpop.f32.mrb[0].mxu0
        %v3809 = vadd.f32 0.0, %v3808
        %v3810 = vpop.f32.mrb[0].mxu0
        %v3811 = vadd.f32 0.0, %v3810
        %v3812 = vpop.f32.mrb[0].mxu0
        %v3813 = vadd.f32 0.0, %v3812
        %3814 = vmatprep.mubr.bf16.mxu0 0
        %3815 = vmatmul.mubr.bf16.gmra.mrb[0].mxu0 %v3647
        %v3816 = vpop.f32.mrb[0].mxu0
        %v3817 = vadd.f32 0.0, %v3816
        %v3818 = vpop.f32.mrb[0].mxu0
        %v3819 = vadd.f32 0.0, %v3818
        %v3820 = vpop.f32.mrb[0].mxu0
        %v3821 = vadd.f32 0.0, %v3820
        %v3822 = vpop.f32.mrb[0].mxu0
        %v3823 = vadd.f32 0.0, %v3822
        %3824 = vmatprep.mubr.bf16.mxu0 0
        %3825 = vmatmul.mubr.bf16.gmra.mrb[0].mxu0 %v3648
        %v3826 = vpop.f32.mrb[0].mxu0
        %v3827 = vadd.f32 0.0, %v3826
        %v3828 = vpop.f32.mrb[0].mxu0
        %v3829 = vadd.f32 0.0, %v3828
        %v3830 = vpop.f32.mrb[0].mxu0
        %v3831 = vadd.f32 0.0, %v3830
        %v3832 = vpop.f32.mrb[0].mxu0
        %v3833 = vadd.f32 0.0, %v3832
        %3834 = vmatprep.mubr.bf16.mxu0 0
        %3835 = vmatmul.mubr.bf16.gmra.mrb[0].mxu0 %v3649
        %v3836 = vpop.f32.mrb[0].mxu0
        %v3837 = vadd.f32 0.0, %v3836
        %v3838 = vpop.f32.mrb[0].mxu0
        %v3839 = vadd.f32 0.0, %v3838
        %v3840 = vpop.f32.mrb[0].mxu0
        %v3841 = vadd.f32 0.0, %v3840
        %v3842 = vpop.f32.mrb[0].mxu0
        %v3843 = vadd.f32 0.0, %v3842
        %3844 = vmatprep.mubr.bf16.mxu0 0
        %3845 = vmatmul.mubr.bf16.gmra.mrb[0].mxu0 %v3650
        %v3846 = vpop.f32.mrb[0].mxu0
        %v3847 = vadd.f32 0.0, %v3846
        %v3848 = vpop.f32.mrb[0].mxu0
        %v3849 = vadd.f32 0.0, %v3848
        %v3850 = vpop.f32.mrb[0].mxu0
        %v3851 = vadd.f32 0.0, %v3850
        %v3852 = vpop.f32.mrb[0].mxu0
        %v3853 = vadd.f32 0.0, %v3852
        %3854 = vmatprep.mubr.bf16.mxu0 0
        %3855 = vmatmul.mubr.bf16.gmra.mrb[0].mxu0 %v3651
        %v3856 = vpop.f32.mrb[0].mxu0
        %v3857 = vadd.f32 0.0, %v3856
        %v3858 = vpop.f32.mrb[0].mxu0
        %v3859 = vadd.f32 0.0, %v3858
        %v3860 = vpop.f32.mrb[0].mxu0
        %v3861 = vadd.f32 0.0, %v3860
        %v3862 = vpop.f32.mrb[0].mxu0
        %v3863 = vadd.f32 0.0, %v3862
        %3864 = vmatprep.mubr.bf16.mxu0 0
        %3865 = vmatmul.mubr.bf16.gmra.mrb[0].mxu0 %v3652
        %v3866 = vpop.f32.mrb[0].mxu0
        %v3867 = vadd.f32 0.0, %v3866
        %v3868 = vpop.f32.mrb[0].mxu0
        %v3869 = vadd.f32 0.0, %v3868
        %v3870 = vpop.f32.mrb[0].mxu0
        %v3871 = vadd.f32 0.0, %v3870
        %v3872 = vpop.f32.mrb[0].mxu0
        %v3873 = vadd.f32 0.0, %v3872
        %3874 = vmatprep.mubr.bf16.mxu0 0
        %3875 = vmatmul.mubr.bf16.gmra.mrb[0].mxu0 %v3653
        %v3876 = vpop.f32.mrb[0].mxu0
        %v3877 = vadd.f32 0.0, %v3876
        %v3878 = vpop.f32.mrb[0].mxu0
        %v3879 = vadd.f32 0.0, %v3878
        %v3880 = vpop.f32.mrb[0].mxu0
        %v3881 = vadd.f32 0.0, %v3880
        %v3882 = vpop.f32.mrb[0].mxu0
        %v3883 = vadd.f32 0.0, %v3882
        %3884 = vmatprep.mubr.bf16.mxu0 0
        %3885 = vmatmul.mubr.bf16.gmra.mrb[0].mxu0 %v3654
        %v3886 = vpop.f32.mrb[0].mxu0
        %v3887 = vadd.f32 0.0, %v3886
        %v3888 = vpop.f32.mrb[0].mxu0
        %v3889 = vadd.f32 0.0, %v3888
        %v3890 = vpop.f32.mrb[0].mxu0
        %v3891 = vadd.f32 0.0, %v3890
        %v3892 = vpop.f32.mrb[0].mxu0
        %v3893 = vadd.f32 0.0, %v3892
        %3894 = vmatprep.mubr.bf16.mxu0 0
        %3895 = vmatmul.mubr.bf16.gmra.mrb[0].mxu0 %v3655
        %v3896 = vpop.f32.mrb[0].mxu0
        %v3897 = vadd.f32 0.0, %v3896
        %v3898 = vpop.f32.mrb[0].mxu0
        %v3899 = vadd.f32 0.0, %v3898
        %v3900 = vpop.f32.mrb[0].mxu0
        %v3901 = vadd.f32 0.0, %v3900
        %v3902 = vpop.f32.mrb[0].mxu0
        %v3903 = vadd.f32 0.0, %v3902
        %3904 = vdwg.mxu0
        %v3921 = vunpack.c.l.b16 %v3659
        %v3922 = vunpack.c.h.b16 %v3659
        %v3923 = vunpack.c.l.b16 %v3660
        %v3924 = vunpack.c.h.b16 %v3660
        %v3925 = vunpack.c.l.b16 %v3661
        %v3926 = vunpack.c.h.b16 %v3661
        %v3927 = vunpack.c.l.b16 %v3662
        %v3928 = vunpack.c.h.b16 %v3662
        %v3929 = vunpack.c.l.b16 %v3663
        %v3930 = vunpack.c.h.b16 %v3663
        %v3931 = vunpack.c.l.b16 %v3664
        %v3932 = vunpack.c.h.b16 %v3664
        %v3933 = vunpack.c.l.b16 %v3665
        %v3934 = vunpack.c.h.b16 %v3665
        %v3935 = vunpack.c.l.b16 %v3666
        %v3936 = vunpack.c.h.b16 %v3666
        %v3937 = vunpack.c.l.b16 %v3667
        %v3938 = vunpack.c.h.b16 %v3667
        %v3939 = vunpack.c.l.b16 %v3668
        %v3940 = vunpack.c.h.b16 %v3668
        %v3941 = vunpack.c.l.b16 %v3669
        %v3942 = vunpack.c.h.b16 %v3669
        %v3943 = vunpack.c.l.b16 %v3670
        %v3944 = vunpack.c.h.b16 %v3670
        %v3945 = vunpack.c.l.b16 %v3671
        %v3946 = vunpack.c.h.b16 %v3671
        %v3947 = vunpack.c.l.b16 %v3672
        %v3948 = vunpack.c.h.b16 %v3672
        %v3949 = vunpack.c.l.b16 %v3673
        %v3950 = vunpack.c.h.b16 %v3673
        %v3951 = vunpack.c.l.b16 %v3674
        %v3952 = vunpack.c.h.b16 %v3674
        %v3953 = vpack.c.b16 %v3923, %v3921
        %v3954 = vpack.c.b16 %v3924, %v3922
        %v3955 = vpack.c.b16 %v3927, %v3925
        %v3956 = vpack.c.b16 %v3928, %v3926
        %v3957 = vpack.c.b16 %v3931, %v3929
        %v3958 = vpack.c.b16 %v3932, %v3930
        %v3959 = vpack.c.b16 %v3935, %v3933
        %v3960 = vpack.c.b16 %v3936, %v3934
        %v3961 = vpack.c.b16 %v3939, %v3937
        %v3962 = vpack.c.b16 %v3940, %v3938
        %v3963 = vpack.c.b16 %v3943, %v3941
        %v3964 = vpack.c.b16 %v3944, %v3942
        %v3965 = vpack.c.b16 %v3947, %v3945
        %v3966 = vpack.c.b16 %v3948, %v3946
        %v3967 = vpack.c.b16 %v3951, %v3949
        %v3968 = vpack.c.b16 %v3952, %v3950
        %3985 = vmatprep.subr.bf16.mxu0 %v3954
        %3986 = vmatpush1.bf16.msra.mxu0 %v3953
        %3987 = vmatprep.subr.bf16.mxu0 %v3956
        %3988 = vmatpush1.bf16.msra.mxu0 %v3955
        %3989 = vmatprep.subr.bf16.mxu0 %v3958
        %3990 = vmatpush1.bf16.msra.mxu0 %v3957
        %3991 = vmatprep.subr.bf16.mxu0 %v3960
        %3992 = vmatpush1.bf16.msra.mxu0 %v3959
        %3993 = vmatprep.subr.bf16.mxu0 %v3962
        %3994 = vmatpush1.bf16.msra.mxu0 %v3961
        %3995 = vmatprep.subr.bf16.mxu0 %v3964
        %3996 = vmatpush1.bf16.msra.mxu0 %v3963
        %3997 = vmatprep.subr.bf16.mxu0 %v3966
        %3998 = vmatpush1.bf16.msra.mxu0 %v3965
        %3999 = vmatprep.subr.bf16.mxu0 %v3968
        %4000 = vmatpush1.bf16.msra.mxu0 %v3967
        %4001 = vmatprep.subr.bf16.mxu0 0
        %4002 = vmatpush1.bf16.msra.mxu0 0
        %4003 = vmatprep.subr.bf16.mxu0 0
        %4004 = vmatpush1.bf16.msra.mxu0 0
        %4005 = vmatprep.subr.bf16.mxu0 0
        %4006 = vmatpush1.bf16.msra.mxu0 0
        %4007 = vmatprep.subr.bf16.mxu0 0
        %4008 = vmatpush1.bf16.msra.mxu0 0
        %4009 = vmatprep.subr.bf16.mxu0 0
        %4010 = vmatpush1.bf16.msra.mxu0 0
        %4011 = vmatprep.subr.bf16.mxu0 0
        %4012 = vmatpush1.bf16.msra.mxu0 0
        %4013 = vmatprep.subr.bf16.mxu0 0
        %4014 = vmatpush1.bf16.msra.mxu0 0
        %4015 = vmatprep.subr.bf16.mxu0 0
        %4016 = vmatpush1.bf16.msra.mxu0 0
        %4017 = vmatprep.mubr.bf16.mxu0 0
        %4018 = vmatmul.mubr.bf16.gmra.mrb[0].mxu0 %v3645
        %v4019 = vpop.f32.mrb[0].mxu0
        %v4020 = vadd.f32 %v3807, %v4019
        %v4021 = vpop.f32.mrb[0].mxu0
        %v4022 = vadd.f32 %v3809, %v4021
        %v4023 = vpop.f32.mrb[0].mxu0
        %v4024 = vadd.f32 %v3811, %v4023
        %v4025 = vpop.f32.mrb[0].mxu0
        %v4026 = vadd.f32 %v3813, %v4025
        %4027 = vmatprep.mubr.bf16.mxu0 0
        %4028 = vmatmul.mubr.bf16.gmra.mrb[0].mxu0 %v3646
        %v4029 = vpop.f32.mrb[0].mxu0
        %v4030 = vadd.f32 %v3817, %v4029
        %v4031 = vpop.f32.mrb[0].mxu0
        %v4032 = vadd.f32 %v3819, %v4031
        %v4033 = vpop.f32.mrb[0].mxu0
        %v4034 = vadd.f32 %v3821, %v4033
        %v4035 = vpop.f32.mrb[0].mxu0
        %v4036 = vadd.f32 %v3823, %v4035
        %4037 = vmatprep.mubr.bf16.mxu0 0
        %4038 = vmatmul.mubr.bf16.gmra.mrb[0].mxu0 %v3647
        %v4039 = vpop.f32.mrb[0].mxu0
        %v4040 = vadd.f32 %v3827, %v4039
        %v4041 = vpop.f32.mrb[0].mxu0
        %v4042 = vadd.f32 %v3829, %v4041
        %v4043 = vpop.f32.mrb[0].mxu0
        %v4044 = vadd.f32 %v3831, %v4043
        %v4045 = vpop.f32.mrb[0].mxu0
        %v4046 = vadd.f32 %v3833, %v4045
        %4047 = vmatprep.mubr.bf16.mxu0 0
        %4048 = vmatmul.mubr.bf16.gmra.mrb[0].mxu0 %v3648
        %v4049 = vpop.f32.mrb[0].mxu0
        %v4050 = vadd.f32 %v3837, %v4049
        %v4051 = vpop.f32.mrb[0].mxu0
        %v4052 = vadd.f32 %v3839, %v4051
        %v4053 = vpop.f32.mrb[0].mxu0
        %v4054 = vadd.f32 %v3841, %v4053
        %v4055 = vpop.f32.mrb[0].mxu0
        %v4056 = vadd.f32 %v3843, %v4055
        %4057 = vmatprep.mubr.bf16.mxu0 0
        %4058 = vmatmul.mubr.bf16.gmra.mrb[0].mxu0 %v3649
        %v4059 = vpop.f32.mrb[0].mxu0
        %v4060 = vadd.f32 %v3847, %v4059
        %v4061 = vpop.f32.mrb[0].mxu0
        %v4062 = vadd.f32 %v3849, %v4061
        %v4063 = vpop.f32.mrb[0].mxu0
        %v4064 = vadd.f32 %v3851, %v4063
        %v4065 = vpop.f32.mrb[0].mxu0
        %v4066 = vadd.f32 %v3853, %v4065
        %4067 = vmatprep.mubr.bf16.mxu0 0
        %4068 = vmatmul.mubr.bf16.gmra.mrb[0].mxu0 %v3650
        %v4069 = vpop.f32.mrb[0].mxu0
        %v4070 = vadd.f32 %v3857, %v4069
        %v4071 = vpop.f32.mrb[0].mxu0
        %v4072 = vadd.f32 %v3859, %v4071
        %v4073 = vpop.f32.mrb[0].mxu0
        %v4074 = vadd.f32 %v3861, %v4073
        %v4075 = vpop.f32.mrb[0].mxu0
        %v4076 = vadd.f32 %v3863, %v4075
        %4077 = vmatprep.mubr.bf16.mxu0 0
        %4078 = vmatmul.mubr.bf16.gmra.mrb[0].mxu0 %v3651
        %v4079 = vpop.f32.mrb[0].mxu0
        %v4080 = vadd.f32 %v3867, %v4079
        %v4081 = vpop.f32.mrb[0].mxu0
        %v4082 = vadd.f32 %v3869, %v4081
        %v4083 = vpop.f32.mrb[0].mxu0
        %v4084 = vadd.f32 %v3871, %v4083
        %v4085 = vpop.f32.mrb[0].mxu0
        %v4086 = vadd.f32 %v3873, %v4085
        %4087 = vmatprep.mubr.bf16.mxu0 0
        %4088 = vmatmul.mubr.bf16.gmra.mrb[0].mxu0 %v3652
        %v4089 = vpop.f32.mrb[0].mxu0
        %v4090 = vadd.f32 %v3877, %v4089
        %v4091 = vpop.f32.mrb[0].mxu0
        %v4092 = vadd.f32 %v3879, %v4091
        %v4093 = vpop.f32.mrb[0].mxu0
        %v4094 = vadd.f32 %v3881, %v4093
        %v4095 = vpop.f32.mrb[0].mxu0
        %v4096 = vadd.f32 %v3883, %v4095
        %4097 = vmatprep.mubr.bf16.mxu0 0
        %4098 = vmatmul.mubr.bf16.gmra.mrb[0].mxu0 %v3653
        %v4099 = vpop.f32.mrb[0].mxu0
        %v4100 = vadd.f32 %v3887, %v4099
        %v4101 = vpop.f32.mrb[0].mxu0
        %v4102 = vadd.f32 %v3889, %v4101
        %v4103 = vpop.f32.mrb[0].mxu0
        %v4104 = vadd.f32 %v3891, %v4103
        %v4105 = vpop.f32.mrb[0].mxu0
        %v4106 = vadd.f32 %v3893, %v4105
        %4107 = vmatprep.mubr.bf16.mxu0 0
        %4108 = vmatmul.mubr.bf16.gmra.mrb[0].mxu0 %v3654
        %v4109 = vpop.f32.mrb[0].mxu0
        %v4110 = vadd.f32 %v3897, %v4109
        %v4111 = vpop.f32.mrb[0].mxu0
        %v4112 = vadd.f32 %v3899, %v4111
        %v4113 = vpop.f32.mrb[0].mxu0
        %v4114 = vadd.f32 %v3901, %v4113
        %v4115 = vpop.f32.mrb[0].mxu0
        %v4116 = vadd.f32 %v3903, %v4115
        %4117 = vdwg.mxu0
        %s4118 = scalar_lea.vmem %s3, 256
        %v4119 = vld [vmem:[%s4118] sm:$0xff]
        %v4120 = vld [vmem:[%s4118 + $0x8] sm:$0xff]
        %v4121 = vld [vmem:[%s4118 + $0x10] sm:$0xff]
        %v4122 = vld [vmem:[%s4118 + $0x18] sm:$0xff]
        %v4123 = vld [vmem:[%s4118 + $0x20] sm:$0xff]
        %v4124 = vld [vmem:[%s4118 + $0x28] sm:$0xff]
        %v4125 = vld [vmem:[%s4118 + $0x30] sm:$0xff]
        %v4126 = vld [vmem:[%s4118 + $0x38] sm:$0xff]
        %v4127 = vld [vmem:[%s4118 + $0x40] sm:$0xff]
        %v4128 = vld [vmem:[%s4118 + $0x48] sm:$0xff]
        %v4129 = vld [vmem:[%s4118 + $0x50] sm:$0xff]
        %v4130 = vld [vmem:[%s4118 + $0x58] sm:$0xff]
        %v4131 = vld [vmem:[%s4118 + $0x60] sm:$0xff]
        %v4132 = vld [vmem:[%s4118 + $0x68] sm:$0xff]
        %v4133 = vld [vmem:[%s4118 + $0x70] sm:$0xff]
        %v4134 = vld [vmem:[%s4118 + $0x78] sm:$0xff]
        %v4151 = vunpack.c.l.b16 %v4119
        %v4152 = vunpack.c.h.b16 %v4119
        %v4153 = vunpack.c.l.b16 %v4120
        %v4154 = vunpack.c.h.b16 %v4120
        %v4155 = vunpack.c.l.b16 %v4121
        %v4156 = vunpack.c.h.b16 %v4121
        %v4157 = vunpack.c.l.b16 %v4122
        %v4158 = vunpack.c.h.b16 %v4122
        %v4159 = vunpack.c.l.b16 %v4123
        %v4160 = vunpack.c.h.b16 %v4123
        %v4161 = vunpack.c.l.b16 %v4124
        %v4162 = vunpack.c.h.b16 %v4124
        %v4163 = vunpack.c.l.b16 %v4125
        %v4164 = vunpack.c.h.b16 %v4125
        %v4165 = vunpack.c.l.b16 %v4126
        %v4166 = vunpack.c.h.b16 %v4126
        %v4167 = vunpack.c.l.b16 %v4127
        %v4168 = vunpack.c.h.b16 %v4127
        %v4169 = vunpack.c.l.b16 %v4128
        %v4170 = vunpack.c.h.b16 %v4128
        %v4171 = vunpack.c.l.b16 %v4129
        %v4172 = vunpack.c.h.b16 %v4129
        %v4173 = vunpack.c.l.b16 %v4130
        %v4174 = vunpack.c.h.b16 %v4130
        %v4175 = vunpack.c.l.b16 %v4131
        %v4176 = vunpack.c.h.b16 %v4131
        %v4177 = vunpack.c.l.b16 %v4132
        %v4178 = vunpack.c.h.b16 %v4132
        %v4179 = vunpack.c.l.b16 %v4133
        %v4180 = vunpack.c.h.b16 %v4133
        %v4181 = vunpack.c.l.b16 %v4134
        %v4182 = vunpack.c.h.b16 %v4134
        %v4183 = vpack.c.b16 %v4153, %v4151
        %v4184 = vpack.c.b16 %v4154, %v4152
        %v4185 = vpack.c.b16 %v4157, %v4155
        %v4186 = vpack.c.b16 %v4158, %v4156
        %v4187 = vpack.c.b16 %v4161, %v4159
        %v4188 = vpack.c.b16 %v4162, %v4160
        %v4189 = vpack.c.b16 %v4165, %v4163
        %v4190 = vpack.c.b16 %v4166, %v4164
        %v4191 = vpack.c.b16 %v4169, %v4167
        %v4192 = vpack.c.b16 %v4170, %v4168
        %v4193 = vpack.c.b16 %v4173, %v4171
        %v4194 = vpack.c.b16 %v4174, %v4172
        %v4195 = vpack.c.b16 %v4177, %v4175
        %v4196 = vpack.c.b16 %v4178, %v4176
        %v4197 = vpack.c.b16 %v4181, %v4179
        %v4198 = vpack.c.b16 %v4182, %v4180
        %4215 = vmatprep.subr.bf16.mxu0 %v4184
        %4216 = vmatpush1.bf16.msra.mxu0 %v4183
        %4217 = vmatprep.subr.bf16.mxu0 %v4186
        %4218 = vmatpush1.bf16.msra.mxu0 %v4185
        %4219 = vmatprep.subr.bf16.mxu0 %v4188
        %4220 = vmatpush1.bf16.msra.mxu0 %v4187
        %4221 = vmatprep.subr.bf16.mxu0 %v4190
        %4222 = vmatpush1.bf16.msra.mxu0 %v4189
        %4223 = vmatprep.subr.bf16.mxu0 %v4192
        %4224 = vmatpush1.bf16.msra.mxu0 %v4191
        %4225 = vmatprep.subr.bf16.mxu0 %v4194
        %4226 = vmatpush1.bf16.msra.mxu0 %v4193
        %4227 = vmatprep.subr.bf16.mxu0 %v4196
        %4228 = vmatpush1.bf16.msra.mxu0 %v4195
        %4229 = vmatprep.subr.bf16.mxu0 %v4198
        %4230 = vmatpush1.bf16.msra.mxu0 %v4197
        %4231 = vmatprep.subr.bf16.mxu0 0
        %4232 = vmatpush1.bf16.msra.mxu0 0
        %4233 = vmatprep.subr.bf16.mxu0 0
        %4234 = vmatpush1.bf16.msra.mxu0 0
        %4235 = vmatprep.subr.bf16.mxu0 0
        %4236 = vmatpush1.bf16.msra.mxu0 0
        %4237 = vmatprep.subr.bf16.mxu0 0
        %4238 = vmatpush1.bf16.msra.mxu0 0
        %4239 = vmatprep.subr.bf16.mxu0 0
        %4240 = vmatpush1.bf16.msra.mxu0 0
        %4241 = vmatprep.subr.bf16.mxu0 0
        %4242 = vmatpush1.bf16.msra.mxu0 0
        %4243 = vmatprep.subr.bf16.mxu0 0
        %4244 = vmatpush1.bf16.msra.mxu0 0
        %4245 = vmatprep.subr.bf16.mxu0 0
        %4246 = vmatpush1.bf16.msra.mxu0 0
        %4247 = vmatprep.mubr.bf16.mxu0 0
        %4248 = vmatmul.mubr.bf16.gmra.mrb[0].mxu0 %v3647
        %v4249 = vpop.f32.mrb[0].mxu0
        %v4250 = vadd.f32 0.0, %v4249
        %v4251 = vpop.f32.mrb[0].mxu0
        %v4252 = vadd.f32 0.0, %v4251
        %v4253 = vpop.f32.mrb[0].mxu0
        %v4254 = vadd.f32 0.0, %v4253
        %v4255 = vpop.f32.mrb[0].mxu0
        %v4256 = vadd.f32 0.0, %v4255
        %4257 = vmatprep.mubr.bf16.mxu0 0
        %4258 = vmatmul.mubr.bf16.gmra.mrb[0].mxu0 %v3648
        %v4259 = vpop.f32.mrb[0].mxu0
        %v4260 = vadd.f32 0.0, %v4259
        %v4261 = vpop.f32.mrb[0].mxu0
        %v4262 = vadd.f32 0.0, %v4261
        %v4263 = vpop.f32.mrb[0].mxu0
        %v4264 = vadd.f32 0.0, %v4263
        %v4265 = vpop.f32.mrb[0].mxu0
        %v4266 = vadd.f32 0.0, %v4265
        %4267 = vmatprep.mubr.bf16.mxu0 0
        %4268 = vmatmul.mubr.bf16.gmra.mrb[0].mxu0 %v3649
        %v4269 = vpop.f32.mrb[0].mxu0
        %v4270 = vadd.f32 0.0, %v4269
        %v4271 = vpop.f32.mrb[0].mxu0
        %v4272 = vadd.f32 0.0, %v4271
        %v4273 = vpop.f32.mrb[0].mxu0
        %v4274 = vadd.f32 0.0, %v4273
        %v4275 = vpop.f32.mrb[0].mxu0
        %v4276 = vadd.f32 0.0, %v4275
        %4277 = vmatprep.mubr.bf16.mxu0 0
        %4278 = vmatmul.mubr.bf16.gmra.mrb[0].mxu0 %v3650
        %v4279 = vpop.f32.mrb[0].mxu0
        %v4280 = vadd.f32 0.0, %v4279
        %v4281 = vpop.f32.mrb[0].mxu0
        %v4282 = vadd.f32 0.0, %v4281
        %v4283 = vpop.f32.mrb[0].mxu0
        %v4284 = vadd.f32 0.0, %v4283
        %v4285 = vpop.f32.mrb[0].mxu0
        %v4286 = vadd.f32 0.0, %v4285
        %4287 = vmatprep.mubr.bf16.mxu0 0
        %4288 = vmatmul.mubr.bf16.gmra.mrb[0].mxu0 %v3651
        %v4289 = vpop.f32.mrb[0].mxu0
        %v4290 = vadd.f32 0.0, %v4289
        %v4291 = vpop.f32.mrb[0].mxu0
        %v4292 = vadd.f32 0.0, %v4291
        %v4293 = vpop.f32.mrb[0].mxu0
        %v4294 = vadd.f32 0.0, %v4293
        %v4295 = vpop.f32.mrb[0].mxu0
        %v4296 = vadd.f32 0.0, %v4295
        %4297 = vmatprep.mubr.bf16.mxu0 0
        %4298 = vmatmul.mubr.bf16.gmra.mrb[0].mxu0 %v3652
        %v4299 = vpop.f32.mrb[0].mxu0
        %v4300 = vadd.f32 0.0, %v4299
        %v4301 = vpop.f32.mrb[0].mxu0
        %v4302 = vadd.f32 0.0, %v4301
        %v4303 = vpop.f32.mrb[0].mxu0
        %v4304 = vadd.f32 0.0, %v4303
        %v4305 = vpop.f32.mrb[0].mxu0
        %v4306 = vadd.f32 0.0, %v4305
        %4307 = vmatprep.mubr.bf16.mxu0 0
        %4308 = vmatmul.mubr.bf16.gmra.mrb[0].mxu0 %v3653
        %v4309 = vpop.f32.mrb[0].mxu0
        %v4310 = vadd.f32 0.0, %v4309
        %v4311 = vpop.f32.mrb[0].mxu0
        %v4312 = vadd.f32 0.0, %v4311
        %v4313 = vpop.f32.mrb[0].mxu0
        %v4314 = vadd.f32 0.0, %v4313
        %v4315 = vpop.f32.mrb[0].mxu0
        %v4316 = vadd.f32 0.0, %v4315
        %4317 = vmatprep.mubr.bf16.mxu0 0
        %4318 = vmatmul.mubr.bf16.gmra.mrb[0].mxu0 %v3654
        %v4319 = vpop.f32.mrb[0].mxu0
        %v4320 = vadd.f32 0.0, %v4319
        %v4321 = vpop.f32.mrb[0].mxu0
        %v4322 = vadd.f32 0.0, %v4321
        %v4323 = vpop.f32.mrb[0].mxu0
        %v4324 = vadd.f32 0.0, %v4323
        %v4325 = vpop.f32.mrb[0].mxu0
        %v4326 = vadd.f32 0.0, %v4325
        %4327 = vmatprep.mubr.bf16.mxu0 0
        %4328 = vmatmul.mubr.bf16.gmra.mrb[0].mxu0 %v3655
        %v4329 = vpop.f32.mrb[0].mxu0
        %v4330 = vadd.f32 0.0, %v4329
        %v4331 = vpop.f32.mrb[0].mxu0
        %v4332 = vadd.f32 0.0, %v4331
        %v4333 = vpop.f32.mrb[0].mxu0
        %v4334 = vadd.f32 0.0, %v4333
        %v4335 = vpop.f32.mrb[0].mxu0
        %v4336 = vadd.f32 0.0, %v4335
        %4337 = vmatprep.mubr.bf16.mxu0 0
        %4338 = vmatmul.mubr.bf16.gmra.mrb[0].mxu0 %v3656
        %v4339 = vpop.f32.mrb[0].mxu0
        %v4340 = vadd.f32 0.0, %v4339
        %v4341 = vpop.f32.mrb[0].mxu0
        %v4342 = vadd.f32 0.0, %v4341
        %v4343 = vpop.f32.mrb[0].mxu0
        %v4344 = vadd.f32 0.0, %v4343
        %v4345 = vpop.f32.mrb[0].mxu0
        %v4346 = vadd.f32 0.0, %v4345
        %4347 = vdwg.mxu0
        %v4348 = vadd.f32 %v4020, %v4250
        %v4349 = vadd.f32 %v4022, %v4252
        %v4350 = vadd.f32 %v4024, %v4254
        %v4351 = vadd.f32 %v4026, %v4256
        %v4352 = vadd.f32 %v4030, %v4260
        %v4353 = vadd.f32 %v4032, %v4262
        %v4354 = vadd.f32 %v4034, %v4264
        %v4355 = vadd.f32 %v4036, %v4266
        %v4356 = vadd.f32 %v4040, %v4270
        %v4357 = vadd.f32 %v4042, %v4272
        %v4358 = vadd.f32 %v4044, %v4274
        %v4359 = vadd.f32 %v4046, %v4276
        %v4360 = vadd.f32 %v4050, %v4280
        %v4361 = vadd.f32 %v4052, %v4282
        %v4362 = vadd.f32 %v4054, %v4284
        %v4363 = vadd.f32 %v4056, %v4286
        %v4364 = vadd.f32 %v4060, %v4290
        %v4365 = vadd.f32 %v4062, %v4292
        %v4366 = vadd.f32 %v4064, %v4294
        %v4367 = vadd.f32 %v4066, %v4296
        %v4368 = vadd.f32 %v4070, %v4300
        %v4369 = vadd.f32 %v4072, %v4302
        %v4370 = vadd.f32 %v4074, %v4304
        %v4371 = vadd.f32 %v4076, %v4306
        %v4372 = vadd.f32 %v4080, %v4310
        %v4373 = vadd.f32 %v4082, %v4312
        %v4374 = vadd.f32 %v4084, %v4314
        %v4375 = vadd.f32 %v4086, %v4316
        %v4376 = vadd.f32 %v4090, %v4320
        %v4377 = vadd.f32 %v4092, %v4322
        %v4378 = vadd.f32 %v4094, %v4324
        %v4379 = vadd.f32 %v4096, %v4326
        %v4380 = vadd.f32 %v4100, %v4330
        %v4381 = vadd.f32 %v4102, %v4332
        %v4382 = vadd.f32 %v4104, %v4334
        %v4383 = vadd.f32 %v4106, %v4336
        %v4384 = vadd.f32 %v4110, %v4340
        %v4385 = vadd.f32 %v4112, %v4342
        %v4386 = vadd.f32 %v4114, %v4344
        %v4387 = vadd.f32 %v4116, %v4346
        %s4388 = scalar_lea.vmem %s3, 384
        %v4389 = vld [vmem:[%s4388] sm:$0xff]
        %v4390 = vld [vmem:[%s4388 + $0x8] sm:$0xff]
        %v4391 = vld [vmem:[%s4388 + $0x10] sm:$0xff]
        %v4392 = vld [vmem:[%s4388 + $0x18] sm:$0xff]
        %v4393 = vld [vmem:[%s4388 + $0x20] sm:$0xff]
        %v4394 = vld [vmem:[%s4388 + $0x28] sm:$0xff]
        %v4395 = vld [vmem:[%s4388 + $0x30] sm:$0xff]
        %v4396 = vld [vmem:[%s4388 + $0x38] sm:$0xff]
        %v4397 = vld [vmem:[%s4388 + $0x40] sm:$0xff]
        %v4398 = vld [vmem:[%s4388 + $0x48] sm:$0xff]
        %v4399 = vld [vmem:[%s4388 + $0x50] sm:$0xff]
        %v4400 = vld [vmem:[%s4388 + $0x58] sm:$0xff]
        %v4401 = vld [vmem:[%s4388 + $0x60] sm:$0xff]
        %v4402 = vld [vmem:[%s4388 + $0x68] sm:$0xff]
        %v4403 = vld [vmem:[%s4388 + $0x70] sm:$0xff]
        %v4404 = vld [vmem:[%s4388 + $0x78] sm:$0xff]
        %v4421 = vunpack.c.l.b16 %v4389
        %v4422 = vunpack.c.h.b16 %v4389
        %v4423 = vunpack.c.l.b16 %v4390
        %v4424 = vunpack.c.h.b16 %v4390
        %v4425 = vunpack.c.l.b16 %v4391
        %v4426 = vunpack.c.h.b16 %v4391
        %v4427 = vunpack.c.l.b16 %v4392
        %v4428 = vunpack.c.h.b16 %v4392
        %v4429 = vunpack.c.l.b16 %v4393
        %v4430 = vunpack.c.h.b16 %v4393
        %v4431 = vunpack.c.l.b16 %v4394
        %v4432 = vunpack.c.h.b16 %v4394
        %v4433 = vunpack.c.l.b16 %v4395
        %v4434 = vunpack.c.h.b16 %v4395
        %v4435 = vunpack.c.l.b16 %v4396
        %v4436 = vunpack.c.h.b16 %v4396
        %v4437 = vunpack.c.l.b16 %v4397
        %v4438 = vunpack.c.h.b16 %v4397
        %v4439 = vunpack.c.l.b16 %v4398
        %v4440 = vunpack.c.h.b16 %v4398
        %v4441 = vunpack.c.l.b16 %v4399
        %v4442 = vunpack.c.h.b16 %v4399
        %v4443 = vunpack.c.l.b16 %v4400
        %v4444 = vunpack.c.h.b16 %v4400
        %v4445 = vunpack.c.l.b16 %v4401
        %v4446 = vunpack.c.h.b16 %v4401
        %v4447 = vunpack.c.l.b16 %v4402
        %v4448 = vunpack.c.h.b16 %v4402
        %v4449 = vunpack.c.l.b16 %v4403
        %v4450 = vunpack.c.h.b16 %v4403
        %v4451 = vunpack.c.l.b16 %v4404
        %v4452 = vunpack.c.h.b16 %v4404
        %v4453 = vpack.c.b16 %v4423, %v4421
        %v4454 = vpack.c.b16 %v4424, %v4422
        %v4455 = vpack.c.b16 %v4427, %v4425
        %v4456 = vpack.c.b16 %v4428, %v4426
        %v4457 = vpack.c.b16 %v4431, %v4429
        %v4458 = vpack.c.b16 %v4432, %v4430
        %v4459 = vpack.c.b16 %v4435, %v4433
        %v4460 = vpack.c.b16 %v4436, %v4434
        %v4461 = vpack.c.b16 %v4439, %v4437
        %v4462 = vpack.c.b16 %v4440, %v4438
        %v4463 = vpack.c.b16 %v4443, %v4441
        %v4464 = vpack.c.b16 %v4444, %v4442
        %v4465 = vpack.c.b16 %v4447, %v4445
        %v4466 = vpack.c.b16 %v4448, %v4446
        %v4467 = vpack.c.b16 %v4451, %v4449
        %v4468 = vpack.c.b16 %v4452, %v4450
        %4485 = vmatprep.subr.bf16.mxu0 %v4454
        %4486 = vmatpush1.bf16.msra.mxu0 %v4453
        %4487 = vmatprep.subr.bf16.mxu0 %v4456
        %4488 = vmatpush1.bf16.msra.mxu0 %v4455
        %4489 = vmatprep.subr.bf16.mxu0 %v4458
        %4490 = vmatpush1.bf16.msra.mxu0 %v4457
        %4491 = vmatprep.subr.bf16.mxu0 %v4460
        %4492 = vmatpush1.bf16.msra.mxu0 %v4459
        %4493 = vmatprep.subr.bf16.mxu0 %v4462
        %4494 = vmatpush1.bf16.msra.mxu0 %v4461
        %4495 = vmatprep.subr.bf16.mxu0 %v4464
        %4496 = vmatpush1.bf16.msra.mxu0 %v4463
        %4497 = vmatprep.subr.bf16.mxu0 %v4466
        %4498 = vmatpush1.bf16.msra.mxu0 %v4465
        %4499 = vmatprep.subr.bf16.mxu0 %v4468
        %4500 = vmatpush1.bf16.msra.mxu0 %v4467
        %4501 = vmatprep.subr.bf16.mxu0 0
        %4502 = vmatpush1.bf16.msra.mxu0 0
        %4503 = vmatprep.subr.bf16.mxu0 0
        %4504 = vmatpush1.bf16.msra.mxu0 0
        %4505 = vmatprep.subr.bf16.mxu0 0
        %4506 = vmatpush1.bf16.msra.mxu0 0
        %4507 = vmatprep.subr.bf16.mxu0 0
        %4508 = vmatpush1.bf16.msra.mxu0 0
        %4509 = vmatprep.subr.bf16.mxu0 0
        %4510 = vmatpush1.bf16.msra.mxu0 0
        %4511 = vmatprep.subr.bf16.mxu0 0
        %4512 = vmatpush1.bf16.msra.mxu0 0
        %4513 = vmatprep.subr.bf16.mxu0 0
        %4514 = vmatpush1.bf16.msra.mxu0 0
        %4515 = vmatprep.subr.bf16.mxu0 0
        %4516 = vmatpush1.bf16.msra.mxu0 0
        %4517 = vmatprep.mubr.bf16.mxu0 0
        %4518 = vmatmul.mubr.bf16.gmra.mrb[0].mxu0 %v3648
        %v4519 = vpop.f32.mrb[0].mxu0
        %v4520 = vadd.f32 0.0, %v4519
        %v4521 = vpop.f32.mrb[0].mxu0
        %v4522 = vadd.f32 0.0, %v4521
        %v4523 = vpop.f32.mrb[0].mxu0
        %v4524 = vadd.f32 0.0, %v4523
        %v4525 = vpop.f32.mrb[0].mxu0
        %v4526 = vadd.f32 0.0, %v4525
        %4527 = vmatprep.mubr.bf16.mxu0 0
        %4528 = vmatmul.mubr.bf16.gmra.mrb[0].mxu0 %v3649
        %v4529 = vpop.f32.mrb[0].mxu0
        %v4530 = vadd.f32 0.0, %v4529
        %v4531 = vpop.f32.mrb[0].mxu0
        %v4532 = vadd.f32 0.0, %v4531
        %v4533 = vpop.f32.mrb[0].mxu0
        %v4534 = vadd.f32 0.0, %v4533
        %v4535 = vpop.f32.mrb[0].mxu0
        %v4536 = vadd.f32 0.0, %v4535
        %4537 = vmatprep.mubr.bf16.mxu0 0
        %4538 = vmatmul.mubr.bf16.gmra.mrb[0].mxu0 %v3650
        %v4539 = vpop.f32.mrb[0].mxu0
        %v4540 = vadd.f32 0.0, %v4539
        %v4541 = vpop.f32.mrb[0].mxu0
        %v4542 = vadd.f32 0.0, %v4541
        %v4543 = vpop.f32.mrb[0].mxu0
        %v4544 = vadd.f32 0.0, %v4543
        %v4545 = vpop.f32.mrb[0].mxu0
        %v4546 = vadd.f32 0.0, %v4545
        %4547 = vmatprep.mubr.bf16.mxu0 0
        %4548 = vmatmul.mubr.bf16.gmra.mrb[0].mxu0 %v3651
        %v4549 = vpop.f32.mrb[0].mxu0
        %v4550 = vadd.f32 0.0, %v4549
        %v4551 = vpop.f32.mrb[0].mxu0
        %v4552 = vadd.f32 0.0, %v4551
        %v4553 = vpop.f32.mrb[0].mxu0
        %v4554 = vadd.f32 0.0, %v4553
        %v4555 = vpop.f32.mrb[0].mxu0
        %v4556 = vadd.f32 0.0, %v4555
        %4557 = vmatprep.mubr.bf16.mxu0 0
        %4558 = vmatmul.mubr.bf16.gmra.mrb[0].mxu0 %v3652
        %v4559 = vpop.f32.mrb[0].mxu0
        %v4560 = vadd.f32 0.0, %v4559
        %v4561 = vpop.f32.mrb[0].mxu0
        %v4562 = vadd.f32 0.0, %v4561
        %v4563 = vpop.f32.mrb[0].mxu0
        %v4564 = vadd.f32 0.0, %v4563
        %v4565 = vpop.f32.mrb[0].mxu0
        %v4566 = vadd.f32 0.0, %v4565
        %4567 = vmatprep.mubr.bf16.mxu0 0
        %4568 = vmatmul.mubr.bf16.gmra.mrb[0].mxu0 %v3653
        %v4569 = vpop.f32.mrb[0].mxu0
        %v4570 = vadd.f32 0.0, %v4569
        %v4571 = vpop.f32.mrb[0].mxu0
        %v4572 = vadd.f32 0.0, %v4571
        %v4573 = vpop.f32.mrb[0].mxu0
        %v4574 = vadd.f32 0.0, %v4573
        %v4575 = vpop.f32.mrb[0].mxu0
        %v4576 = vadd.f32 0.0, %v4575
        %4577 = vmatprep.mubr.bf16.mxu0 0
        %4578 = vmatmul.mubr.bf16.gmra.mrb[0].mxu0 %v3654
        %v4579 = vpop.f32.mrb[0].mxu0
        %v4580 = vadd.f32 0.0, %v4579
        %v4581 = vpop.f32.mrb[0].mxu0
        %v4582 = vadd.f32 0.0, %v4581
        %v4583 = vpop.f32.mrb[0].mxu0
        %v4584 = vadd.f32 0.0, %v4583
        %v4585 = vpop.f32.mrb[0].mxu0
        %v4586 = vadd.f32 0.0, %v4585
        %4587 = vmatprep.mubr.bf16.mxu0 0
        %4588 = vmatmul.mubr.bf16.gmra.mrb[0].mxu0 %v3655
        %v4589 = vpop.f32.mrb[0].mxu0
        %v4590 = vadd.f32 0.0, %v4589
        %v4591 = vpop.f32.mrb[0].mxu0
        %v4592 = vadd.f32 0.0, %v4591
        %v4593 = vpop.f32.mrb[0].mxu0
        %v4594 = vadd.f32 0.0, %v4593
        %v4595 = vpop.f32.mrb[0].mxu0
        %v4596 = vadd.f32 0.0, %v4595
        %4597 = vmatprep.mubr.bf16.mxu0 0
        %4598 = vmatmul.mubr.bf16.gmra.mrb[0].mxu0 %v3656
        %v4599 = vpop.f32.mrb[0].mxu0
        %v4600 = vadd.f32 0.0, %v4599
        %v4601 = vpop.f32.mrb[0].mxu0
        %v4602 = vadd.f32 0.0, %v4601
        %v4603 = vpop.f32.mrb[0].mxu0
        %v4604 = vadd.f32 0.0, %v4603
        %v4605 = vpop.f32.mrb[0].mxu0
        %v4606 = vadd.f32 0.0, %v4605
        %4607 = vmatprep.mubr.bf16.mxu0 0
        %4608 = vmatmul.mubr.bf16.gmra.mrb[0].mxu0 %v3657
        %v4609 = vpop.f32.mrb[0].mxu0
        %v4610 = vadd.f32 0.0, %v4609
        %v4611 = vpop.f32.mrb[0].mxu0
        %v4612 = vadd.f32 0.0, %v4611
        %v4613 = vpop.f32.mrb[0].mxu0
        %v4614 = vadd.f32 0.0, %v4613
        %v4615 = vpop.f32.mrb[0].mxu0
        %v4616 = vadd.f32 0.0, %v4615
        %4617 = vdwg.mxu0
        %v4618 = vadd.f32 %v4348, %v4520
        %v4619 = vadd.f32 %v4349, %v4522
        %v4620 = vadd.f32 %v4350, %v4524
        %v4621 = vadd.f32 %v4351, %v4526
        %v4622 = vadd.f32 %v4352, %v4530
        %v4623 = vadd.f32 %v4353, %v4532
        %v4624 = vadd.f32 %v4354, %v4534
        %v4625 = vadd.f32 %v4355, %v4536
        %v4626 = vadd.f32 %v4356, %v4540
        %v4627 = vadd.f32 %v4357, %v4542
        %v4628 = vadd.f32 %v4358, %v4544
        %v4629 = vadd.f32 %v4359, %v4546
        %v4630 = vadd.f32 %v4360, %v4550
        %v4631 = vadd.f32 %v4361, %v4552
        %v4632 = vadd.f32 %v4362, %v4554
        %v4633 = vadd.f32 %v4363, %v4556
        %v4634 = vadd.f32 %v4364, %v4560
        %v4635 = vadd.f32 %v4365, %v4562
        %v4636 = vadd.f32 %v4366, %v4564
        %v4637 = vadd.f32 %v4367, %v4566
        %v4638 = vadd.f32 %v4368, %v4570
        %v4639 = vadd.f32 %v4369, %v4572
        %v4640 = vadd.f32 %v4370, %v4574
        %v4641 = vadd.f32 %v4371, %v4576
        %v4642 = vadd.f32 %v4372, %v4580
        %v4643 = vadd.f32 %v4373, %v4582
        %v4644 = vadd.f32 %v4374, %v4584
        %v4645 = vadd.f32 %v4375, %v4586
        %v4646 = vadd.f32 %v4376, %v4590
        %v4647 = vadd.f32 %v4377, %v4592
        %v4648 = vadd.f32 %v4378, %v4594
        %v4649 = vadd.f32 %v4379, %v4596
        %v4650 = vadd.f32 %v4380, %v4600
        %v4651 = vadd.f32 %v4381, %v4602
        %v4652 = vadd.f32 %v4382, %v4604
        %v4653 = vadd.f32 %v4383, %v4606
        %v4654 = vadd.f32 %v4384, %v4610
        %v4655 = vadd.f32 %v4385, %v4612
        %v4656 = vadd.f32 %v4386, %v4614
        %v4657 = vadd.f32 %v4387, %v4616
        %s4658 = scalar_lea.vmem %s3, 512
        %v4659 = vld [vmem:[%s4658] sm:$0xff]
        %v4660 = vld [vmem:[%s4658 + $0x8] sm:$0xff]
        %v4661 = vld [vmem:[%s4658 + $0x10] sm:$0xff]
        %v4662 = vld [vmem:[%s4658 + $0x18] sm:$0xff]
        %v4663 = vld [vmem:[%s4658 + $0x20] sm:$0xff]
        %v4664 = vld [vmem:[%s4658 + $0x28] sm:$0xff]
        %v4665 = vld [vmem:[%s4658 + $0x30] sm:$0xff]
        %v4666 = vld [vmem:[%s4658 + $0x38] sm:$0xff]
        %v4667 = vld [vmem:[%s4658 + $0x40] sm:$0xff]
        %v4668 = vld [vmem:[%s4658 + $0x48] sm:$0xff]
        %v4669 = vld [vmem:[%s4658 + $0x50] sm:$0xff]
        %v4670 = vld [vmem:[%s4658 + $0x58] sm:$0xff]
        %v4671 = vld [vmem:[%s4658 + $0x60] sm:$0xff]
        %v4672 = vld [vmem:[%s4658 + $0x68] sm:$0xff]
        %v4673 = vld [vmem:[%s4658 + $0x70] sm:$0xff]
        %v4674 = vld [vmem:[%s4658 + $0x78] sm:$0xff]
        %v4691 = vunpack.c.l.b16 %v4659
        %v4692 = vunpack.c.h.b16 %v4659
        %v4693 = vunpack.c.l.b16 %v4660
        %v4694 = vunpack.c.h.b16 %v4660
        %v4695 = vunpack.c.l.b16 %v4661
        %v4696 = vunpack.c.h.b16 %v4661
        %v4697 = vunpack.c.l.b16 %v4662
        %v4698 = vunpack.c.h.b16 %v4662
        %v4699 = vunpack.c.l.b16 %v4663
        %v4700 = vunpack.c.h.b16 %v4663
        %v4701 = vunpack.c.l.b16 %v4664
        %v4702 = vunpack.c.h.b16 %v4664
        %v4703 = vunpack.c.l.b16 %v4665
        %v4704 = vunpack.c.h.b16 %v4665
        %v4705 = vunpack.c.l.b16 %v4666
        %v4706 = vunpack.c.h.b16 %v4666
        %v4707 = vunpack.c.l.b16 %v4667
        %v4708 = vunpack.c.h.b16 %v4667
        %v4709 = vunpack.c.l.b16 %v4668
        %v4710 = vunpack.c.h.b16 %v4668
        %v4711 = vunpack.c.l.b16 %v4669
        %v4712 = vunpack.c.h.b16 %v4669
        %v4713 = vunpack.c.l.b16 %v4670
        %v4714 = vunpack.c.h.b16 %v4670
        %v4715 = vunpack.c.l.b16 %v4671
        %v4716 = vunpack.c.h.b16 %v4671
        %v4717 = vunpack.c.l.b16 %v4672
        %v4718 = vunpack.c.h.b16 %v4672
        %v4719 = vunpack.c.l.b16 %v4673
        %v4720 = vunpack.c.h.b16 %v4673
        %v4721 = vunpack.c.l.b16 %v4674
        %v4722 = vunpack.c.h.b16 %v4674
        %v4723 = vpack.c.b16 %v4693, %v4691
        %v4724 = vpack.c.b16 %v4694, %v4692
        %v4725 = vpack.c.b16 %v4697, %v4695
        %v4726 = vpack.c.b16 %v4698, %v4696
        %v4727 = vpack.c.b16 %v4701, %v4699
        %v4728 = vpack.c.b16 %v4702, %v4700
        %v4729 = vpack.c.b16 %v4705, %v4703
        %v4730 = vpack.c.b16 %v4706, %v4704
        %v4731 = vpack.c.b16 %v4709, %v4707
        %v4732 = vpack.c.b16 %v4710, %v4708
        %v4733 = vpack.c.b16 %v4713, %v4711
        %v4734 = vpack.c.b16 %v4714, %v4712
        %v4735 = vpack.c.b16 %v4717, %v4715
        %v4736 = vpack.c.b16 %v4718, %v4716
        %v4737 = vpack.c.b16 %v4721, %v4719
        %v4738 = vpack.c.b16 %v4722, %v4720
        %4755 = vmatprep.subr.bf16.mxu0 %v4724
        %4756 = vmatpush1.bf16.msra.mxu0 %v4723
        %4757 = vmatprep.subr.bf16.mxu0 %v4726
        %4758 = vmatpush1.bf16.msra.mxu0 %v4725
        %4759 = vmatprep.subr.bf16.mxu0 %v4728
        %4760 = vmatpush1.bf16.msra.mxu0 %v4727
        %4761 = vmatprep.subr.bf16.mxu0 %v4730
        %4762 = vmatpush1.bf16.msra.mxu0 %v4729
        %4763 = vmatprep.subr.bf16.mxu0 %v4732
        %4764 = vmatpush1.bf16.msra.mxu0 %v4731
        %4765 = vmatprep.subr.bf16.mxu0 %v4734
        %4766 = vmatpush1.bf16.msra.mxu0 %v4733
        %4767 = vmatprep.subr.bf16.mxu0 %v4736
        %4768 = vmatpush1.bf16.msra.mxu0 %v4735
        %4769 = vmatprep.subr.bf16.mxu0 %v4738
        %4770 = vmatpush1.bf16.msra.mxu0 %v4737
        %4771 = vmatprep.subr.bf16.mxu0 0
        %4772 = vmatpush1.bf16.msra.mxu0 0
        %4773 = vmatprep.subr.bf16.mxu0 0
        %4774 = vmatpush1.bf16.msra.mxu0 0
        %4775 = vmatprep.subr.bf16.mxu0 0
        %4776 = vmatpush1.bf16.msra.mxu0 0
        %4777 = vmatprep.subr.bf16.mxu0 0
        %4778 = vmatpush1.bf16.msra.mxu0 0
        %4779 = vmatprep.subr.bf16.mxu0 0
        %4780 = vmatpush1.bf16.msra.mxu0 0
        %4781 = vmatprep.subr.bf16.mxu0 0
        %4782 = vmatpush1.bf16.msra.mxu0 0
        %4783 = vmatprep.subr.bf16.mxu0 0
        %4784 = vmatpush1.bf16.msra.mxu0 0
        %4785 = vmatprep.subr.bf16.mxu0 0
        %4786 = vmatpush1.bf16.msra.mxu0 0
        %4787 = vmatprep.mubr.bf16.mxu0 0
        %4788 = vmatmul.mubr.bf16.gmra.mrb[0].mxu0 %v3649
        %v4789 = vpop.f32.mrb[0].mxu0
        %v4790 = vadd.f32 0.0, %v4789
        %v4791 = vpop.f32.mrb[0].mxu0
        %v4792 = vadd.f32 0.0, %v4791
        %v4793 = vpop.f32.mrb[0].mxu0
        %v4794 = vadd.f32 0.0, %v4793
        %v4795 = vpop.f32.mrb[0].mxu0
        %v4796 = vadd.f32 0.0, %v4795
        %4797 = vmatprep.mubr.bf16.mxu0 0
        %4798 = vmatmul.mubr.bf16.gmra.mrb[0].mxu0 %v3650
        %v4799 = vpop.f32.mrb[0].mxu0
        %v4800 = vadd.f32 0.0, %v4799
        %v4801 = vpop.f32.mrb[0].mxu0
        %v4802 = vadd.f32 0.0, %v4801
        %v4803 = vpop.f32.mrb[0].mxu0
        %v4804 = vadd.f32 0.0, %v4803
        %v4805 = vpop.f32.mrb[0].mxu0
        %v4806 = vadd.f32 0.0, %v4805
        %4807 = vmatprep.mubr.bf16.mxu0 0
        %4808 = vmatmul.mubr.bf16.gmra.mrb[0].mxu0 %v3651
        %v4809 = vpop.f32.mrb[0].mxu0
        %v4810 = vadd.f32 0.0, %v4809
        %v4811 = vpop.f32.mrb[0].mxu0
        %v4812 = vadd.f32 0.0, %v4811
        %v4813 = vpop.f32.mrb[0].mxu0
        %v4814 = vadd.f32 0.0, %v4813
        %v4815 = vpop.f32.mrb[0].mxu0
        %v4816 = vadd.f32 0.0, %v4815
        %4817 = vmatprep.mubr.bf16.mxu0 0
        %4818 = vmatmul.mubr.bf16.gmra.mrb[0].mxu0 %v3652
        %v4819 = vpop.f32.mrb[0].mxu0
        %v4820 = vadd.f32 0.0, %v4819
        %v4821 = vpop.f32.mrb[0].mxu0
        %v4822 = vadd.f32 0.0, %v4821
        %v4823 = vpop.f32.mrb[0].mxu0
        %v4824 = vadd.f32 0.0, %v4823
        %v4825 = vpop.f32.mrb[0].mxu0
        %v4826 = vadd.f32 0.0, %v4825
        %4827 = vmatprep.mubr.bf16.mxu0 0
        %4828 = vmatmul.mubr.bf16.gmra.mrb[0].mxu0 %v3653
        %v4829 = vpop.f32.mrb[0].mxu0
        %v4830 = vadd.f32 0.0, %v4829
        %v4831 = vpop.f32.mrb[0].mxu0
        %v4832 = vadd.f32 0.0, %v4831
        %v4833 = vpop.f32.mrb[0].mxu0
        %v4834 = vadd.f32 0.0, %v4833
        %v4835 = vpop.f32.mrb[0].mxu0
        %v4836 = vadd.f32 0.0, %v4835
        %4837 = vmatprep.mubr.bf16.mxu0 0
        %4838 = vmatmul.mubr.bf16.gmra.mrb[0].mxu0 %v3654
        %v4839 = vpop.f32.mrb[0].mxu0
        %v4840 = vadd.f32 0.0, %v4839
        %v4841 = vpop.f32.mrb[0].mxu0
        %v4842 = vadd.f32 0.0, %v4841
        %v4843 = vpop.f32.mrb[0].mxu0
        %v4844 = vadd.f32 0.0, %v4843
        %v4845 = vpop.f32.mrb[0].mxu0
        %v4846 = vadd.f32 0.0, %v4845
        %4847 = vmatprep.mubr.bf16.mxu0 0
        %4848 = vmatmul.mubr.bf16.gmra.mrb[0].mxu0 %v3655
        %v4849 = vpop.f32.mrb[0].mxu0
        %v4850 = vadd.f32 0.0, %v4849
        %v4851 = vpop.f32.mrb[0].mxu0
        %v4852 = vadd.f32 0.0, %v4851
        %v4853 = vpop.f32.mrb[0].mxu0
        %v4854 = vadd.f32 0.0, %v4853
        %v4855 = vpop.f32.mrb[0].mxu0
        %v4856 = vadd.f32 0.0, %v4855
        %4857 = vmatprep.mubr.bf16.mxu0 0
        %4858 = vmatmul.mubr.bf16.gmra.mrb[0].mxu0 %v3656
        %v4859 = vpop.f32.mrb[0].mxu0
        %v4860 = vadd.f32 0.0, %v4859
        %v4861 = vpop.f32.mrb[0].mxu0
        %v4862 = vadd.f32 0.0, %v4861
        %v4863 = vpop.f32.mrb[0].mxu0
        %v4864 = vadd.f32 0.0, %v4863
        %v4865 = vpop.f32.mrb[0].mxu0
        %v4866 = vadd.f32 0.0, %v4865
        %4867 = vmatprep.mubr.bf16.mxu0 0
        %4868 = vmatmul.mubr.bf16.gmra.mrb[0].mxu0 %v3657
        %v4869 = vpop.f32.mrb[0].mxu0
        %v4870 = vadd.f32 0.0, %v4869
        %v4871 = vpop.f32.mrb[0].mxu0
        %v4872 = vadd.f32 0.0, %v4871
        %v4873 = vpop.f32.mrb[0].mxu0
        %v4874 = vadd.f32 0.0, %v4873
        %v4875 = vpop.f32.mrb[0].mxu0
        %v4876 = vadd.f32 0.0, %v4875
        %4877 = vmatprep.mubr.bf16.mxu0 0
        %4878 = vmatmul.mubr.bf16.gmra.mrb[0].mxu0 %v3658
        %v4879 = vpop.f32.mrb[0].mxu0
        %v4880 = vadd.f32 0.0, %v4879
        %v4881 = vpop.f32.mrb[0].mxu0
        %v4882 = vadd.f32 0.0, %v4881
        %v4883 = vpop.f32.mrb[0].mxu0
        %v4884 = vadd.f32 0.0, %v4883
        %v4885 = vpop.f32.mrb[0].mxu0
        %v4886 = vadd.f32 0.0, %v4885
        %4887 = vdwg.mxu0
        %v4888 = vadd.f32 %v4618, %v4790
        %v4889 = vadd.f32 %v4619, %v4792
        %v4890 = vadd.f32 %v4620, %v4794
        %v4891 = vadd.f32 %v4621, %v4796
        %v4892 = vadd.f32 %v4622, %v4800
        %v4893 = vadd.f32 %v4623, %v4802
        %v4894 = vadd.f32 %v4624, %v4804
        %v4895 = vadd.f32 %v4625, %v4806
        %v4896 = vadd.f32 %v4626, %v4810
        %v4897 = vadd.f32 %v4627, %v4812
        %v4898 = vadd.f32 %v4628, %v4814
        %v4899 = vadd.f32 %v4629, %v4816
        %v4900 = vadd.f32 %v4630, %v4820
        %v4901 = vadd.f32 %v4631, %v4822
        %v4902 = vadd.f32 %v4632, %v4824
        %v4903 = vadd.f32 %v4633, %v4826
        %v4904 = vadd.f32 %v4634, %v4830
        %v4905 = vadd.f32 %v4635, %v4832
        %v4906 = vadd.f32 %v4636, %v4834
        %v4907 = vadd.f32 %v4637, %v4836
        %v4908 = vadd.f32 %v4638, %v4840
        %v4909 = vadd.f32 %v4639, %v4842
        %v4910 = vadd.f32 %v4640, %v4844
        %v4911 = vadd.f32 %v4641, %v4846
        %v4912 = vadd.f32 %v4642, %v4850
        %v4913 = vadd.f32 %v4643, %v4852
        %v4914 = vadd.f32 %v4644, %v4854
        %v4915 = vadd.f32 %v4645, %v4856
        %v4916 = vadd.f32 %v4646, %v4860
        %v4917 = vadd.f32 %v4647, %v4862
        %v4918 = vadd.f32 %v4648, %v4864
        %v4919 = vadd.f32 %v4649, %v4866
        %v4920 = vadd.f32 %v4650, %v4870
        %v4921 = vadd.f32 %v4651, %v4872
        %v4922 = vadd.f32 %v4652, %v4874
        %v4923 = vadd.f32 %v4653, %v4876
        %v4924 = vadd.f32 %v4654, %v4880
        %v4925 = vadd.f32 %v4655, %v4882
        %v4926 = vadd.f32 %v4656, %v4884
        %v4927 = vadd.f32 %v4657, %v4886
        %v4928 = vld [vmem:[%s4] sm:$0x3]
        %v4930 = vlaneseq
        %v4931 = vshrl.u32 %v4930, 7
        %v4932 = vsub.s32 0, %v4931
        %v4933 = vrot.slane %v4928, %v4932
        %v4934 = vlaneseq
        %v4935 = vshrl.u32 %v4934, 7
        %v4936 = vsub.s32 1, %v4935
        %v4937 = vrot.slane %v4928, %v4936
        %v4940 = vadd.f32 %v4888, %v4933
        %v4941 = vadd.f32 %v4889, %v4937
        %v4942 = vadd.f32 %v4890, %v4933
        %v4943 = vadd.f32 %v4891, %v4937
        %v4944 = vadd.f32 %v4892, %v4933
        %v4945 = vadd.f32 %v4893, %v4937
        %v4946 = vadd.f32 %v4894, %v4933
        %v4947 = vadd.f32 %v4895, %v4937
        %v4948 = vadd.f32 %v4896, %v4933
        %v4949 = vadd.f32 %v4897, %v4937
        %v4950 = vadd.f32 %v4898, %v4933
        %v4951 = vadd.f32 %v4899, %v4937
        %v4952 = vadd.f32 %v4900, %v4933
        %v4953 = vadd.f32 %v4901, %v4937
        %v4954 = vadd.f32 %v4902, %v4933
        %v4955 = vadd.f32 %v4903, %v4937
        %v4956 = vadd.f32 %v4904, %v4933
        %v4957 = vadd.f32 %v4905, %v4937
        %v4958 = vadd.f32 %v4906, %v4933
        %v4959 = vadd.f32 %v4907, %v4937
        %v4960 = vadd.f32 %v4908, %v4933
        %v4961 = vadd.f32 %v4909, %v4937
        %v4962 = vadd.f32 %v4910, %v4933
        %v4963 = vadd.f32 %v4911, %v4937
        %v4964 = vadd.f32 %v4912, %v4933
        %v4965 = vadd.f32 %v4913, %v4937
        %v4966 = vadd.f32 %v4914, %v4933
        %v4967 = vadd.f32 %v4915, %v4937
        %v4968 = vadd.f32 %v4916, %v4933
        %v4969 = vadd.f32 %v4917, %v4937
        %v4970 = vadd.f32 %v4918, %v4933
        %v4971 = vadd.f32 %v4919, %v4937
        %v4972 = vadd.f32 %v4920, %v4933
        %v4973 = vadd.f32 %v4921, %v4937
        %v4974 = vadd.f32 %v4922, %v4933
        %v4975 = vadd.f32 %v4923, %v4937
        %v4976 = vadd.f32 %v4924, %v4933
        %v4977 = vadd.f32 %v4925, %v4937
        %v4978 = vadd.f32 %v4926, %v4933
        %v4979 = vadd.f32 %v4927, %v4937
        %v4980 = vmax.f32 %v4940, 0.0
        %v4981 = vmax.f32 %v4941, 0.0
        %v4982 = vmax.f32 %v4942, 0.0
        %v4983 = vmax.f32 %v4943, 0.0
        %v4984 = vmax.f32 %v4944, 0.0
        %v4985 = vmax.f32 %v4945, 0.0
        %v4986 = vmax.f32 %v4946, 0.0
        %v4987 = vmax.f32 %v4947, 0.0
        %v4988 = vmax.f32 %v4948, 0.0
        %v4989 = vmax.f32 %v4949, 0.0
        %v4990 = vmax.f32 %v4950, 0.0
        %v4991 = vmax.f32 %v4951, 0.0
        %v4992 = vmax.f32 %v4952, 0.0
        %v4993 = vmax.f32 %v4953, 0.0
        %v4994 = vmax.f32 %v4954, 0.0
        %v4995 = vmax.f32 %v4955, 0.0
        %v4996 = vmax.f32 %v4956, 0.0
        %v4997 = vmax.f32 %v4957, 0.0
        %v4998 = vmax.f32 %v4958, 0.0
        %v4999 = vmax.f32 %v4959, 0.0
        %v5000 = vmax.f32 %v4960, 0.0
        %v5001 = vmax.f32 %v4961, 0.0
        %v5002 = vmax.f32 %v4962, 0.0
        %v5003 = vmax.f32 %v4963, 0.0
        %v5004 = vmax.f32 %v4964, 0.0
        %v5005 = vmax.f32 %v4965, 0.0
        %v5006 = vmax.f32 %v4966, 0.0
        %v5007 = vmax.f32 %v4967, 0.0
        %v5008 = vmax.f32 %v4968, 0.0
        %v5009 = vmax.f32 %v4969, 0.0
        %v5010 = vmax.f32 %v4970, 0.0
        %v5011 = vmax.f32 %v4971, 0.0
        %v5012 = vmax.f32 %v4972, 0.0
        %v5013 = vmax.f32 %v4973, 0.0
        %v5014 = vmax.f32 %v4974, 0.0
        %v5015 = vmax.f32 %v4975, 0.0
        %v5016 = vmax.f32 %v4976, 0.0
        %v5017 = vmax.f32 %v4977, 0.0
        %v5018 = vmax.f32 %v4978, 0.0
        %v5019 = vmax.f32 %v4979, 0.0
        %v5020 = vmax.f32 %v4980, %v4981
        %v5021 = vmax.f32 %v4982, %v4983
        %v5022 = vmax.f32 %v4984, %v4985
        %v5023 = vmax.f32 %v4986, %v4987
        %v5024 = vmax.f32 %v4988, %v4989
        %v5025 = vmax.f32 %v4990, %v4991
        %v5026 = vmax.f32 %v4992, %v4993
        %v5027 = vmax.f32 %v4994, %v4995
        %v5028 = vmax.f32 %v4996, %v4997
        %v5029 = vmax.f32 %v4998, %v4999
        %v5030 = vmax.f32 %v5000, %v5001
        %v5031 = vmax.f32 %v5002, %v5003
        %v5032 = vmax.f32 %v5004, %v5005
        %v5033 = vmax.f32 %v5006, %v5007
        %v5034 = vmax.f32 %v5008, %v5009
        %v5035 = vmax.f32 %v5010, %v5011
        %v5036 = vmax.f32 %v5012, %v5013
        %v5037 = vmax.f32 %v5014, %v5015
        %v5038 = vmax.f32 %v5016, %v5017
        %v5039 = vmax.f32 %v5018, %v5019
        %v5040 = vmax.f32 %v5020, %v5022
        %v5041 = vmax.f32 %v5021, %v5023
        %v5042 = vmax.f32 %v5024, %v5026
        %v5043 = vmax.f32 %v5025, %v5027
        %v5044 = vmax.f32 %v5028, %v5030
        %v5045 = vmax.f32 %v5029, %v5031
        %v5046 = vmax.f32 %v5032, %v5034
        %v5047 = vmax.f32 %v5033, %v5035
        %v5048 = vmax.f32 %v5036, %v5038
        %v5049 = vmax.f32 %v5037, %v5039
        %v5050 = vpack.c.bf16 %v5041, %v5040
        %v5051 = vpack.c.bf16 %v5043, %v5042
        %v5052 = vpack.c.bf16 %v5045, %v5044
        %v5053 = vpack.c.bf16 %v5047, %v5046
        %v5054 = vpack.c.bf16 %v5049, %v5048
        %v5055 = vld [vmem:[%s5] sm:$0xf]
        %v5056 = vld [vmem:[%s5 + $0x4] sm:$0xf]
        %v5057 = vld [vmem:[%s5 + $0x8] sm:$0xf]
        %v5058 = vld [vmem:[%s5 + $0xc] sm:$0xf]
        %v5059 = vld [vmem:[%s5 + $0x10] sm:$0xf]
        %v5060 = vld [vmem:[%s5 + $0x14] sm:$0xf]
        %v5061 = vld [vmem:[%s5 + $0x18] sm:$0xf]
        %v5062 = vld [vmem:[%s5 + $0x1c] sm:$0xf]
        %v5063 = vld [vmem:[%s5 + $0x20] sm:$0xf]
        %v5064 = vld [vmem:[%s5 + $0x24] sm:$0xf]
        %v5065 = vld [vmem:[%s5 + $0x28] sm:$0xf]
        %v5066 = vld [vmem:[%s5 + $0x2c] sm:$0xf]
        %v5067 = vld [vmem:[%s5 + $0x30] sm:$0xf]
        %v5068 = vld [vmem:[%s5 + $0x34] sm:$0xf]
        %v5069 = vld [vmem:[%s5 + $0x38] sm:$0xf]
        %v5070 = vld [vmem:[%s5 + $0x3c] sm:$0xf]
        %s5071 = scalar_lea.vmem %s5, 64
        %v5072 = vld [vmem:[%s5071] sm:$0xf]
        %v5073 = vld [vmem:[%s5071 + $0x4] sm:$0xf]
        %v5074 = vld [vmem:[%s5071 + $0x8] sm:$0xf]
        %v5075 = vld [vmem:[%s5071 + $0xc] sm:$0xf]
        %v5076 = vld [vmem:[%s5071 + $0x10] sm:$0xf]
        %v5077 = vld [vmem:[%s5071 + $0x14] sm:$0xf]
        %v5078 = vld [vmem:[%s5071 + $0x18] sm:$0xf]
        %v5079 = vld [vmem:[%s5071 + $0x1c] sm:$0xf]
        %v5080 = vld [vmem:[%s5071 + $0x20] sm:$0xf]
        %v5081 = vld [vmem:[%s5071 + $0x24] sm:$0xf]
        %v5082 = vld [vmem:[%s5071 + $0x28] sm:$0xf]
        %v5083 = vld [vmem:[%s5071 + $0x2c] sm:$0xf]
        %v5084 = vld [vmem:[%s5071 + $0x30] sm:$0xf]
        %v5085 = vld [vmem:[%s5071 + $0x34] sm:$0xf]
        %v5086 = vld [vmem:[%s5071 + $0x38] sm:$0xf]
        %v5087 = vld [vmem:[%s5071 + $0x3c] sm:$0xf]
        %v5104 = vunpack.c.l.b16 %v5072
        %v5105 = vunpack.c.l.b16 %v5073
        %v5106 = vunpack.c.l.b16 %v5074
        %v5107 = vunpack.c.l.b16 %v5075
        %v5108 = vunpack.c.l.b16 %v5076
        %v5109 = vunpack.c.l.b16 %v5077
        %v5110 = vunpack.c.l.b16 %v5078
        %v5111 = vunpack.c.l.b16 %v5079
        %v5112 = vunpack.c.l.b16 %v5080
        %v5113 = vunpack.c.l.b16 %v5081
        %v5114 = vunpack.c.l.b16 %v5082
        %v5115 = vunpack.c.l.b16 %v5083
        %v5116 = vunpack.c.l.b16 %v5084
        %v5117 = vunpack.c.l.b16 %v5085
        %v5118 = vunpack.c.l.b16 %v5086
        %v5119 = vunpack.c.l.b16 %v5087
        %v5120 = vpack.c.b16 %v5105, %v5104
        %v5121 = vpack.c.b16 %v5107, %v5106
        %v5122 = vpack.c.b16 %v5109, %v5108
        %v5123 = vpack.c.b16 %v5111, %v5110
        %v5124 = vpack.c.b16 %v5113, %v5112
        %v5125 = vpack.c.b16 %v5115, %v5114
        %v5126 = vpack.c.b16 %v5117, %v5116
        %v5127 = vpack.c.b16 %v5119, %v5118
        %5136 = vmatprep.subr.bf16.mxu0 0
        %5137 = vmatpush1.bf16.msra.mxu0 %v5120
        %5138 = vmatprep.subr.bf16.mxu0 0
        %5139 = vmatpush1.bf16.msra.mxu0 %v5121
        %5140 = vmatprep.subr.bf16.mxu0 0
        %5141 = vmatpush1.bf16.msra.mxu0 %v5122
        %5142 = vmatprep.subr.bf16.mxu0 0
        %5143 = vmatpush1.bf16.msra.mxu0 %v5123
        %5144 = vmatprep.subr.bf16.mxu0 0
        %5145 = vmatpush1.bf16.msra.mxu0 %v5124
        %5146 = vmatprep.subr.bf16.mxu0 0
        %5147 = vmatpush1.bf16.msra.mxu0 %v5125
        %5148 = vmatprep.subr.bf16.mxu0 0
        %5149 = vmatpush1.bf16.msra.mxu0 %v5126
        %5150 = vmatprep.subr.bf16.mxu0 0
        %5151 = vmatpush1.bf16.msra.mxu0 %v5127
        %5152 = vmatprep.subr.bf16.mxu0 0
        %5153 = vmatpush1.bf16.msra.mxu0 0
        %5154 = vmatprep.subr.bf16.mxu0 0
        %5155 = vmatpush1.bf16.msra.mxu0 0
        %5156 = vmatprep.subr.bf16.mxu0 0
        %5157 = vmatpush1.bf16.msra.mxu0 0
        %5158 = vmatprep.subr.bf16.mxu0 0
        %5159 = vmatpush1.bf16.msra.mxu0 0
        %5160 = vmatprep.subr.bf16.mxu0 0
        %5161 = vmatpush1.bf16.msra.mxu0 0
        %5162 = vmatprep.subr.bf16.mxu0 0
        %5163 = vmatpush1.bf16.msra.mxu0 0
        %5164 = vmatprep.subr.bf16.mxu0 0
        %5165 = vmatpush1.bf16.msra.mxu0 0
        %5166 = vmatprep.subr.bf16.mxu0 0
        %5167 = vmatpush1.bf16.msra.mxu0 0
        %5168 = vmatprep.mubr.bf16.mxu0 0
        %5169 = vmatmul.mubr.bf16.gmra.mrb[0].mxu0 %v5051
        %v5170 = vpop.f32.mrb[0].mxu0
        %v5171 = vadd.f32 0.0, %v5170
        %v5172 = vpop.f32.mrb[0].mxu0
        %v5173 = vpop.f32.mrb[0].mxu0
        %v5174 = vadd.f32 0.0, %v5173
        %v5175 = vpop.f32.mrb[0].mxu0
        %5176 = vdwg.mxu0
        %v5193 = vunpack.c.l.b16 %v5055
        %v5194 = vunpack.c.l.b16 %v5056
        %v5195 = vunpack.c.l.b16 %v5057
        %v5196 = vunpack.c.l.b16 %v5058
        %v5197 = vunpack.c.l.b16 %v5059
        %v5198 = vunpack.c.l.b16 %v5060
        %v5199 = vunpack.c.l.b16 %v5061
        %v5200 = vunpack.c.l.b16 %v5062
        %v5201 = vunpack.c.l.b16 %v5063
        %v5202 = vunpack.c.l.b16 %v5064
        %v5203 = vunpack.c.l.b16 %v5065
        %v5204 = vunpack.c.l.b16 %v5066
        %v5205 = vunpack.c.l.b16 %v5067
        %v5206 = vunpack.c.l.b16 %v5068
        %v5207 = vunpack.c.l.b16 %v5069
        %v5208 = vunpack.c.l.b16 %v5070
        %v5209 = vpack.c.b16 %v5194, %v5193
        %v5210 = vpack.c.b16 %v5196, %v5195
        %v5211 = vpack.c.b16 %v5198, %v5197
        %v5212 = vpack.c.b16 %v5200, %v5199
        %v5213 = vpack.c.b16 %v5202, %v5201
        %v5214 = vpack.c.b16 %v5204, %v5203
        %v5215 = vpack.c.b16 %v5206, %v5205
        %v5216 = vpack.c.b16 %v5208, %v5207
        %5225 = vmatprep.subr.bf16.mxu0 0
        %5226 = vmatpush1.bf16.msra.mxu0 %v5209
        %5227 = vmatprep.subr.bf16.mxu0 0
        %5228 = vmatpush1.bf16.msra.mxu0 %v5210
        %5229 = vmatprep.subr.bf16.mxu0 0
        %5230 = vmatpush1.bf16.msra.mxu0 %v5211
        %5231 = vmatprep.subr.bf16.mxu0 0
        %5232 = vmatpush1.bf16.msra.mxu0 %v5212
        %5233 = vmatprep.subr.bf16.mxu0 0
        %5234 = vmatpush1.bf16.msra.mxu0 %v5213
        %5235 = vmatprep.subr.bf16.mxu0 0
        %5236 = vmatpush1.bf16.msra.mxu0 %v5214
        %5237 = vmatprep.subr.bf16.mxu0 0
        %5238 = vmatpush1.bf16.msra.mxu0 %v5215
        %5239 = vmatprep.subr.bf16.mxu0 0
        %5240 = vmatpush1.bf16.msra.mxu0 %v5216
        %5241 = vmatprep.subr.bf16.mxu0 0
        %5242 = vmatpush1.bf16.msra.mxu0 0
        %5243 = vmatprep.subr.bf16.mxu0 0
        %5244 = vmatpush1.bf16.msra.mxu0 0
        %5245 = vmatprep.subr.bf16.mxu0 0
        %5246 = vmatpush1.bf16.msra.mxu0 0
        %5247 = vmatprep.subr.bf16.mxu0 0
        %5248 = vmatpush1.bf16.msra.mxu0 0
        %5249 = vmatprep.subr.bf16.mxu0 0
        %5250 = vmatpush1.bf16.msra.mxu0 0
        %5251 = vmatprep.subr.bf16.mxu0 0
        %5252 = vmatpush1.bf16.msra.mxu0 0
        %5253 = vmatprep.subr.bf16.mxu0 0
        %5254 = vmatpush1.bf16.msra.mxu0 0
        %5255 = vmatprep.subr.bf16.mxu0 0
        %5256 = vmatpush1.bf16.msra.mxu0 0
        %5257 = vmatprep.mubr.bf16.mxu0 0
        %5258 = vmatmul.mubr.bf16.gmra.mrb[0].mxu0 %v5050
        %v5259 = vpop.f32.mrb[0].mxu0
        %v5260 = vadd.f32 %v5171, %v5259
        %v5261 = vpop.f32.mrb[0].mxu0
        %v5262 = vpop.f32.mrb[0].mxu0
        %v5263 = vadd.f32 %v5174, %v5262
        %v5264 = vpop.f32.mrb[0].mxu0
        %5265 = vdwg.mxu0
        %s5266 = scalar_lea.vmem %s5, 128
        %v5267 = vld [vmem:[%s5266] sm:$0xf]
        %v5268 = vld [vmem:[%s5266 + $0x4] sm:$0xf]
        %v5269 = vld [vmem:[%s5266 + $0x8] sm:$0xf]
        %v5270 = vld [vmem:[%s5266 + $0xc] sm:$0xf]
        %v5271 = vld [vmem:[%s5266 + $0x10] sm:$0xf]
        %v5272 = vld [vmem:[%s5266 + $0x14] sm:$0xf]
        %v5273 = vld [vmem:[%s5266 + $0x18] sm:$0xf]
        %v5274 = vld [vmem:[%s5266 + $0x1c] sm:$0xf]
        %v5275 = vld [vmem:[%s5266 + $0x20] sm:$0xf]
        %v5276 = vld [vmem:[%s5266 + $0x24] sm:$0xf]
        %v5277 = vld [vmem:[%s5266 + $0x28] sm:$0xf]
        %v5278 = vld [vmem:[%s5266 + $0x2c] sm:$0xf]
        %v5279 = vld [vmem:[%s5266 + $0x30] sm:$0xf]
        %v5280 = vld [vmem:[%s5266 + $0x34] sm:$0xf]
        %v5281 = vld [vmem:[%s5266 + $0x38] sm:$0xf]
        %v5282 = vld [vmem:[%s5266 + $0x3c] sm:$0xf]
        %v5299 = vunpack.c.l.b16 %v5267
        %v5300 = vunpack.c.l.b16 %v5268
        %v5301 = vunpack.c.l.b16 %v5269
        %v5302 = vunpack.c.l.b16 %v5270
        %v5303 = vunpack.c.l.b16 %v5271
        %v5304 = vunpack.c.l.b16 %v5272
        %v5305 = vunpack.c.l.b16 %v5273
        %v5306 = vunpack.c.l.b16 %v5274
        %v5307 = vunpack.c.l.b16 %v5275
        %v5308 = vunpack.c.l.b16 %v5276
        %v5309 = vunpack.c.l.b16 %v5277
        %v5310 = vunpack.c.l.b16 %v5278
        %v5311 = vunpack.c.l.b16 %v5279
        %v5312 = vunpack.c.l.b16 %v5280
        %v5313 = vunpack.c.l.b16 %v5281
        %v5314 = vunpack.c.l.b16 %v5282
        %v5315 = vpack.c.b16 %v5300, %v5299
        %v5316 = vpack.c.b16 %v5302, %v5301
        %v5317 = vpack.c.b16 %v5304, %v5303
        %v5318 = vpack.c.b16 %v5306, %v5305
        %v5319 = vpack.c.b16 %v5308, %v5307
        %v5320 = vpack.c.b16 %v5310, %v5309
        %v5321 = vpack.c.b16 %v5312, %v5311
        %v5322 = vpack.c.b16 %v5314, %v5313
        %5331 = vmatprep.subr.bf16.mxu0 0
        %5332 = vmatpush1.bf16.msra.mxu0 %v5315
        %5333 = vmatprep.subr.bf16.mxu0 0
        %5334 = vmatpush1.bf16.msra.mxu0 %v5316
        %5335 = vmatprep.subr.bf16.mxu0 0
        %5336 = vmatpush1.bf16.msra.mxu0 %v5317
        %5337 = vmatprep.subr.bf16.mxu0 0
        %5338 = vmatpush1.bf16.msra.mxu0 %v5318
        %5339 = vmatprep.subr.bf16.mxu0 0
        %5340 = vmatpush1.bf16.msra.mxu0 %v5319
        %5341 = vmatprep.subr.bf16.mxu0 0
        %5342 = vmatpush1.bf16.msra.mxu0 %v5320
        %5343 = vmatprep.subr.bf16.mxu0 0
        %5344 = vmatpush1.bf16.msra.mxu0 %v5321
        %5345 = vmatprep.subr.bf16.mxu0 0
        %5346 = vmatpush1.bf16.msra.mxu0 %v5322
        %5347 = vmatprep.subr.bf16.mxu0 0
        %5348 = vmatpush1.bf16.msra.mxu0 0
        %5349 = vmatprep.subr.bf16.mxu0 0
        %5350 = vmatpush1.bf16.msra.mxu0 0
        %5351 = vmatprep.subr.bf16.mxu0 0
        %5352 = vmatpush1.bf16.msra.mxu0 0
        %5353 = vmatprep.subr.bf16.mxu0 0
        %5354 = vmatpush1.bf16.msra.mxu0 0
        %5355 = vmatprep.subr.bf16.mxu0 0
        %5356 = vmatpush1.bf16.msra.mxu0 0
        %5357 = vmatprep.subr.bf16.mxu0 0
        %5358 = vmatpush1.bf16.msra.mxu0 0
        %5359 = vmatprep.subr.bf16.mxu0 0
        %5360 = vmatpush1.bf16.msra.mxu0 0
        %5361 = vmatprep.subr.bf16.mxu0 0
        %5362 = vmatpush1.bf16.msra.mxu0 0
        %5363 = vmatprep.mubr.bf16.mxu0 0
        %5364 = vmatmul.mubr.bf16.gmra.mrb[0].mxu0 %v5052
        %v5365 = vpop.f32.mrb[0].mxu0
        %v5366 = vadd.f32 0.0, %v5365
        %v5367 = vpop.f32.mrb[0].mxu0
        %v5368 = vpop.f32.mrb[0].mxu0
        %v5369 = vadd.f32 0.0, %v5368
        %v5370 = vpop.f32.mrb[0].mxu0
        %5371 = vdwg.mxu0
        %v5372 = vadd.f32 %v5260, %v5366
        %v5373 = vadd.f32 %v5263, %v5369
        %s5374 = scalar_lea.vmem %s5, 192
        %v5375 = vld [vmem:[%s5374] sm:$0xf]
        %v5376 = vld [vmem:[%s5374 + $0x4] sm:$0xf]
        %v5377 = vld [vmem:[%s5374 + $0x8] sm:$0xf]
        %v5378 = vld [vmem:[%s5374 + $0xc] sm:$0xf]
        %v5379 = vld [vmem:[%s5374 + $0x10] sm:$0xf]
        %v5380 = vld [vmem:[%s5374 + $0x14] sm:$0xf]
        %v5381 = vld [vmem:[%s5374 + $0x18] sm:$0xf]
        %v5382 = vld [vmem:[%s5374 + $0x1c] sm:$0xf]
        %v5383 = vld [vmem:[%s5374 + $0x20] sm:$0xf]
        %v5384 = vld [vmem:[%s5374 + $0x24] sm:$0xf]
        %v5385 = vld [vmem:[%s5374 + $0x28] sm:$0xf]
        %v5386 = vld [vmem:[%s5374 + $0x2c] sm:$0xf]
        %v5387 = vld [vmem:[%s5374 + $0x30] sm:$0xf]
        %v5388 = vld [vmem:[%s5374 + $0x34] sm:$0xf]
        %v5389 = vld [vmem:[%s5374 + $0x38] sm:$0xf]
        %v5390 = vld [vmem:[%s5374 + $0x3c] sm:$0xf]
        %v5407 = vunpack.c.l.b16 %v5375
        %v5408 = vunpack.c.l.b16 %v5376
        %v5409 = vunpack.c.l.b16 %v5377
        %v5410 = vunpack.c.l.b16 %v5378
        %v5411 = vunpack.c.l.b16 %v5379
        %v5412 = vunpack.c.l.b16 %v5380
        %v5413 = vunpack.c.l.b16 %v5381
        %v5414 = vunpack.c.l.b16 %v5382
        %v5415 = vunpack.c.l.b16 %v5383
        %v5416 = vunpack.c.l.b16 %v5384
        %v5417 = vunpack.c.l.b16 %v5385
        %v5418 = vunpack.c.l.b16 %v5386
        %v5419 = vunpack.c.l.b16 %v5387
        %v5420 = vunpack.c.l.b16 %v5388
        %v5421 = vunpack.c.l.b16 %v5389
        %v5422 = vunpack.c.l.b16 %v5390
        %v5423 = vpack.c.b16 %v5408, %v5407
        %v5424 = vpack.c.b16 %v5410, %v5409
        %v5425 = vpack.c.b16 %v5412, %v5411
        %v5426 = vpack.c.b16 %v5414, %v5413
        %v5427 = vpack.c.b16 %v5416, %v5415
        %v5428 = vpack.c.b16 %v5418, %v5417
        %v5429 = vpack.c.b16 %v5420, %v5419
        %v5430 = vpack.c.b16 %v5422, %v5421
        %5439 = vmatprep.subr.bf16.mxu0 0
        %5440 = vmatpush1.bf16.msra.mxu0 %v5423
        %5441 = vmatprep.subr.bf16.mxu0 0
        %5442 = vmatpush1.bf16.msra.mxu0 %v5424
        %5443 = vmatprep.subr.bf16.mxu0 0
        %5444 = vmatpush1.bf16.msra.mxu0 %v5425
        %5445 = vmatprep.subr.bf16.mxu0 0
        %5446 = vmatpush1.bf16.msra.mxu0 %v5426
        %5447 = vmatprep.subr.bf16.mxu0 0
        %5448 = vmatpush1.bf16.msra.mxu0 %v5427
        %5449 = vmatprep.subr.bf16.mxu0 0
        %5450 = vmatpush1.bf16.msra.mxu0 %v5428
        %5451 = vmatprep.subr.bf16.mxu0 0
        %5452 = vmatpush1.bf16.msra.mxu0 %v5429
        %5453 = vmatprep.subr.bf16.mxu0 0
        %5454 = vmatpush1.bf16.msra.mxu0 %v5430
        %5455 = vmatprep.subr.bf16.mxu0 0
        %5456 = vmatpush1.bf16.msra.mxu0 0
        %5457 = vmatprep.subr.bf16.mxu0 0
        %5458 = vmatpush1.bf16.msra.mxu0 0
        %5459 = vmatprep.subr.bf16.mxu0 0
        %5460 = vmatpush1.bf16.msra.mxu0 0
        %5461 = vmatprep.subr.bf16.mxu0 0
        %5462 = vmatpush1.bf16.msra.mxu0 0
        %5463 = vmatprep.subr.bf16.mxu0 0
        %5464 = vmatpush1.bf16.msra.mxu0 0
        %5465 = vmatprep.subr.bf16.mxu0 0
        %5466 = vmatpush1.bf16.msra.mxu0 0
        %5467 = vmatprep.subr.bf16.mxu0 0
        %5468 = vmatpush1.bf16.msra.mxu0 0
        %5469 = vmatprep.subr.bf16.mxu0 0
        %5470 = vmatpush1.bf16.msra.mxu0 0
        %5471 = vmatprep.mubr.bf16.mxu0 0
        %5472 = vmatmul.mubr.bf16.gmra.mrb[0].mxu0 %v5053
        %v5473 = vpop.f32.mrb[0].mxu0
        %v5474 = vadd.f32 0.0, %v5473
        %v5475 = vpop.f32.mrb[0].mxu0
        %v5476 = vpop.f32.mrb[0].mxu0
        %v5477 = vadd.f32 0.0, %v5476
        %v5478 = vpop.f32.mrb[0].mxu0
        %5479 = vdwg.mxu0
        %v5480 = vadd.f32 %v5372, %v5474
        %v5481 = vadd.f32 %v5373, %v5477
        %s5482 = scalar_lea.vmem %s5, 256
        %v5483 = vld [vmem:[%s5482] sm:$0xf]
        %v5484 = vld [vmem:[%s5482 + $0x4] sm:$0xf]
        %v5485 = vld [vmem:[%s5482 + $0x8] sm:$0xf]
        %v5486 = vld [vmem:[%s5482 + $0xc] sm:$0xf]
        %v5487 = vld [vmem:[%s5482 + $0x10] sm:$0xf]
        %v5488 = vld [vmem:[%s5482 + $0x14] sm:$0xf]
        %v5489 = vld [vmem:[%s5482 + $0x18] sm:$0xf]
        %v5490 = vld [vmem:[%s5482 + $0x1c] sm:$0xf]
        %v5491 = vld [vmem:[%s5482 + $0x20] sm:$0xf]
        %v5492 = vld [vmem:[%s5482 + $0x24] sm:$0xf]
        %v5493 = vld [vmem:[%s5482 + $0x28] sm:$0xf]
        %v5494 = vld [vmem:[%s5482 + $0x2c] sm:$0xf]
        %v5495 = vld [vmem:[%s5482 + $0x30] sm:$0xf]
        %v5496 = vld [vmem:[%s5482 + $0x34] sm:$0xf]
        %v5497 = vld [vmem:[%s5482 + $0x38] sm:$0xf]
        %v5498 = vld [vmem:[%s5482 + $0x3c] sm:$0xf]
        %v5515 = vunpack.c.l.b16 %v5483
        %v5516 = vunpack.c.l.b16 %v5484
        %v5517 = vunpack.c.l.b16 %v5485
        %v5518 = vunpack.c.l.b16 %v5486
        %v5519 = vunpack.c.l.b16 %v5487
        %v5520 = vunpack.c.l.b16 %v5488
        %v5521 = vunpack.c.l.b16 %v5489
        %v5522 = vunpack.c.l.b16 %v5490
        %v5523 = vunpack.c.l.b16 %v5491
        %v5524 = vunpack.c.l.b16 %v5492
        %v5525 = vunpack.c.l.b16 %v5493
        %v5526 = vunpack.c.l.b16 %v5494
        %v5527 = vunpack.c.l.b16 %v5495
        %v5528 = vunpack.c.l.b16 %v5496
        %v5529 = vunpack.c.l.b16 %v5497
        %v5530 = vunpack.c.l.b16 %v5498
        %v5531 = vpack.c.b16 %v5516, %v5515
        %v5532 = vpack.c.b16 %v5518, %v5517
        %v5533 = vpack.c.b16 %v5520, %v5519
        %v5534 = vpack.c.b16 %v5522, %v5521
        %v5535 = vpack.c.b16 %v5524, %v5523
        %v5536 = vpack.c.b16 %v5526, %v5525
        %v5537 = vpack.c.b16 %v5528, %v5527
        %v5538 = vpack.c.b16 %v5530, %v5529
        %5547 = vmatprep.subr.bf16.mxu0 0
        %5548 = vmatpush1.bf16.msra.mxu0 %v5531
        %5549 = vmatprep.subr.bf16.mxu0 0
        %5550 = vmatpush1.bf16.msra.mxu0 %v5532
        %5551 = vmatprep.subr.bf16.mxu0 0
        %5552 = vmatpush1.bf16.msra.mxu0 %v5533
        %5553 = vmatprep.subr.bf16.mxu0 0
        %5554 = vmatpush1.bf16.msra.mxu0 %v5534
        %5555 = vmatprep.subr.bf16.mxu0 0
        %5556 = vmatpush1.bf16.msra.mxu0 %v5535
        %5557 = vmatprep.subr.bf16.mxu0 0
        %5558 = vmatpush1.bf16.msra.mxu0 %v5536
        %5559 = vmatprep.subr.bf16.mxu0 0
        %5560 = vmatpush1.bf16.msra.mxu0 %v5537
        %5561 = vmatprep.subr.bf16.mxu0 0
        %5562 = vmatpush1.bf16.msra.mxu0 %v5538
        %5563 = vmatprep.subr.bf16.mxu0 0
        %5564 = vmatpush1.bf16.msra.mxu0 0
        %5565 = vmatprep.subr.bf16.mxu0 0
        %5566 = vmatpush1.bf16.msra.mxu0 0
        %5567 = vmatprep.subr.bf16.mxu0 0
        %5568 = vmatpush1.bf16.msra.mxu0 0
        %5569 = vmatprep.subr.bf16.mxu0 0
        %5570 = vmatpush1.bf16.msra.mxu0 0
        %5571 = vmatprep.subr.bf16.mxu0 0
        %5572 = vmatpush1.bf16.msra.mxu0 0
        %5573 = vmatprep.subr.bf16.mxu0 0
        %5574 = vmatpush1.bf16.msra.mxu0 0
        %5575 = vmatprep.subr.bf16.mxu0 0
        %5576 = vmatpush1.bf16.msra.mxu0 0
        %5577 = vmatprep.subr.bf16.mxu0 0
        %5578 = vmatpush1.bf16.msra.mxu0 0
        %5579 = vmatprep.mubr.bf16.mxu0 0
        %5580 = vmatmul.mubr.bf16.gmra.mrb[0].mxu0 %v5054
        %v5581 = vpop.f32.mrb[0].mxu0
        %v5582 = vadd.f32 0.0, %v5581
        %v5583 = vpop.f32.mrb[0].mxu0
        %v5584 = vpop.f32.mrb[0].mxu0
        %v5585 = vadd.f32 0.0, %v5584
        %v5586 = vpop.f32.mrb[0].mxu0
        %5587 = vdwg.mxu0
        %v5588 = vadd.f32 %v5480, %v5582
        %v5589 = vadd.f32 %v5481, %v5585
        %v5590 = vld [vmem:[%s6] sm:$0x1]
        %v5592 = vlaneseq
        %v5593 = vshrl.u32 %v5592, 7
        %v5594 = vsub.s32 0, %v5593
        %v5595 = vrot.slane %v5590, %v5594
        %v5597 = vadd.f32 %v5588, %v5595
        %v5598 = vadd.f32 %v5589, %v5595
        %v5599 = vmax.f32 %v5597, 0.0
        %v5600 = vmax.f32 %v5598, 0.0
        %v5601 = vpack.c.bf16 %v5600, %v5599
        %v5602 = vld [vmem:[%s7] sm:$0xf]
        %v5603 = vld [vmem:[%s7 + $0x4] sm:$0xf]
        %v5604 = vld [vmem:[%s7 + $0x8] sm:$0xf]
        %v5605 = vld [vmem:[%s7 + $0xc] sm:$0xf]
        %v5606 = vld [vmem:[%s7 + $0x10] sm:$0xf]
        %v5607 = vld [vmem:[%s7 + $0x14] sm:$0xf]
        %v5608 = vld [vmem:[%s7 + $0x18] sm:$0xf]
        %v5609 = vld [vmem:[%s7 + $0x1c] sm:$0xf]
        %v5610 = vld [vmem:[%s7 + $0x20] sm:$0xf]
        %v5611 = vld [vmem:[%s7 + $0x24] sm:$0xf]
        %v5612 = vld [vmem:[%s7 + $0x28] sm:$0xf]
        %v5613 = vld [vmem:[%s7 + $0x2c] sm:$0xf]
        %v5614 = vld [vmem:[%s7 + $0x30] sm:$0xf]
        %v5615 = vld [vmem:[%s7 + $0x34] sm:$0xf]
        %v5616 = vld [vmem:[%s7 + $0x38] sm:$0xf]
        %v5617 = vld [vmem:[%s7 + $0x3c] sm:$0xf]
        %v5618 = vld [vmem:[%s8] sm:$0x1]
        %v5620 = vlaneseq
        %v5621 = vshrl.u32 %v5620, 7
        %v5622 = vsub.s32 0, %v5621
        %v5623 = vrot.slane %v5618, %v5622
        %v5641 = vunpack.c.l.b16 %v5602
        %v5642 = vunpack.c.l.b16 %v5603
        %v5643 = vunpack.c.l.b16 %v5604
        %v5644 = vunpack.c.l.b16 %v5605
        %v5645 = vunpack.c.l.b16 %v5606
        %v5646 = vunpack.c.l.b16 %v5607
        %v5647 = vunpack.c.l.b16 %v5608
        %v5648 = vunpack.c.l.b16 %v5609
        %v5649 = vunpack.c.l.b16 %v5610
        %v5650 = vunpack.c.l.b16 %v5611
        %v5651 = vunpack.c.l.b16 %v5612
        %v5652 = vunpack.c.l.b16 %v5613
        %v5653 = vunpack.c.l.b16 %v5614
        %v5654 = vunpack.c.l.b16 %v5615
        %v5655 = vunpack.c.l.b16 %v5616
        %v5656 = vunpack.c.l.b16 %v5617
        %v5657 = vpack.c.b16 %v5642, %v5641
        %v5658 = vpack.c.b16 %v5644, %v5643
        %v5659 = vpack.c.b16 %v5646, %v5645
        %v5660 = vpack.c.b16 %v5648, %v5647
        %v5661 = vpack.c.b16 %v5650, %v5649
        %v5662 = vpack.c.b16 %v5652, %v5651
        %v5663 = vpack.c.b16 %v5654, %v5653
        %v5664 = vpack.c.b16 %v5656, %v5655
        %5673 = vmatprep.subr.bf16.mxu0 0
        %5674 = vmatpush1.bf16.msra.mxu0 %v5657
        %5675 = vmatprep.subr.bf16.mxu0 0
        %5676 = vmatpush1.bf16.msra.mxu0 %v5658
        %5677 = vmatprep.subr.bf16.mxu0 0
        %5678 = vmatpush1.bf16.msra.mxu0 %v5659
        %5679 = vmatprep.subr.bf16.mxu0 0
        %5680 = vmatpush1.bf16.msra.mxu0 %v5660
        %5681 = vmatprep.subr.bf16.mxu0 0
        %5682 = vmatpush1.bf16.msra.mxu0 %v5661
        %5683 = vmatprep.subr.bf16.mxu0 0
        %5684 = vmatpush1.bf16.msra.mxu0 %v5662
        %5685 = vmatprep.subr.bf16.mxu0 0
        %5686 = vmatpush1.bf16.msra.mxu0 %v5663
        %5687 = vmatprep.subr.bf16.mxu0 0
        %5688 = vmatpush1.bf16.msra.mxu0 %v5664
        %5689 = vmatprep.subr.bf16.mxu0 0
        %5690 = vmatpush1.bf16.msra.mxu0 0
        %5691 = vmatprep.subr.bf16.mxu0 0
        %5692 = vmatpush1.bf16.msra.mxu0 0
        %5693 = vmatprep.subr.bf16.mxu0 0
        %5694 = vmatpush1.bf16.msra.mxu0 0
        %5695 = vmatprep.subr.bf16.mxu0 0
        %5696 = vmatpush1.bf16.msra.mxu0 0
        %5697 = vmatprep.subr.bf16.mxu0 0
        %5698 = vmatpush1.bf16.msra.mxu0 0
        %5699 = vmatprep.subr.bf16.mxu0 0
        %5700 = vmatpush1.bf16.msra.mxu0 0
        %5701 = vmatprep.subr.bf16.mxu0 0
        %5702 = vmatpush1.bf16.msra.mxu0 0
        %5703 = vmatprep.subr.bf16.mxu0 0
        %5704 = vmatpush1.bf16.msra.mxu0 0
        %5705 = vmatprep.mubr.bf16.mxu0 0
        %5706 = vmatmul.mubr.bf16.gmra.mrb[0].mxu0 %v5601
        %v5707 = vpop.f32.mrb[0].mxu0
        %v5708 = vadd.f32 %v5623, %v5707
        %v5709 = vpop.f32.mrb[0].mxu0
        %v5710 = vpop.f32.mrb[0].mxu0
        %v5711 = vadd.f32 %v5623, %v5710
        %v5712 = vpop.f32.mrb[0].mxu0
        %5713 = vdwg.mxu0
        %v5714 = vmax.f32 %v5708, 0.0
        %v5715 = vmax.f32 %v5711, 0.0
        %v5716 = vpack.c.bf16 %v5715, %v5714
        %v5717 = vld [vmem:[%s9] sm:$0xf]
        %v5718 = vld [vmem:[%s9 + $0x4] sm:$0xf]
        %v5719 = vld [vmem:[%s9 + $0x8] sm:$0xf]
        %v5720 = vld [vmem:[%s9 + $0xc] sm:$0xf]
        %v5721 = vld [vmem:[%s9 + $0x10] sm:$0xf]
        %v5722 = vld [vmem:[%s9 + $0x14] sm:$0xf]
        %v5723 = vld [vmem:[%s9 + $0x18] sm:$0xf]
        %v5724 = vld [vmem:[%s9 + $0x1c] sm:$0xf]
        %v5725 = vld [vmem:[%s9 + $0x20] sm:$0xf]
        %v5726 = vld [vmem:[%s9 + $0x24] sm:$0xf]
        %v5727 = vld [vmem:[%s9 + $0x28] sm:$0xf]
        %v5728 = vld [vmem:[%s9 + $0x2c] sm:$0xf]
        %v5729 = vld [vmem:[%s9 + $0x30] sm:$0xf]
        %v5730 = vld [vmem:[%s9 + $0x34] sm:$0xf]
        %v5731 = vld [vmem:[%s9 + $0x38] sm:$0xf]
        %v5732 = vld [vmem:[%s9 + $0x3c] sm:$0xf]
        %v5733 = vld [vmem:[%s10] sm:$0x1]
        %v5735 = vlaneseq
        %v5736 = vshrl.u32 %v5735, 7
        %v5737 = vsub.s32 0, %v5736
        %v5738 = vrot.slane %v5733, %v5737
        %v5756 = vunpack.c.l.b16 %v5717
        %v5757 = vunpack.c.l.b16 %v5718
        %v5758 = vunpack.c.l.b16 %v5719
        %v5759 = vunpack.c.l.b16 %v5720
        %v5760 = vunpack.c.l.b16 %v5721
        %v5761 = vunpack.c.l.b16 %v5722
        %v5762 = vunpack.c.l.b16 %v5723
        %v5763 = vunpack.c.l.b16 %v5724
        %v5764 = vunpack.c.l.b16 %v5725
        %v5765 = vunpack.c.l.b16 %v5726
        %v5766 = vunpack.c.l.b16 %v5727
        %v5767 = vunpack.c.l.b16 %v5728
        %v5768 = vunpack.c.l.b16 %v5729
        %v5769 = vunpack.c.l.b16 %v5730
        %v5770 = vunpack.c.l.b16 %v5731
        %v5771 = vunpack.c.l.b16 %v5732
        %v5772 = vpack.c.b16 %v5757, %v5756
        %v5773 = vpack.c.b16 %v5759, %v5758
        %v5774 = vpack.c.b16 %v5761, %v5760
        %v5775 = vpack.c.b16 %v5763, %v5762
        %v5776 = vpack.c.b16 %v5765, %v5764
        %v5777 = vpack.c.b16 %v5767, %v5766
        %v5778 = vpack.c.b16 %v5769, %v5768
        %v5779 = vpack.c.b16 %v5771, %v5770
        %5788 = vmatprep.subr.bf16.mxu0 0
        %5789 = vmatpush1.bf16.msra.mxu0 %v5772
        %5790 = vmatprep.subr.bf16.mxu0 0
        %5791 = vmatpush1.bf16.msra.mxu0 %v5773
        %5792 = vmatprep.subr.bf16.mxu0 0
        %5793 = vmatpush1.bf16.msra.mxu0 %v5774
        %5794 = vmatprep.subr.bf16.mxu0 0
        %5795 = vmatpush1.bf16.msra.mxu0 %v5775
        %5796 = vmatprep.subr.bf16.mxu0 0
        %5797 = vmatpush1.bf16.msra.mxu0 %v5776
        %5798 = vmatprep.subr.bf16.mxu0 0
        %5799 = vmatpush1.bf16.msra.mxu0 %v5777
        %5800 = vmatprep.subr.bf16.mxu0 0
        %5801 = vmatpush1.bf16.msra.mxu0 %v5778
        %5802 = vmatprep.subr.bf16.mxu0 0
        %5803 = vmatpush1.bf16.msra.mxu0 %v5779
        %5804 = vmatprep.subr.bf16.mxu0 0
        %5805 = vmatpush1.bf16.msra.mxu0 0
        %5806 = vmatprep.subr.bf16.mxu0 0
        %5807 = vmatpush1.bf16.msra.mxu0 0
        %5808 = vmatprep.subr.bf16.mxu0 0
        %5809 = vmatpush1.bf16.msra.mxu0 0
        %5810 = vmatprep.subr.bf16.mxu0 0
        %5811 = vmatpush1.bf16.msra.mxu0 0
        %5812 = vmatprep.subr.bf16.mxu0 0
        %5813 = vmatpush1.bf16.msra.mxu0 0
        %5814 = vmatprep.subr.bf16.mxu0 0
        %5815 = vmatpush1.bf16.msra.mxu0 0
        %5816 = vmatprep.subr.bf16.mxu0 0
        %5817 = vmatpush1.bf16.msra.mxu0 0
        %5818 = vmatprep.subr.bf16.mxu0 0
        %5819 = vmatpush1.bf16.msra.mxu0 0
        %5820 = vmatprep.mubr.bf16.mxu0 0
        %5821 = vmatmul.mubr.bf16.gmra.mrb[0].mxu0 %v5716
        %v5822 = vpop.f32.mrb[0].mxu0
        %v5823 = vadd.f32 %v5738, %v5822
        %v5824 = vpop.f32.mrb[0].mxu0
        %v5825 = vpop.f32.mrb[0].mxu0
        %v5826 = vadd.f32 %v5738, %v5825
        %v5827 = vpop.f32.mrb[0].mxu0
        %5828 = vdwg.mxu0
        %5829 = vst [vmem:[%s681] sm:$0xff] %v5823
        %5830 = vst [vmem:[%s681 + $0x8] sm:$0xff] %v5826
        %s5831 = smul.u32 2, %s22
        %p5832 = scmp.lt.s32.totalorder %s5831, 3
        %s5833 = scalar_select %p5832, %s5831, 3
        %s5834 = smul.addr %s5833, 8
        %s5835 = scalar_lea.vmem %s11, %s5834
        // Predicated region
        $region106: #{cnn_forward.1} parent=100 // pred_check
          %p5836 = pneg %p276
        $region107: #{cnn_forward.1} parent=100 // pred_check_branch
          %5838 = sbr.rel (%p5836) target = $region109
        $region108: #{cnn_forward.1} parent=100 // pred_region
          %s5839 = smul.u32 2, %s22
        $region109: #{cnn_forward.1} parent=100 // pred_fallthru
          _
      $region101: #{cnn_forward.1} parent=5 // pred_fallthru
        _
      %p5840 = scmp.le.s32.totalorder 2, %s17
      // Predicated region
      $region110: #{cnn_forward.1} parent=5 // pred_check
        %p5841 = pneg %p5840
      $region111: #{cnn_forward.1} parent=5 // pred_check_branch
        %5843 = sbr.rel (%p5841) target = $region113
      $region112: #{cnn_forward.1} parent=5 // pred_region
        %s5844 = ssub.s32 %s17, 2
        // Predicated region
        $region114: #{cnn_forward.1} parent=112 // pred_check
          %p5845 = pneg %p282
        $region115: #{cnn_forward.1} parent=112 // pred_check_branch
          %5847 = sbr.rel (%p5845) target = $region117
        $region116: #{cnn_forward.1} parent=112 // pred_region
          %s5848 = smul.u32 2, %s23
          %p5849 = scmp.lt.s32.totalorder %s5848, 3
          %s5850 = scalar_select %p5849, %s5848, 3
          %s5851 = smul.addr %s5850, 8
          %s5852 = scalar_lea.vmem %s11, %s5851
        $region117: #{cnn_forward.1} parent=112 // pred_fallthru
          _
      $region113: #{cnn_forward.1} parent=5 // pred_fallthru
        _
    $region6: #{cnn_forward.1} parent=1 // loop_footer
      %s21 = sadd.s32 1, %s17
    $region7: #{cnn_forward.1} parent=1 // loop_footer_branch
      %16 = sbr.rel target = $region3
    $region8: #{cnn_forward.1} parent=1 // loop_exit
      _

</llo_original>
